<compile_context>
chip_gen: v5e
topology: v5e:2x2
jax: 0.10.0
libtpu: 0.0.40
codegen_flags: <defaults>
</compile_context>

<pallas_src>
import functools
import math

import jax
import jax.numpy as jnp
from jax.experimental import pallas as pl
from jax.experimental.pallas import tpu as pltpu

_F32 = jnp.float32
_CONTRACT_LAST = (((1,), (1,)), ((), ()))     # a @ b.T without materializing b.T
_MXU_BF16_MIN_N = 512                         # bf16 MXU operands only at large N
_SCOPED_VMEM_DEFAULT = 32 * 1024 * 1024       # v6e/v7x scoped default (v5e: 16 MiB)


# ----------------------------------------------------------------------------
# in-kernel helpers
# ----------------------------------------------------------------------------
def _matpow(a, n, compute_dtype):
    """Repeated-squaring matrix power; running product never leaves VMEM/vregs."""
    if n == 0:
        row = jax.lax.broadcasted_iota(jnp.int32, a.shape, 0)
        col = jax.lax.broadcasted_iota(jnp.int32, a.shape, 1)
        return jnp.where(row == col, 1.0, 0.0).astype(_F32)
    result = None
    base = a.astype(compute_dtype)
    while n > 0:
        if n & 1:
            if result is None:
                result = base.astype(_F32)
            else:
                result = jnp.dot(result.astype(compute_dtype), base,
                                 preferred_element_type=_F32)
        n >>= 1
        if n:
            base = jnp.dot(base, base,
                           preferred_element_type=_F32).astype(compute_dtype)
    return result


def _zero_diag(a):
    row = jax.lax.broadcasted_iota(jnp.int32, a.shape, 0)
    col = jax.lax.broadcasted_iota(jnp.int32, a.shape, 1)
    return jnp.where(row == col, jnp.float32(0.0), a)


def _mask_normalize(a, thr):
    """graph_top_K (per-row k-th-value threshold) + D^{-1/2} A D^{-1/2}.

    Degree row-reduce -> XLU, rsqrt -> EUP, scaling -> VPU; the transposes are
    local XLU vxpose work on the resident (N,N) tile.  Zero-degree rows map to 0.
    """
    masked = jnp.where(a >= thr, a, 0.0)
    deg = jnp.sum(masked, axis=1, keepdims=True)                       # (N, 1)
    d = jnp.where(deg > 0.0, jax.lax.rsqrt(jnp.maximum(deg, 1e-12)), 0.0)
    # result[i, j] = d[i] * masked[i, j] * d[j]
    return (d * (d * masked).T).T


# ----------------------------------------------------------------------------
# Pallas kernels
# ----------------------------------------------------------------------------
def _gram_kernel(x_ref, o_ref):
    # o = x @ x.T  (contract last dims; single input DMA)
    x = x_ref[...]
    o_ref[...] = jax.lax.dot_general(x, x, _CONTRACT_LAST,
                                     preferred_element_type=_F32)


def _fused_mid_kernel(xxt_ref, thr_ref, raw_ref, x_ref, xr_ref, xex_ref, m_ref,
                      *, n_layers, compute_dtype):
    # sim_adj = normalize_adj(graph_top_K(xxt, k_sim))  -- VPU/XLU/EUP filler
    sim_adj = _mask_normalize(xxt_ref[...], thr_ref[...])

    # matrix powers + fused add (intermediates never leave VMEM)
    adj_l = _matpow(raw_ref[...], n_layers, compute_dtype)
    sim_l = _matpow(sim_adj, n_layers, compute_dtype)
    s = adj_l + sim_l

    # B = (adj_l + sim_l) @ (x @ rot.T)   (xr == x when theta == 0)
    b = jnp.dot(s.astype(compute_dtype), xr_ref[...].astype(compute_dtype),
                preferred_element_type=_F32)                           # (N, D)

    # xb = x @ B.T + B @ x.T = C + C.T  (symmetry saves one N*D*N matmul)
    c = jax.lax.dot_general(x_ref[...].astype(compute_dtype),
                            b.astype(compute_dtype), _CONTRACT_LAST,
                            preferred_element_type=_F32)               # (N, N)
    xb = c + c.T

    # M = 0.5*(x_ex @ xb + xb @ x_ex) = 0.5*(S + S.T)  (both operands symmetric)
    s2 = jnp.dot(xex_ref[...].astype(compute_dtype), xb.astype(compute_dtype),
                 preferred_element_type=_F32)
    m_ref[...] = 0.5 * (s2 + s2.T)


def _eig_recompose_kernel(p_ref, w_ref, o_ref):
    # A = P @ diag(w) @ P.T, then zero the diagonal and clamp(min=0)  (all f32)
    p = p_ref[...]
    a = jax.lax.dot_general(p * w_ref[...], p, _CONTRACT_LAST,
                            preferred_element_type=_F32)
    o_ref[...] = jnp.maximum(_zero_diag(a), 0.0)


def _mask_norm_blend_kernel(a_ref, thr_ref, raw_ref, o_ref, *, alpha):
    normed = _mask_normalize(a_ref[...], thr_ref[...])
    o_ref[...] = alpha * normed + (1.0 - alpha) * raw_ref[...]


# ----------------------------------------------------------------------------
# pallas_call wrappers (single whole-array VMEM block per operand)
# ----------------------------------------------------------------------------
def _full_block_call(kernel, inputs, out_shape, cost_estimate=None):
    in_specs = [pl.BlockSpec(a.shape, lambda i: (0, 0)) for a in inputs]
    io_bytes = sum(math.prod(a.shape) * a.dtype.itemsize for a in inputs)
    io_bytes += math.prod(out_shape.shape) * jnp.dtype(out_shape.dtype).itemsize
    need = 2 * io_bytes + (8 << 20)               # double-buffered I/O + slack
    vmem_limit = int(min(need, 100 << 20)) if need > _SCOPED_VMEM_DEFAULT else None
    return pl.pallas_call(
        kernel,
        out_shape=out_shape,
        grid=(1,),
        in_specs=in_specs,
        out_specs=pl.BlockSpec(out_shape.shape, lambda i: (0, 0)),
        compiler_params=pltpu.CompilerParams(
            dimension_semantics=("arbitrary",),
            vmem_limit_bytes=vmem_limit),
        cost_estimate=cost_estimate,
    )(*inputs)


def pallas_gram(x):
    n, d = x.shape
    ce = pl.CostEstimate(flops=2 * n * n * d, transcendentals=0,
                         bytes_accessed=(n * d + n * n) * 4)
    return _full_block_call(_gram_kernel, (x,),
                            jax.ShapeDtypeStruct((n, n), _F32),
                            cost_estimate=ce)


def pallas_fused_mid(xxt, thr, raw_adj, x, x_r, x_ex, *, n_layers):
    n = xxt.shape[0]
    d = x.shape[1]
    compute_dtype = jnp.bfloat16 if n >= _MXU_BF16_MIN_N else _F32
    kern = functools.partial(_fused_mid_kernel, n_layers=int(n_layers),
                             compute_dtype=compute_dtype)
    if n_layers > 0:
        pow_mms = (n_layers.bit_length() - 1) + (bin(n_layers).count("1") - 1)
    else:
        pow_mms = 0
    flops = 2 * n * n * n * (2 * pow_mms + 1) + 4 * n * n * d + 8 * n * n
    ce = pl.CostEstimate(flops=int(flops), transcendentals=int(n),
                         bytes_accessed=int((4 * n * n + 2 * n * d + n) * 4))
    return _full_block_call(kern, (xxt, thr, raw_adj, x, x_r, x_ex),
                            jax.ShapeDtypeStruct((n, n), _F32),
                            cost_estimate=ce)


def pallas_eig_recompose(p_mat, w):
    n = p_mat.shape[0]
    ce = pl.CostEstimate(flops=2 * n * n * n + 2 * n * n, transcendentals=0,
                         bytes_accessed=(2 * n * n + n) * 4)
    return _full_block_call(_eig_recompose_kernel,
                            (p_mat.astype(_F32), w.astype(_F32).reshape(1, n)),
                            jax.ShapeDtypeStruct((n, n), _F32),
                            cost_estimate=ce)


def pallas_mask_norm_blend(a, thr, raw_adj, *, alpha):
    n = a.shape[0]
    kern = functools.partial(_mask_norm_blend_kernel, alpha=float(alpha))
    ce = pl.CostEstimate(flops=6 * n * n, transcendentals=int(n),
                         bytes_accessed=(3 * n * n + n) * 4)
    return _full_block_call(kern, (a, thr, raw_adj),
                            jax.ShapeDtypeStruct((n, n), _F32),
                            cost_estimate=ce)


# ----------------------------------------------------------------------------
# plain-JAX glue around the Pallas kernels (all inside one jit)
# ----------------------------------------------------------------------------
def _givens_rotate_cols(x, ax_i, ax_j, theta):
    # x @ rot.T only mixes columns ax_i / ax_j -> 2-column VPU rotation,
    # no D x D matrix and no extra kernel launch.
    c = jnp.cos(jnp.float32(theta))
    s = jnp.sin(jnp.float32(theta))
    col_i = c * x[:, ax_i] - s * x[:, ax_j]
    col_j = s * x[:, ax_i] + c * x[:, ax_j]
    return x.at[:, ax_i].set(col_i).at[:, ax_j].set(col_j)


def _topk_threshold(a, k):
    # TODO(synk): index-based top-k selection has no clean Pallas lowering; the
    # per-row k-th value comes from lax.top_k here, masking + degree/rsqrt
    # normalization run inside the kernels.  (Ties at the threshold keep > k
    # entries, matching the prior version.)
    return jax.lax.top_k(a, k)[0][:, -1:]                         # (N, 1)


@functools.partial(
    jax.jit,
    static_argnames=("ax_i", "ax_j", "n_layers", "k_sim", "k_aug",
                     "omega", "alpha", "theta"))
def iso_transform_forward(x, raw_adj, *, ax_i, ax_j, n_layers=2, k_sim=10,
                          k_aug=10, omega=0.01, alpha=0.1, theta=0.0):
    x = x.astype(_F32)
    raw_adj = raw_adj.astype(_F32)
    n, _ = x.shape

    # theta is a frozen (requires_grad=False) parameter == 0.0 in the module.
    # NOTE: Python-level branch; valid only while theta stays a static constant.
    if float(theta) != 0.0:
        x_r = _givens_rotate_cols(x, ax_i, ax_j, theta)           # x @ rot.T
    else:
        x_r = x

    xxt = pallas_gram(x)                                          # (N, N), f32

    # TODO(synk): matrix inverse has no Pallas primitive; plain JAX inside jit.
    x_ex = jnp.linalg.inv(xxt + omega * jnp.eye(n, dtype=_F32))

    thr_s = _topk_threshold(xxt, k_sim)
    m = pallas_fused_mid(xxt, thr_s, raw_adj, x, x_r, x_ex, n_layers=n_layers)

    # TODO(synk): eigendecomposition has no Pallas primitive; M is symmetric by
    # construction, so torch.linalg.eig(M).real is equivalent to eigh here.
    v, p_mat = jnp.linalg.eigh(m)
    w = jnp.maximum(v, 1e-6) ** (1.0 / n_layers)

    a_clamped = pallas_eig_recompose(p_mat, w)        # P diag(w) P.T, zero-diag, clamp

    thr_a = _topk_threshold(a_clamped, k_aug)
    return pallas_mask_norm_blend(a_clamped, thr_a, raw_adj, alpha=alpha)


# ----------------------------------------------------------------------------
# Demo
# ----------------------------------------------------------------------------
if __name__ == "__main__":
    key = jax.random.PRNGKey(0)
    N, D = 16, 32                       # N nodes, D features (k_sim=k_aug=10 < N)
    kx, ka = jax.random.split(key)

    x = jax.random.normal(kx, (N, D), dtype=jnp.float32)

    # Deterministic dense stand-in for the sparse `raw_adj` input:
    # symmetric 0/1 graph + self loops, symmetrically normalized.
    logits = jax.random.uniform(ka, (N, N), dtype=jnp.float32)
    adj = ((logits + logits.T) > 1.0).astype(jnp.float32)
    adj = jnp.clip(adj + jnp.eye(N, dtype=jnp.float32), 0.0, 1.0)
    deg = adj.sum(axis=1)
    dinv = jnp.where(deg > 0, deg ** -0.5, 0.0)
    raw_adj = dinv[:, None] * adj * dinv[None, :]

    out = iso_transform_forward(
        x, raw_adj,
        ax_i=0, ax_j=1, n_layers=2, k_sim=10, k_aug=10,
        omega=0.01, alpha=0.1, theta=0.0,
    )
    out = jax.block_until_ready(out)

    assert out.shape == (N, N), out.shape
    assert out.dtype == jnp.float32
    assert bool(jnp.all(jnp.isfinite(out)))
    print("KERNEL_OK")
</pallas_src>

<mosaic_0001>
module attributes {stable_mosaic.version = 11 : i64} {
  func.func @_gram_kernel(%arg0: i32, %arg1: memref<16x32xf32, #tpu.memory_space<vmem>>, %arg2: memref<16x16xf32, #tpu.memory_space<vmem>>) attributes {dimension_semantics = [#tpu.dimension_semantics<arbitrary>], iteration_bounds = array<i64: 1>, scalar_prefetch = 0 : i64, scratch_operands = 0 : i64, tpu.core_type = #tpu.core_type<tc>, window_params = [{pipeline_mode = #tpu.pipeline_mode<synchronous>, transform_indices = @transform_0, window_bounds = array<i64: 16, 32>}, {pipeline_mode = #tpu.pipeline_mode<synchronous>, transform_indices = @transform_1, window_bounds = array<i64: 16, 16>}]} {
    %c0 = arith.constant 0 : index
    %c0_0 = arith.constant 0 : index
    %0 = vector.load %arg1[%c0, %c0_0] : memref<16x32xf32, #tpu.memory_space<vmem>>, vector<16x32xf32>
    %cst = arith.constant dense<0.000000e+00> : vector<16x16xf32>
    %1 = tpu.matmul %0, %0, %cst {dimension_numbers = #tpu.dot_dimension_numbers<[1], [1], [0], [0], [0, 0, 1, 0], [], []>} : vector<16x32xf32>, vector<16x32xf32>, vector<16x16xf32> -> vector<16x16xf32>
    %c0_1 = arith.constant 0 : index
    %c0_2 = arith.constant 0 : index
    %2 = vector.load %arg2[%c0_1, %c0_2] : memref<16x16xf32, #tpu.memory_space<vmem>>, vector<16x16xf32>
    tpu.vector_store %arg2[%c0_1, %c0_2], %1 {strides = array<i32>} : memref<16x16xf32, #tpu.memory_space<vmem>>, vector<16x16xf32>,
    return
  }
  func.func @transform_0(%arg0: i32) -> (i32, i32) {
    %c0_i32 = arith.constant 0 : i32
    %c0_i32_0 = arith.constant 0 : i32
    %c0_i32_1 = arith.constant 0 : i32
    return %c0_i32, %c0_i32_0 : i32, i32
  }
  func.func @transform_1(%arg0: i32) -> (i32, i32) {
    %c0_i32 = arith.constant 0 : i32
    %c0_i32_0 = arith.constant 0 : i32
    %c0_i32_1 = arith.constant 0 : i32
    return %c0_i32, %c0_i32_0 : i32, i32
  }
}

module attributes {stable_mosaic.version = 11 : i64} {
  func.func @_fused_mid_kernel(%arg0: i32, %arg1: memref<16x16xf32, #tpu.memory_space<vmem>>, %arg2: memref<16x1xf32, #tpu.memory_space<vmem>>, %arg3: memref<16x16xf32, #tpu.memory_space<vmem>>, %arg4: memref<16x32xf32, #tpu.memory_space<vmem>>, %arg5: memref<16x32xf32, #tpu.memory_space<vmem>>, %arg6: memref<16x16xf32, #tpu.memory_space<vmem>>, %arg7: memref<16x16xf32, #tpu.memory_space<vmem>>) attributes {dimension_semantics = [#tpu.dimension_semantics<arbitrary>], iteration_bounds = array<i64: 1>, scalar_prefetch = 0 : i64, scratch_operands = 0 : i64, tpu.core_type = #tpu.core_type<tc>, window_params = [{pipeline_mode = #tpu.pipeline_mode<synchronous>, transform_indices = @transform_0, window_bounds = array<i64: 16, 16>}, {pipeline_mode = #tpu.pipeline_mode<synchronous>, transform_indices = @transform_1, window_bounds = array<i64: 16, 1>}, {pipeline_mode = #tpu.pipeline_mode<synchronous>, transform_indices = @transform_2, window_bounds = array<i64: 16, 16>}, {pipeline_mode = #tpu.pipeline_mode<synchronous>, transform_indices = @transform_3, window_bounds = array<i64: 16, 32>}, {pipeline_mode = #tpu.pipeline_mode<synchronous>, transform_indices = @transform_4, window_bounds = array<i64: 16, 32>}, {pipeline_mode = #tpu.pipeline_mode<synchronous>, transform_indices = @transform_5, window_bounds = array<i64: 16, 16>}, {pipeline_mode = #tpu.pipeline_mode<synchronous>, transform_indices = @transform_6, window_bounds = array<i64: 16, 16>}]} {
    %c0 = arith.constant 0 : index
    %c0_0 = arith.constant 0 : index
    %0 = vector.load %arg1[%c0, %c0_0] : memref<16x16xf32, #tpu.memory_space<vmem>>, vector<16x16xf32>
    %c0_1 = arith.constant 0 : index
    %c0_2 = arith.constant 0 : index
    %1 = vector.load %arg2[%c0_1, %c0_2] : memref<16x1xf32, #tpu.memory_space<vmem>>, vector<16x1xf32>
    %2 = vector.broadcast %1 : vector<16x1xf32> to vector<16x16xf32>
    %3 = arith.cmpf oge, %0, %2 : vector<16x16xf32>
    %cst = arith.constant 0.000000e+00 : f32
    %4 = vector.broadcast %cst : f32 to vector<16x16xf32>
    %5 = arith.select %3, %0, %4 : vector<16x16xi1>, vector<16x16xf32>
    %cst_3 = arith.constant dense<0.000000e+00> : vector<16xf32>
    %6 = vector.multi_reduction <add>, %5, %cst_3 [1] : vector<16x16xf32> to vector<16xf32>
    %7 = vector.shape_cast %6 : vector<16xf32> to vector<16x1xf32>
    %cst_4 = arith.constant 0.000000e+00 : f32
    %8 = vector.broadcast %cst_4 : f32 to vector<16x1xf32>
    %9 = arith.cmpf ogt, %7, %8 : vector<16x1xf32>
    %cst_5 = arith.constant 9.99999996E-13 : f32
    %10 = vector.broadcast %cst_5 : f32 to vector<16x1xf32>
    %11 = arith.maximumf %7, %10 : vector<16x1xf32>
    %12 = math.rsqrt %11 : vector<16x1xf32>
    %cst_6 = arith.constant 0.000000e+00 : f32
    %13 = vector.broadcast %cst_6 : f32 to vector<16x1xf32>
    %14 = arith.select %9, %12, %13 : vector<16x1xi1>, vector<16x1xf32>
    %15 = vector.broadcast %14 : vector<16x1xf32> to vector<16x16xf32>
    %16 = arith.mulf %15, %5 : vector<16x16xf32>
    %17 = tpu.transpose %16, [1, 0] : vector<16x16xf32> -> vector<16x16xf32>
    %18 = vector.broadcast %14 : vector<16x1xf32> to vector<16x16xf32>
    %19 = arith.mulf %18, %17 : vector<16x16xf32>
    %20 = tpu.transpose %19, [1, 0] : vector<16x16xf32> -> vector<16x16xf32>
    %c0_7 = arith.constant 0 : index
    %c0_8 = arith.constant 0 : index
    %21 = vector.load %arg3[%c0_7, %c0_8] : memref<16x16xf32, #tpu.memory_space<vmem>>, vector<16x16xf32>
    %cst_9 = arith.constant dense<0.000000e+00> : vector<16x16xf32>
    %22 = tpu.matmul %21, %21, %cst_9 {dimension_numbers = #tpu.dot_dimension_numbers<[1], [0], [0], [1], [0, 0, 1, 1], [], []>} : vector<16x16xf32>, vector<16x16xf32>, vector<16x16xf32> -> vector<16x16xf32>
    %cst_10 = arith.constant dense<0.000000e+00> : vector<16x16xf32>
    %23 = tpu.matmul %20, %20, %cst_10 {dimension_numbers = #tpu.dot_dimension_numbers<[1], [0], [0], [1], [0, 0, 1, 1], [], []>} : vector<16x16xf32>, vector<16x16xf32>, vector<16x16xf32> -> vector<16x16xf32>
    %24 = arith.addf %22, %23 : vector<16x16xf32>
    %c0_11 = arith.constant 0 : index
    %c0_12 = arith.constant 0 : index
    %25 = vector.load %arg5[%c0_11, %c0_12] : memref<16x32xf32, #tpu.memory_space<vmem>>, vector<16x32xf32>
    %cst_13 = arith.constant dense<0.000000e+00> : vector<16x32xf32>
    %26 = tpu.matmul %24, %25, %cst_13 {dimension_numbers = #tpu.dot_dimension_numbers<[1], [0], [0], [1], [0, 0, 1, 1], [], []>} : vector<16x16xf32>, vector<16x32xf32>, vector<16x32xf32> -> vector<16x32xf32>
    %c0_14 = arith.constant 0 : index
    %c0_15 = arith.constant 0 : index
    %27 = vector.load %arg4[%c0_14, %c0_15] : memref<16x32xf32, #tpu.memory_space<vmem>>, vector<16x32xf32>
    %cst_16 = arith.constant dense<0.000000e+00> : vector<16x16xf32>
    %28 = tpu.matmul %27, %26, %cst_16 {dimension_numbers = #tpu.dot_dimension_numbers<[1], [1], [0], [0], [0, 0, 1, 0], [], []>} : vector<16x32xf32>, vector<16x32xf32>, vector<16x16xf32> -> vector<16x16xf32>
    %29 = tpu.transpose %28, [1, 0] : vector<16x16xf32> -> vector<16x16xf32>
    %30 = arith.addf %28, %29 : vector<16x16xf32>
    %c0_17 = arith.constant 0 : index
    %c0_18 = arith.constant 0 : index
    %31 = vector.load %arg6[%c0_17, %c0_18] : memref<16x16xf32, #tpu.memory_space<vmem>>, vector<16x16xf32>
    %cst_19 = arith.constant dense<0.000000e+00> : vector<16x16xf32>
    %32 = tpu.matmul %31, %30, %cst_19 {dimension_numbers = #tpu.dot_dimension_numbers<[1], [0], [0], [1], [0, 0, 1, 1], [], []>} : vector<16x16xf32>, vector<16x16xf32>, vector<16x16xf32> -> vector<16x16xf32>
    %33 = tpu.transpose %32, [1, 0] : vector<16x16xf32> -> vector<16x16xf32>
    %34 = arith.addf %32, %33 : vector<16x16xf32>
    %cst_20 = arith.constant 5.000000e-01 : f32
    %35 = vector.broadcast %cst_20 : f32 to vector<16x16xf32>
    %36 = arith.mulf %35, %34 : vector<16x16xf32>
    %c0_21 = arith.constant 0 : index
    %c0_22 = arith.constant 0 : index
    %37 = vector.load %arg7[%c0_21, %c0_22] : memref<16x16xf32, #tpu.memory_space<vmem>>, vector<16x16xf32>
    tpu.vector_store %arg7[%c0_21, %c0_22], %36 {strides = array<i32>} : memref<16x16xf32, #tpu.memory_space<vmem>>, vector<16x16xf32>,
    return
  }
  func.func @transform_0(%arg0: i32) -> (i32, i32) {
    %c0_i32 = arith.constant 0 : i32
    %c0_i32_0 = arith.constant 0 : i32
    %c0_i32_1 = arith.constant 0 : i32
    return %c0_i32, %c0_i32_0 : i32, i32
  }
  func.func @transform_1(%arg0: i32) -> (i32, i32) {
    %c0_i32 = arith.constant 0 : i32
    %c0_i32_0 = arith.constant 0 : i32
    %c0_i32_1 = arith.constant 0 : i32
    return %c0_i32, %c0_i32_0 : i32, i32
  }
  func.func @transform_2(%arg0: i32) -> (i32, i32) {
    %c0_i32 = arith.constant 0 : i32
    %c0_i32_0 = arith.constant 0 : i32
    %c0_i32_1 = arith.constant 0 : i32
    return %c0_i32, %c0_i32_0 : i32, i32
  }
  func.func @transform_3(%arg0: i32) -> (i32, i32) {
    %c0_i32 = arith.constant 0 : i32
    %c0_i32_0 = arith.constant 0 : i32
    %c0_i32_1 = arith.constant 0 : i32
    return %c0_i32, %c0_i32_0 : i32, i32
  }
  func.func @transform_4(%arg0: i32) -> (i32, i32) {
    %c0_i32 = arith.constant 0 : i32
    %c0_i32_0 = arith.constant 0 : i32
    %c0_i32_1 = arith.constant 0 : i32
    return %c0_i32, %c0_i32_0 : i32, i32
  }
  func.func @transform_5(%arg0: i32) -> (i32, i32) {
    %c0_i32 = arith.constant 0 : i32
    %c0_i32_0 = arith.constant 0 : i32
    %c0_i32_1 = arith.constant 0 : i32
    return %c0_i32, %c0_i32_0 : i32, i32
  }
  func.func @transform_6(%arg0: i32) -> (i32, i32) {
    %c0_i32 = arith.constant 0 : i32
    %c0_i32_0 = arith.constant 0 : i32
    %c0_i32_1 = arith.constant 0 : i32
    return %c0_i32, %c0_i32_0 : i32, i32
  }
}

module attributes {stable_mosaic.version = 11 : i64} {
  func.func @_eig_recompose_kernel(%arg0: i32, %arg1: memref<16x16xf32, #tpu.memory_space<vmem>>, %arg2: memref<1x16xf32, #tpu.memory_space<vmem>>, %arg3: memref<16x16xf32, #tpu.memory_space<vmem>>) attributes {dimension_semantics = [#tpu.dimension_semantics<arbitrary>], iteration_bounds = array<i64: 1>, scalar_prefetch = 0 : i64, scratch_operands = 0 : i64, tpu.core_type = #tpu.core_type<tc>, window_params = [{pipeline_mode = #tpu.pipeline_mode<synchronous>, transform_indices = @transform_0, window_bounds = array<i64: 16, 16>}, {pipeline_mode = #tpu.pipeline_mode<synchronous>, transform_indices = @transform_1, window_bounds = array<i64: 1, 16>}, {pipeline_mode = #tpu.pipeline_mode<synchronous>, transform_indices = @transform_2, window_bounds = array<i64: 16, 16>}]} {
    %c0 = arith.constant 0 : index
    %c0_0 = arith.constant 0 : index
    %0 = vector.load %arg1[%c0, %c0_0] : memref<16x16xf32, #tpu.memory_space<vmem>>, vector<16x16xf32>
    %c0_1 = arith.constant 0 : index
    %c0_2 = arith.constant 0 : index
    %1 = vector.load %arg2[%c0_1, %c0_2] : memref<1x16xf32, #tpu.memory_space<vmem>>, vector<1x16xf32>
    %2 = vector.broadcast %1 : vector<1x16xf32> to vector<16x16xf32>
    %3 = arith.mulf %0, %2 : vector<16x16xf32>
    %cst = arith.constant dense<0.000000e+00> : vector<16x16xf32>
    %4 = tpu.matmul %3, %0, %cst {dimension_numbers = #tpu.dot_dimension_numbers<[1], [1], [0], [0], [0, 0, 1, 0], [], []>} : vector<16x16xf32>, vector<16x16xf32>, vector<16x16xf32> -> vector<16x16xf32>
    %5 = tpu.iota {dimensions = array<i32: 0>} : vector<16x16xi32>
    %6 = tpu.iota {dimensions = array<i32: 1>} : vector<16x16xi32>
    %7 = arith.cmpi eq, %5, %6 : vector<16x16xi32>
    %cst_3 = arith.constant 0.000000e+00 : f32
    %8 = vector.broadcast %cst_3 : f32 to vector<16x16xf32>
    %9 = arith.select %7, %8, %4 : vector<16x16xi1>, vector<16x16xf32>
    %cst_4 = arith.constant 0.000000e+00 : f32
    %10 = vector.broadcast %cst_4 : f32 to vector<16x16xf32>
    %11 = arith.maximumf %9, %10 : vector<16x16xf32>
    %c0_5 = arith.constant 0 : index
    %c0_6 = arith.constant 0 : index
    %12 = vector.load %arg3[%c0_5, %c0_6] : memref<16x16xf32, #tpu.memory_space<vmem>>, vector<16x16xf32>
    tpu.vector_store %arg3[%c0_5, %c0_6], %11 {strides = array<i32>} : memref<16x16xf32, #tpu.memory_space<vmem>>, vector<16x16xf32>,
    return
  }
  func.func @transform_0(%arg0: i32) -> (i32, i32) {
    %c0_i32 = arith.constant 0 : i32
    %c0_i32_0 = arith.constant 0 : i32
    %c0_i32_1 = arith.constant 0 : i32
    return %c0_i32, %c0_i32_0 : i32, i32
  }
  func.func @transform_1(%arg0: i32) -> (i32, i32) {
    %c0_i32 = arith.constant 0 : i32
    %c0_i32_0 = arith.constant 0 : i32
    %c0_i32_1 = arith.constant 0 : i32
    return %c0_i32, %c0_i32_0 : i32, i32
  }
  func.func @transform_2(%arg0: i32) -> (i32, i32) {
    %c0_i32 = arith.constant 0 : i32
    %c0_i32_0 = arith.constant 0 : i32
    %c0_i32_1 = arith.constant 0 : i32
    return %c0_i32, %c0_i32_0 : i32, i32
  }
}

module attributes {stable_mosaic.version = 11 : i64} {
  func.func @_mask_norm_blend_kernel(%arg0: i32, %arg1: memref<16x16xf32, #tpu.memory_space<vmem>>, %arg2: memref<16x1xf32, #tpu.memory_space<vmem>>, %arg3: memref<16x16xf32, #tpu.memory_space<vmem>>, %arg4: memref<16x16xf32, #tpu.memory_space<vmem>>) attributes {dimension_semantics = [#tpu.dimension_semantics<arbitrary>], iteration_bounds = array<i64: 1>, scalar_prefetch = 0 : i64, scratch_operands = 0 : i64, tpu.core_type = #tpu.core_type<tc>, window_params = [{pipeline_mode = #tpu.pipeline_mode<synchronous>, transform_indices = @transform_0, window_bounds = array<i64: 16, 16>}, {pipeline_mode = #tpu.pipeline_mode<synchronous>, transform_indices = @transform_1, window_bounds = array<i64: 16, 1>}, {pipeline_mode = #tpu.pipeline_mode<synchronous>, transform_indices = @transform_2, window_bounds = array<i64: 16, 16>}, {pipeline_mode = #tpu.pipeline_mode<synchronous>, transform_indices = @transform_3, window_bounds = array<i64: 16, 16>}]} {
    %c0 = arith.constant 0 : index
    %c0_0 = arith.constant 0 : index
    %0 = vector.load %arg1[%c0, %c0_0] : memref<16x16xf32, #tpu.memory_space<vmem>>, vector<16x16xf32>
    %c0_1 = arith.constant 0 : index
    %c0_2 = arith.constant 0 : index
    %1 = vector.load %arg2[%c0_1, %c0_2] : memref<16x1xf32, #tpu.memory_space<vmem>>, vector<16x1xf32>
    %2 = vector.broadcast %1 : vector<16x1xf32> to vector<16x16xf32>
    %3 = arith.cmpf oge, %0, %2 : vector<16x16xf32>
    %cst = arith.constant 0.000000e+00 : f32
    %4 = vector.broadcast %cst : f32 to vector<16x16xf32>
    %5 = arith.select %3, %0, %4 : vector<16x16xi1>, vector<16x16xf32>
    %cst_3 = arith.constant dense<0.000000e+00> : vector<16xf32>
    %6 = vector.multi_reduction <add>, %5, %cst_3 [1] : vector<16x16xf32> to vector<16xf32>
    %7 = vector.shape_cast %6 : vector<16xf32> to vector<16x1xf32>
    %cst_4 = arith.constant 0.000000e+00 : f32
    %8 = vector.broadcast %cst_4 : f32 to vector<16x1xf32>
    %9 = arith.cmpf ogt, %7, %8 : vector<16x1xf32>
    %cst_5 = arith.constant 9.99999996E-13 : f32
    %10 = vector.broadcast %cst_5 : f32 to vector<16x1xf32>
    %11 = arith.maximumf %7, %10 : vector<16x1xf32>
    %12 = math.rsqrt %11 : vector<16x1xf32>
    %cst_6 = arith.constant 0.000000e+00 : f32
    %13 = vector.broadcast %cst_6 : f32 to vector<16x1xf32>
    %14 = arith.select %9, %12, %13 : vector<16x1xi1>, vector<16x1xf32>
    %15 = vector.broadcast %14 : vector<16x1xf32> to vector<16x16xf32>
    %16 = arith.mulf %15, %5 : vector<16x16xf32>
    %17 = tpu.transpose %16, [1, 0] : vector<16x16xf32> -> vector<16x16xf32>
    %18 = vector.broadcast %14 : vector<16x1xf32> to vector<16x16xf32>
    %19 = arith.mulf %18, %17 : vector<16x16xf32>
    %20 = tpu.transpose %19, [1, 0] : vector<16x16xf32> -> vector<16x16xf32>
    %cst_7 = arith.constant 1.000000e-01 : f32
    %21 = vector.broadcast %cst_7 : f32 to vector<16x16xf32>
    %22 = arith.mulf %21, %20 : vector<16x16xf32>
    %c0_8 = arith.constant 0 : index
    %c0_9 = arith.constant 0 : index
    %23 = vector.load %arg3[%c0_8, %c0_9] : memref<16x16xf32, #tpu.memory_space<vmem>>, vector<16x16xf32>
    %cst_10 = arith.constant 0.899999976 : f32
    %24 = vector.broadcast %cst_10 : f32 to vector<16x16xf32>
    %25 = arith.mulf %24, %23 : vector<16x16xf32>
    %26 = arith.addf %22, %25 : vector<16x16xf32>
    %c0_11 = arith.constant 0 : index
    %c0_12 = arith.constant 0 : index
    %27 = vector.load %arg4[%c0_11, %c0_12] : memref<16x16xf32, #tpu.memory_space<vmem>>, vector<16x16xf32>
    tpu.vector_store %arg4[%c0_11, %c0_12], %26 {strides = array<i32>} : memref<16x16xf32, #tpu.memory_space<vmem>>, vector<16x16xf32>,
    return
  }
  func.func @transform_0(%arg0: i32) -> (i32, i32) {
    %c0_i32 = arith.constant 0 : i32
    %c0_i32_0 = arith.constant 0 : i32
    %c0_i32_1 = arith.constant 0 : i32
    return %c0_i32, %c0_i32_0 : i32, i32
  }
  func.func @transform_1(%arg0: i32) -> (i32, i32) {
    %c0_i32 = arith.constant 0 : i32
    %c0_i32_0 = arith.constant 0 : i32
    %c0_i32_1 = arith.constant 0 : i32
    return %c0_i32, %c0_i32_0 : i32, i32
  }
  func.func @transform_2(%arg0: i32) -> (i32, i32) {
    %c0_i32 = arith.constant 0 : i32
    %c0_i32_0 = arith.constant 0 : i32
    %c0_i32_1 = arith.constant 0 : i32
    return %c0_i32, %c0_i32_0 : i32, i32
  }
  func.func @transform_3(%arg0: i32) -> (i32, i32) {
    %c0_i32 = arith.constant 0 : i32
    %c0_i32_0 = arith.constant 0 : i32
    %c0_i32_1 = arith.constant 0 : i32
    return %c0_i32, %c0_i32_0 : i32, i32
  }
}

</mosaic_0001>

<llo_original>
// kernel: custom-call.13
$region0: #{custom-call.13}
  %s0 = inlined_call_operand.vmem [shape: f32[16,16], index: 0, kind: input, shape index: {}]
  %s1 = inlined_call_operand.vmem [shape: f32[16,16], index: 1, kind: output, shape index: {0}]
  %s2 = inlined_call_operand.hbm [shape: s32[16], index: 2, kind: output, shape index: {1}]
  %s3 = inlined_call_operand.vmem [shape: s32[16], index: 3, kind: output, shape index: {2}]
  %4 = xla_tuple %s1, %s2, %s3
  $region1: #{custom-call.13} parent=0
    #allocation0 [shape = 'u8[8192]{0}', space=vmem, size = 0x2000, scoped, tag = 'operand span for operand 0']
    #allocation1 [shape = 'u8[8192]{0}', space=vmem, size = 0x2000, scoped, tag = 'operand span for operand 1']
    #allocation2 [shape = 'u8[4096]{0}', space=vmem, size = 0x1000, scoped, tag = 'operand span for operand 2']
    #allocation3 [shape = 'u8[512]{0}', space=vmem, size = 0x400, scoped, tag = 'packed  for operand 2']
    #allocation4 [shape = 's32[1]{0}', space=sflag, size = 0x4, scoped, tag = 'scoped memory for custom-call.13']
    #allocation5 [shape = 'u8[4096]{0}', space=vmem, size = 0x1000, scoped, tag = 'operand span for operand 3']
    #allocation6 [shape = 'u8[512]{0}', space=vmem, size = 0x400, scoped, tag = 'packed  for operand 3']
    #allocation7 [shape = 's32[16,128]{1,0}', space=vmem, size = 0x2000, scoped, tag = 'scratch for permutations']
    %5 = vsyncpa [#allocation4], 0
    // Predicated region
    $region2: #{custom-call.13} parent=1 // pred_check
      _
    $region3: #{custom-call.13} parent=1 // pred_check_branch
      %7 = sbr.rel (0) target = $region5
    $region4: #{custom-call.13} parent=1 // pred_region
      %p9 = scmp.gt.s32.totalorder 2, 0
      // Predicated region
      $region6: #{custom-call.13} parent=4 // pred_check
        %p10 = pneg %p9
      $region7: #{custom-call.13} parent=4 // pred_check_branch
        %12 = sbr.rel (%p10) target = $region9
      $region8: #{custom-call.13} parent=4 // pred_region
        %s13 = ssub.s32 2, 1
        %s14 = smul.u32 %s13, 8
        %s15 = scalar_lea.vmem %s0, %s14
        %v16 = vld [vmem:[%s0] sm:$0xff]
        // While loop
        $region10: #{custom-call.13} parent=8 // loop_pre_header
          _
        $region11: #{custom-call.13} parent=8 // loop_header
          %s17 = sphi %s0, %s39
          %s18 = sphi [#allocation0], %s40
          %v19 = vphi %v16, %v41
          %s20 = ssub.s32 %s15, 64
          %p21 = scmp.gt.s32.totalorder %s17, %s20
        $region12: #{custom-call.13} parent=8 // loop_header_branch
          %23 = sbr.rel (%p21) target = $region16
        $region13: #{custom-call.13} parent=8 // loop_body
          %24 = vst [vmem:[%s18] sm:$0xff] %v19
          %v25 = vld [vmem:[%s17 + $0x8] sm:$0xff]
          %26 = vst [vmem:[%s18 + $0x8] sm:$0xff] %v25
          %v27 = vld [vmem:[%s17 + $0x10] sm:$0xff]
          %28 = vst [vmem:[%s18 + $0x10] sm:$0xff] %v27
          %v29 = vld [vmem:[%s17 + $0x18] sm:$0xff]
          %30 = vst [vmem:[%s18 + $0x18] sm:$0xff] %v29
          %v31 = vld [vmem:[%s17 + $0x20] sm:$0xff]
          %32 = vst [vmem:[%s18 + $0x20] sm:$0xff] %v31
          %v33 = vld [vmem:[%s17 + $0x28] sm:$0xff]
          %34 = vst [vmem:[%s18 + $0x28] sm:$0xff] %v33
          %v35 = vld [vmem:[%s17 + $0x30] sm:$0xff]
          %36 = vst [vmem:[%s18 + $0x30] sm:$0xff] %v35
          %v37 = vld [vmem:[%s17 + $0x38] sm:$0xff]
          %38 = vst [vmem:[%s18 + $0x38] sm:$0xff] %v37
        $region14: #{custom-call.13} parent=8 // loop_footer
          %s39 = scalar_lea.vmem %s17, 64
          %s40 = scalar_lea.vmem %s18, 64
          %v41 = vld [vmem:[%s17 + $0x40] sm:$0xff]
        $region15: #{custom-call.13} parent=8 // loop_footer_branch
          %42 = sbr.rel target = $region11
        $region16: #{custom-call.13} parent=8 // loop_exit
          _
        // While loop
        $region17: #{custom-call.13} parent=8 // loop_pre_header
          _
        $region18: #{custom-call.13} parent=8 // loop_header
          %s43 = sphi %s17, %s51
          %s44 = sphi %s18, %s52
          %v45 = vphi %v19, %v45
          %p46 = scmp.gt.s32.totalorder %s43, %s15
        $region19: #{custom-call.13} parent=8 // loop_header_branch
          %48 = sbr.rel (%p46) target = $region23
        $region20: #{custom-call.13} parent=8 // loop_body
          %v49 = vld [vmem:[%s43] sm:$0xff]
          %50 = vst [vmem:[%s44] sm:$0xff] %v49
        $region21: #{custom-call.13} parent=8 // loop_footer
          %s51 = scalar_lea.vmem %s43, 8
          %s52 = scalar_lea.vmem %s44, 8
        $region22: #{custom-call.13} parent=8 // loop_footer_branch
          %53 = sbr.rel target = $region18
        $region23: #{custom-call.13} parent=8 // loop_exit
          _
      $region9: #{custom-call.13} parent=4 // pred_fallthru
        _
      %s55 = ssub.s32 1, 1
      %s56 = smul.u32 2, 8
      %s57 = scalar_lea.vmem [#allocation0], %s56
      %s58 = smul.u32 2, 8
      %s59 = scalar_lea.vmem %s0, %s58
      %v60 = vld [vmem:[%s59] sm:%s55]
      %61 = vst [vmem:[%s57] sm:%s55] %v60
    $region5: #{custom-call.13} parent=1 // pred_fallthru
      _
    %v62 = vld [vmem:[#allocation0] sm:$0xff]
    %63 = vst [vmem:[#allocation1] sm:$0xff] %v62
    %s64 = scalar_lea.vmem [#allocation1], 8
    %s65 = scalar_lea.vmem [#allocation0], 8
    %v66 = vld [vmem:[%s65] sm:$0xff]
    %67 = vst [vmem:[%s64] sm:$0xff] %v66
    %68 = vst [vmem:[#allocation2] sm:$0x1] 0
    %v69 = vlaneseq
    %v70 = vshrl.u32 %v69, 7
    %v71 = vmov %v70
    loop: start=0, step=1, limit=2
    $region24: #{custom-call.13} parent=1 // loop_pre_header
      _
    $region25: #{custom-call.13} parent=1 // loop_header
      %s73 = sphi 0, %s77
      %p74 = scmp.ge.s32.totalorder %s73, 2
    $region26: #{custom-call.13} parent=1 // loop_header_branch
      %76 = sbr.rel (%p74) target = $region30
    $region27: #{custom-call.13} parent=1 // loop_body
      %s78 = smul.addr %s73, 8
      %s79 = scalar_lea.vmem [#allocation7], %s78
      %s80 = smul.u32 %s73, 8
      %v81 = vstv %s80
      %v82 = vadd.s32 %v71, %v81
      %83 = vst [vmem:[%s79] sm:$0xff] %v82
    $region28: #{custom-call.13} parent=1 // loop_footer
      %s77 = sadd.s32 1, %s73
    $region29: #{custom-call.13} parent=1 // loop_footer_branch
      %72 = sbr.rel target = $region25
    $region30: #{custom-call.13} parent=1 // loop_exit
      _
    loop: start=0, step=1, limit=16
    $region31: #{custom-call.13} parent=1 // loop_pre_header
      _
    $region32: #{custom-call.13} parent=1 // loop_header
      %s85 = sphi 0, %s89
      %p86 = scmp.ge.s32.totalorder %s85, 16
    $region33: #{custom-call.13} parent=1 // loop_header_branch
      %88 = sbr.rel (%p86) target = $region37
    $region34: #{custom-call.13} parent=1 // loop_body
      %v90 = vstv %s85
      %v91 = vlaneseq
      %v92 = vshrl.u32 %v91, 7
      %v93 = vmov %v92
      %v94 = vld [vmem:[#allocation1] sm:$0xff]
      %v95 = vand.u32 2147483647, %v94
      %v97 = vstv %s85
      %vm98 = vcmp.ge.s32.totalorder %v93, %v97
      %vm99 = vcmp.lt.s32.totalorder %v93, 16
      %vm100 = vmand %vm98, %vm99
      %vm101 = vcmp.lt.f32.partialorder -inf, %v95
      %vm102 = vmand %vm100, %vm101
      %v103 = vsel %vm102, %v93, %v90
      %v104 = vsel %vm102, %v95, -inf
      %s105 = scalar_lea.vmem [#allocation1], 8
      %v106 = vld [vmem:[%s105] sm:$0xff]
      %v107 = vand.u32 2147483647, %v106
      %v108 = vadd.s32 %v93, 8
      %v109 = vstv %s85
      %vm110 = vcmp.ge.s32.totalorder %v108, %v109
      %vm111 = vcmp.lt.s32.totalorder %v108, 16
      %vm112 = vmand %vm110, %vm111
      %vm113 = vcmp.lt.f32.partialorder %v104, %v107
      %vm114 = vmand %vm112, %vm113
      %v115 = vsel %vm114, %v108, %v103
      %v116 = vsel %vm114, %v107, %v104
      %v117 = vrot.slane %v116, 1
      %v118 = vrot.slane %v115, 1
      %vm119 = vcmp.ge.f32.partialorder %v117, %v116
      %v120 = vsel %vm119, %v117, %v116
      %v121 = vsel %vm119, %v118, %v115
      %v122 = vrot.slane %v117, 1
      %v123 = vrot.slane %v118, 1
      %vm124 = vcmp.ge.f32.partialorder %v122, %v120
      %v125 = vsel %vm124, %v122, %v120
      %v126 = vsel %vm124, %v123, %v121
      %v127 = vrot.slane %v122, 1
      %v128 = vrot.slane %v123, 1
      %vm129 = vcmp.ge.f32.partialorder %v127, %v125
      %v130 = vsel %vm129, %v127, %v125
      %v131 = vsel %vm129, %v128, %v126
      %v132 = vrot.slane %v127, 1
      %v133 = vrot.slane %v128, 1
      %vm134 = vcmp.ge.f32.partialorder %v132, %v130
      %v135 = vsel %vm134, %v132, %v130
      %v136 = vsel %vm134, %v133, %v131
      %v137 = vrot.slane %v132, 1
      %v138 = vrot.slane %v133, 1
      %vm139 = vcmp.ge.f32.partialorder %v137, %v135
      %v140 = vsel %vm139, %v137, %v135
      %v141 = vsel %vm139, %v138, %v136
      %v142 = vrot.slane %v137, 1
      %v143 = vrot.slane %v138, 1
      %vm144 = vcmp.ge.f32.partialorder %v142, %v140
      %v145 = vsel %vm144, %v142, %v140
      %v146 = vsel %vm144, %v143, %v141
      %v147 = vrot.slane %v142, 1
      %v148 = vrot.slane %v143, 1
      %vm149 = vcmp.ge.f32.partialorder %v147, %v145
      %v150 = vsel %vm149, %v147, %v145
      %v151 = vsel %vm149, %v148, %v146
      %s152 = ssub.s32 128, %s85
      %153 = vrot.lane.b32.xlu0 %v151, %s152
      %v154 = vpop.permute.xlu0 %153
      %s155 = vtos %v154
      %v156 = vstv %s85
      %v157 = vlaneseq
      %v158 = vand.u32 %v157, 127
      %vm159 = vcmp.eq.s32.totalorder %v158, %v156
      %v160 = vstv %s155
      %v161 = vld [vmem:[#allocation2] ss:$0 sm:$0xff]
      %v162 = vsel %vm159, %v160, %v161
      %163 = vst [vmem:[#allocation2] sm:$0x1] %v162
      %s164 = scalar_lea.vmem [#allocation1], %s85
      %s165 = scalar_lea.vmem [#allocation1], %s155
      %v166 = vld [vmem:[%s164] ss:$0 sm:$0xff]
      %v167 = vld [vmem:[%s165] ss:$0 sm:$0xff]
      %168 = vst [vmem:[%s165] sm:$0x1] %v166
      %169 = vst [vmem:[%s164] sm:$0x1] %v167
      %s170 = scalar_lea.vmem [#allocation7], %s85
      %s171 = scalar_lea.vmem [#allocation7], %s155
      %v172 = vld [vmem:[%s170] ss:$0 sm:$0xff]
      %v173 = vld [vmem:[%s171] ss:$0 sm:$0xff]
      %174 = vst [vmem:[%s171] sm:$0x1] %v172
      %175 = vst [vmem:[%s170] sm:$0x1] %v173
      %vm176 = vcmp.ne.f32.partialorder %v167, 0.0
      %vm177 = vmand %vm159, %vm176
      %v178 = vsel %vm177, %v167, 1.0
      %v179 = vlaneseq
      %v180 = vand.u32 %v179, 127
      %v181 = vstv %s85
      %vm182 = vcmp.gt.s32.totalorder %v180, %v181
      %v183 = vsel %vm182, %v167, 0.0
      %v184 = vlaneseq
      %v185 = vshrl.u32 %v184, 7
      %v186 = vmov %v185
      %v187 = vld [vmem:[#allocation1] sm:$0xff]
      %v189 = vstv %s85
      %vm190 = vcmp.gt.s32.totalorder %v186, %v189
      %v191 = vsel %vm190, %v178, 1.0
      %v192 = vrcp.pop %v191
      %v193 = vmul.f32 %v191, %v192
      %v194 = vsub.f32 1.0, %v193
      %v195 = vmul.f32 %v192, %v194
      %v196 = vadd.f32 %v192, %v195
      %vm197 = vweird.f32 %v191
      %vm198 = vweird.f32 %v192
      %vm199 = vmor %vm197, %vm198
      %v200 = vsel %vm199, %v192, %v196
      %v201 = vand.u32 2147483647, %v191
      %vm202 = vcmp.eq.f32.partialorder %v201, 8.507059e+37
      %v203 = vand.u32 %v191, 2147483648
      %v204 = vor.u32 1.1754944e-38, %v203
      %v205 = vsel %vm202, %v204, %v200
      %v206 = vmul.f32 %v187, %v205
      %vm207 = vmand %vm190, %vm159
      %v208 = vsel %vm207, %v206, 0.0
      %209 = vadd.xlane.f32.xlu0 %v208
      %v210 = vpop.xlane.xlu0 %209
      %v211 = vmul.f32 %v210, %v183
      %v212 = vsub.f32 %v206, %v211
      %213 = vst [vmem:[#allocation1] sm:$0xff] %v212
      %s214 = scalar_lea.vmem [#allocation1], 8
      %v215 = vld [vmem:[%s214] sm:$0xff]
      %v216 = vadd.s32 %v186, 8
      %v217 = vstv %s85
      %vm218 = vcmp.gt.s32.totalorder %v216, %v217
      %v219 = vsel %vm218, %v178, 1.0
      %v220 = vrcp.pop %v219
      %v221 = vmul.f32 %v219, %v220
      %v222 = vsub.f32 1.0, %v221
      %v223 = vmul.f32 %v220, %v222
      %v224 = vadd.f32 %v220, %v223
      %vm225 = vweird.f32 %v219
      %vm226 = vweird.f32 %v220
      %vm227 = vmor %vm225, %vm226
      %v228 = vsel %vm227, %v220, %v224
      %v229 = vand.u32 2147483647, %v219
      %vm230 = vcmp.eq.f32.partialorder %v229, 8.507059e+37
      %v231 = vand.u32 %v219, 2147483648
      %v232 = vor.u32 1.1754944e-38, %v231
      %v233 = vsel %vm230, %v232, %v228
      %v234 = vmul.f32 %v215, %v233
      %vm235 = vmand %vm218, %vm159
      %v236 = vsel %vm235, %v234, 0.0
      %237 = vadd.xlane.f32.xlu0 %v236
      %v238 = vpop.xlane.xlu0 %237
      %v239 = vmul.f32 %v238, %v183
      %v240 = vsub.f32 %v234, %v239
      %241 = vst [vmem:[%s214] sm:$0xff] %v240
    $region35: #{custom-call.13} parent=1 // loop_footer
      %s89 = sadd.s32 1, %s85
    $region36: #{custom-call.13} parent=1 // loop_footer_branch
      %84 = sbr.rel target = $region32
    $region37: #{custom-call.13} parent=1 // loop_exit
      _
    %v242 = vld [vmem:[#allocation7] sm:$0xff]
    %s243 = scalar_lea.vmem [#allocation7], 8
    %v244 = vld [vmem:[%s243] sm:$0xff]
    %s245 = scalar_lea.vmem [#allocation7], 16
    %s246 = scalar_lea.vmem [#allocation7], 24
    %s247 = scalar_lea.vmem [#allocation7], 32
    %s248 = scalar_lea.vmem [#allocation7], 40
    %s249 = scalar_lea.vmem [#allocation7], 48
    %s250 = scalar_lea.vmem [#allocation7], 56
    %s251 = scalar_lea.vmem [#allocation7], 64
    %s252 = scalar_lea.vmem [#allocation7], 72
    %s253 = scalar_lea.vmem [#allocation7], 80
    %s254 = scalar_lea.vmem [#allocation7], 88
    %s255 = scalar_lea.vmem [#allocation7], 96
    %s256 = scalar_lea.vmem [#allocation7], 104
    %s257 = scalar_lea.vmem [#allocation7], 112
    %s258 = scalar_lea.vmem [#allocation7], 120
    %259 = vxpose.xlu0.b32.start [1/16] %v242, 128
    %260 = vxpose.xlu0.b32.cont [2/16] %v244, 128
    %261 = vxpose.xlu0.b32.cont [3/16] 0, 128
    %262 = vxpose.xlu0.b32.cont [4/16] 0, 128
    %263 = vxpose.xlu0.b32.cont [5/16] 0, 128
    %264 = vxpose.xlu0.b32.cont [6/16] 0, 128
    %265 = vxpose.xlu0.b32.cont [7/16] 0, 128
    %266 = vxpose.xlu0.b32.cont [8/16] 0, 128
    %267 = vxpose.xlu0.b32.cont [9/16] 0, 128
    %268 = vxpose.xlu0.b32.cont [10/16] 0, 128
    %269 = vxpose.xlu0.b32.cont [11/16] 0, 128
    %270 = vxpose.xlu0.b32.cont [12/16] 0, 128
    %271 = vxpose.xlu0.b32.cont [13/16] 0, 128
    %272 = vxpose.xlu0.b32.cont [14/16] 0, 128
    %273 = vxpose.xlu0.b32.cont [15/16] 0, 128
    %274 = vxpose.xlu0.b32.end [16/16] 0, 128
    %v275 = vpop.trf.xlu0
    %v276 = vpop.trf.xlu0
    %v277 = vpop.trf.xlu0
    %v278 = vpop.trf.xlu0
    %v279 = vpop.trf.xlu0
    %v280 = vpop.trf.xlu0
    %v281 = vpop.trf.xlu0
    %v282 = vpop.trf.xlu0
    %v283 = vpop.trf.xlu0
    %v284 = vpop.trf.xlu0
    %v285 = vpop.trf.xlu0
    %v286 = vpop.trf.xlu0
    %v287 = vpop.trf.xlu0
    %v288 = vpop.trf.xlu0
    %v289 = vpop.trf.xlu0
    %v290 = vpop.trf.xlu0
    %291 = vst [vmem:[#allocation5] sm:$0x1] %v275
    %s293 = ssub.s32 2, 1
    %v294 = vld [vmem:[#allocation2] sm:%s293]
    %s296 = ssub.s32 2, 1
    %297 = vst [vmem:[#allocation3] sm:%s296] %v294
    %s299 = ssub.s32 2, 1
    %v300 = vld [vmem:[#allocation5] sm:%s299]
    %s302 = ssub.s32 2, 1
    %303 = vst [vmem:[#allocation6] sm:%s302] %v300
    // Predicated region
    $region38: #{custom-call.13} parent=1 // pred_check
      _
    $region39: #{custom-call.13} parent=1 // pred_check_branch
      %305 = sbr.rel (0) target = $region41
    $region40: #{custom-call.13} parent=1 // pred_region
      %p307 = scmp.gt.s32.totalorder 2, 0
      // Predicated region
      $region42: #{custom-call.13} parent=40 // pred_check
        %p308 = pneg %p307
      $region43: #{custom-call.13} parent=40 // pred_check_branch
        %310 = sbr.rel (%p308) target = $region45
      $region44: #{custom-call.13} parent=40 // pred_region
        %s311 = ssub.s32 2, 1
        %s312 = smul.u32 %s311, 8
        %s313 = scalar_lea.vmem [#allocation1], %s312
        %v314 = vld [vmem:[#allocation1] sm:$0xff]
        // While loop
        $region46: #{custom-call.13} parent=44 // loop_pre_header
          _
        $region47: #{custom-call.13} parent=44 // loop_header
          %s315 = sphi [#allocation1], %s337
          %s316 = sphi %s1, %s338
          %v317 = vphi %v314, %v339
          %s318 = ssub.s32 %s313, 64
          %p319 = scmp.gt.s32.totalorder %s315, %s318
        $region48: #{custom-call.13} parent=44 // loop_header_branch
          %321 = sbr.rel (%p319) target = $region52
        $region49: #{custom-call.13} parent=44 // loop_body
          %322 = vst [vmem:[%s316] sm:$0xff] %v317
          %v323 = vld [vmem:[%s315 + $0x8] sm:$0xff]
          %324 = vst [vmem:[%s316 + $0x8] sm:$0xff] %v323
          %v325 = vld [vmem:[%s315 + $0x10] sm:$0xff]
          %326 = vst [vmem:[%s316 + $0x10] sm:$0xff] %v325
          %v327 = vld [vmem:[%s315 + $0x18] sm:$0xff]
          %328 = vst [vmem:[%s316 + $0x18] sm:$0xff] %v327
          %v329 = vld [vmem:[%s315 + $0x20] sm:$0xff]
          %330 = vst [vmem:[%s316 + $0x20] sm:$0xff] %v329
          %v331 = vld [vmem:[%s315 + $0x28] sm:$0xff]
          %332 = vst [vmem:[%s316 + $0x28] sm:$0xff] %v331
          %v333 = vld [vmem:[%s315 + $0x30] sm:$0xff]
          %334 = vst [vmem:[%s316 + $0x30] sm:$0xff] %v333
          %v335 = vld [vmem:[%s315 + $0x38] sm:$0xff]
          %336 = vst [vmem:[%s316 + $0x38] sm:$0xff] %v335
        $region50: #{custom-call.13} parent=44 // loop_footer
          %s337 = scalar_lea.vmem %s315, 64
          %s338 = scalar_lea.vmem %s316, 64
          %v339 = vld [vmem:[%s315 + $0x40] sm:$0xff]
        $region51: #{custom-call.13} parent=44 // loop_footer_branch
          %340 = sbr.rel target = $region47
        $region52: #{custom-call.13} parent=44 // loop_exit
          _
        // While loop
        $region53: #{custom-call.13} parent=44 // loop_pre_header
          _
        $region54: #{custom-call.13} parent=44 // loop_header
          %s341 = sphi %s315, %s349
          %s342 = sphi %s316, %s350
          %v343 = vphi %v317, %v343
          %p344 = scmp.gt.s32.totalorder %s341, %s313
        $region55: #{custom-call.13} parent=44 // loop_header_branch
          %346 = sbr.rel (%p344) target = $region59
        $region56: #{custom-call.13} parent=44 // loop_body
          %v347 = vld [vmem:[%s341] sm:$0xff]
          %348 = vst [vmem:[%s342] sm:$0xff] %v347
        $region57: #{custom-call.13} parent=44 // loop_footer
          %s349 = scalar_lea.vmem %s341, 8
          %s350 = scalar_lea.vmem %s342, 8
        $region58: #{custom-call.13} parent=44 // loop_footer_branch
          %351 = sbr.rel target = $region54
        $region59: #{custom-call.13} parent=44 // loop_exit
          _
      $region45: #{custom-call.13} parent=40 // pred_fallthru
        _
      %s353 = ssub.s32 1, 1
      %s354 = smul.u32 2, 8
      %s355 = scalar_lea.vmem %s1, %s354
      %s356 = smul.u32 2, 8
      %s357 = scalar_lea.vmem [#allocation1], %s356
      %v358 = vld [vmem:[%s357] sm:%s353]
      %359 = vst [vmem:[%s355] sm:%s353] %v358
    $region41: #{custom-call.13} parent=1 // pred_fallthru
      _
    // Predicated region
    $region60: #{custom-call.13} parent=1 // pred_check
      _
    $region61: #{custom-call.13} parent=1 // pred_check_branch
      %361 = sbr.rel (0) target = $region63
    $region62: #{custom-call.13} parent=1 // pred_region
      %363 = vsyncadd [#allocation4], 0
      %s365 = sshll.u32 [#allocation3], 4
      %s366 = int_to_ptr.vmem [resolvable:$true] %s365
      %s367 = sshll.u32 %s2, 4
      %s368 = int_to_ptr.hbm [resolvable:$true] %s367
      %370 = dma.vmem_to_hbm [thread:$0]  %s366, 16, %s368, [#allocation4]
    $region63: #{custom-call.13} parent=1 // pred_fallthru
      _
    // Predicated region
    $region64: #{custom-call.13} parent=1 // pred_check
      _
    $region65: #{custom-call.13} parent=1 // pred_check_branch
      %372 = sbr.rel (0) target = $region67
    $region66: #{custom-call.13} parent=1 // pred_region
      // Predicated region
      $region68: #{custom-call.13} parent=66 // pred_check
        _
      $region69: #{custom-call.13} parent=66 // pred_check_branch
        %374 = sbr.rel (0) target = $region71
      $region70: #{custom-call.13} parent=66 // pred_region
        %p376 = scmp.gt.s32.totalorder 0, 0
        // Predicated region
        $region72: #{custom-call.13} parent=70 // pred_check
          %p377 = pneg %p376
        $region73: #{custom-call.13} parent=70 // pred_check_branch
          %379 = sbr.rel (%p377) target = $region75
        $region74: #{custom-call.13} parent=70 // pred_region
          %s380 = ssub.s32 0, 1
          %s381 = smul.u32 %s380, 8
          %s382 = scalar_lea.vmem [#allocation6], %s381
          %v383 = vld [vmem:[#allocation6] sm:$0xff]
          // While loop
          $region76: #{custom-call.13} parent=74 // loop_pre_header
            _
          $region77: #{custom-call.13} parent=74 // loop_header
            %s384 = sphi [#allocation6], %s406
            %s385 = sphi %s3, %s407
            %v386 = vphi %v383, %v408
            %s387 = ssub.s32 %s382, 64
            %p388 = scmp.gt.s32.totalorder %s384, %s387
          $region78: #{custom-call.13} parent=74 // loop_header_branch
            %390 = sbr.rel (%p388) target = $region82
          $region79: #{custom-call.13} parent=74 // loop_body
            %391 = vst [vmem:[%s385] sm:$0xff] %v386
            %v392 = vld [vmem:[%s384 + $0x8] sm:$0xff]
            %393 = vst [vmem:[%s385 + $0x8] sm:$0xff] %v392
            %v394 = vld [vmem:[%s384 + $0x10] sm:$0xff]
            %395 = vst [vmem:[%s385 + $0x10] sm:$0xff] %v394
            %v396 = vld [vmem:[%s384 + $0x18] sm:$0xff]
            %397 = vst [vmem:[%s385 + $0x18] sm:$0xff] %v396
            %v398 = vld [vmem:[%s384 + $0x20] sm:$0xff]
            %399 = vst [vmem:[%s385 + $0x20] sm:$0xff] %v398
            %v400 = vld [vmem:[%s384 + $0x28] sm:$0xff]
            %401 = vst [vmem:[%s385 + $0x28] sm:$0xff] %v400
            %v402 = vld [vmem:[%s384 + $0x30] sm:$0xff]
            %403 = vst [vmem:[%s385 + $0x30] sm:$0xff] %v402
            %v404 = vld [vmem:[%s384 + $0x38] sm:$0xff]
            %405 = vst [vmem:[%s385 + $0x38] sm:$0xff] %v404
          $region80: #{custom-call.13} parent=74 // loop_footer
            %s406 = scalar_lea.vmem %s384, 64
            %s407 = scalar_lea.vmem %s385, 64
            %v408 = vld [vmem:[%s384 + $0x40] sm:$0xff]
          $region81: #{custom-call.13} parent=74 // loop_footer_branch
            %409 = sbr.rel target = $region77
          $region82: #{custom-call.13} parent=74 // loop_exit
            _
          // While loop
          $region83: #{custom-call.13} parent=74 // loop_pre_header
            _
          $region84: #{custom-call.13} parent=74 // loop_header
            %s410 = sphi %s384, %s418
            %s411 = sphi %s385, %s419
            %v412 = vphi %v386, %v412
            %p413 = scmp.gt.s32.totalorder %s410, %s382
          $region85: #{custom-call.13} parent=74 // loop_header_branch
            %415 = sbr.rel (%p413) target = $region89
          $region86: #{custom-call.13} parent=74 // loop_body
            %v416 = vld [vmem:[%s410] sm:$0xff]
            %417 = vst [vmem:[%s411] sm:$0xff] %v416
          $region87: #{custom-call.13} parent=74 // loop_footer
            %s418 = scalar_lea.vmem %s410, 8
            %s419 = scalar_lea.vmem %s411, 8
          $region88: #{custom-call.13} parent=74 // loop_footer_branch
            %420 = sbr.rel target = $region84
          $region89: #{custom-call.13} parent=74 // loop_exit
            _
        $region75: #{custom-call.13} parent=70 // pred_fallthru
          _
        %s422 = ssub.s32 2, 1
        %s423 = smul.u32 0, 8
        %s424 = scalar_lea.vmem %s3, %s423
        %s425 = smul.u32 0, 8
        %s426 = scalar_lea.vmem [#allocation6], %s425
        %v427 = vld [vmem:[%s426] sm:%s422]
        %428 = vst [vmem:[%s424] sm:%s422] %v427
      $region71: #{custom-call.13} parent=66 // pred_fallthru
        _
    $region67: #{custom-call.13} parent=1 // pred_fallthru
      _
    // Predicated region
    $region90: #{custom-call.13} parent=1 // pred_check
      _
    $region91: #{custom-call.13} parent=1 // pred_check_branch
      %430 = sbr.rel (0) target = $region93
    $region92: #{custom-call.13} parent=1 // pred_region
      %432 = dma.done [#allocation4], 16
    $region93: #{custom-call.13} parent=1 // pred_fallthru
      _
    // Predicated region
    $region94: #{custom-call.13} parent=1 // pred_check
      _
    $region95: #{custom-call.13} parent=1 // pred_check_branch
      %434 = sbr.rel (0) target = $region97
    $region96: #{custom-call.13} parent=1 // pred_region
      _
    $region97: #{custom-call.13} parent=1 // pred_fallthru
      _
    %435 = vsyncpa [#allocation4], 1

// kernel: custom-call.15
$region0: #{custom-call.15}
  %s0 = inlined_call_operand.vmem [shape: f32[1,16,16], index: 0, kind: input, shape index: {}]
  %s1 = inlined_call_operand.vmem [shape: f32[1,16,16], index: 1, kind: output, shape index: {}]
  $region1: #{custom-call.15} parent=0
    #allocation0 [shape = 'u8[8192]{0}', space=vmem, size = 0x2000, scoped, tag = 'operand span for operand 0']
    #allocation1 [shape = 'u8[8192]{0}', space=vmem, size = 0x2000, scoped, tag = 'operand span for operand 1']
    #allocation2 [shape = 'f32[16,16]{1,0}', space=vmem, size = 0x2000, scoped, tag = 'rescaled input a']
    // Predicated region
    $region2: #{custom-call.15} parent=1 // pred_check
      _
    $region3: #{custom-call.15} parent=1 // pred_check_branch
      %3 = sbr.rel (0) target = $region5
    $region4: #{custom-call.15} parent=1 // pred_region
      // Predicated region
      $region6: #{custom-call.15} parent=4 // pred_check
        _
      $region7: #{custom-call.15} parent=4 // pred_check_branch
        %5 = sbr.rel (0) target = $region9
      $region8: #{custom-call.15} parent=4 // pred_region
        // Predicated region
        $region21: #{custom-call.15} parent=8 // pred_check
          _
        $region22: #{custom-call.15} parent=8 // pred_check_branch
          %23 = sbr.rel (0) target = $region24
        $region23: #{custom-call.15} parent=8 // pred_region
          loop: start=0, step=1, limit=1
          $region25: #{custom-call.15} parent=23 // loop_pre_header
            _
          $region26: #{custom-call.15} parent=23 // loop_header
            %s25 = sphi 0, %s29
            %p26 = scmp.ge.s32.totalorder %s25, 1
            %s30 = sphi %s0, %s0
            %s31 = sphi [#allocation0], [#allocation0]
          $region27: #{custom-call.15} parent=23 // loop_header_branch
            %28 = sbr.rel (%p26) target = $region31
          $region28: #{custom-call.15} parent=23 // loop_body
            %v32 = vld [vmem:[%s30] sm:$0xff]
            %33 = vst [vmem:[%s31] sm:$0xff] %v32
            %v34 = vld [vmem:[%s30 + $0x8] sm:$0xff]
            %35 = vst [vmem:[%s31 + $0x8] sm:$0xff] %v34
          $region29: #{custom-call.15} parent=23 // loop_footer
            %s29 = sadd.s32 1, %s25
          $region30: #{custom-call.15} parent=23 // loop_footer_branch
            %24 = sbr.rel target = $region26
          $region31: #{custom-call.15} parent=23 // loop_exit
            _
        $region24: #{custom-call.15} parent=8 // pred_fallthru
          _
        // Predicated region
        $region32: #{custom-call.15} parent=8 // pred_check
          _
        $region33: #{custom-call.15} parent=8 // pred_check_branch
          %37 = sbr.rel target = $region35
        $region34: #{custom-call.15} parent=8 // pred_region
          _
        $region35: #{custom-call.15} parent=8 // pred_fallthru
          _
      $region9: #{custom-call.15} parent=4 // pred_fallthru
        _
      // Predicated region
      $region10: #{custom-call.15} parent=4 // pred_check
        _
      $region11: #{custom-call.15} parent=4 // pred_check_branch
        %7 = sbr.rel target = $region13
      $region12: #{custom-call.15} parent=4 // pred_region
        %s9 = ssub.s32 256, 1
        loop: start=0, step=1, limit=1
        $region14: #{custom-call.15} parent=12 // loop_pre_header
          _
        $region15: #{custom-call.15} parent=12 // loop_header
          %s11 = sphi 0, %s15
          %p12 = scmp.ge.s32.totalorder %s11, 1
          %s16 = sphi %s0, %s0
          %s17 = sphi [#allocation0], [#allocation0]
        $region16: #{custom-call.15} parent=12 // loop_header_branch
          %14 = sbr.rel (%p12) target = $region20
        $region17: #{custom-call.15} parent=12 // loop_body
          %v18 = vld [vmem:[%s16] sm:%s9]
          %19 = vst [vmem:[%s17] sm:%s9] %v18
          %v20 = vld [vmem:[%s16 + $0x8] sm:%s9]
          %21 = vst [vmem:[%s17 + $0x8] sm:%s9] %v20
        $region18: #{custom-call.15} parent=12 // loop_footer
          %s15 = sadd.s32 1, %s11
        $region19: #{custom-call.15} parent=12 // loop_footer_branch
          %10 = sbr.rel target = $region15
        $region20: #{custom-call.15} parent=12 // loop_exit
          _
      $region13: #{custom-call.15} parent=4 // pred_fallthru
        _
    $region5: #{custom-call.15} parent=1 // pred_fallthru
      _
    %38 = vnop
    %v39 = vlaneseq
    %v40 = vand.u32 %v39, 127
    %vm41 = vcmp.lt.s32.totalorder %v40, 16
    %v42 = vlaneseq
    %v43 = vshrl.u32 %v42, 7
    %vm45 = vcmp.eq.s32.totalorder %v43, %v40
    %v46 = vld [vmem:[#allocation0] sm:$0xff]
    %v47 = vsel %vm45, %v46, 0.0
    %48 = vadd.xlane.f32.xlu0 %v47
    %v49 = vpop.xlane.xlu0 %48
    %vm50 = vcmp.ge.s32.totalorder %v43, %v40
    %vm51 = vmand %vm50, %vm41
    %v52 = vsel %vm51, %v46, 0.0
    %v53 = vrcp.pop %v49
    %v54 = vmul.f32 %v49, %v53
    %v55 = vsub.f32 1.0, %v54
    %v56 = vmul.f32 %v53, %v55
    %v57 = vadd.f32 %v53, %v56
    %vm58 = vweird.f32 %v49
    %vm59 = vweird.f32 %v53
    %vm60 = vmor %vm58, %vm59
    %v61 = vsel %vm60, %v53, %v57
    %v62 = vand.u32 2147483647, %v49
    %vm63 = vcmp.eq.f32.partialorder %v62, 8.507059e+37
    %v64 = vand.u32 %v49, 2147483648
    %v65 = vor.u32 1.1754944e-38, %v64
    %v66 = vsel %vm63, %v65, %v61
    %v67 = vmul.f32 %v52, %v66
    %68 = vst [vmem:[#allocation2] sm:$0xff] %v67
    %s69 = scalar_lea.vmem [#allocation0], 8
    %s70 = scalar_lea.vmem [#allocation2], 8
    %v71 = vlaneseq
    %v72 = vshrl.u32 %v71, 7
    %v73 = vadd.s32 %v72, 8
    %vm74 = vcmp.eq.s32.totalorder %v73, %v40
    %v75 = vld [vmem:[%s69] sm:$0xff]
    %v76 = vsel %vm74, %v75, 0.0
    %77 = vadd.xlane.f32.xlu0 %v76
    %v78 = vpop.xlane.xlu0 %77
    %vm79 = vcmp.ge.s32.totalorder %v73, %v40
    %vm80 = vmand %vm79, %vm41
    %v81 = vsel %vm80, %v75, 0.0
    %v82 = vrcp.pop %v78
    %v83 = vmul.f32 %v78, %v82
    %v84 = vsub.f32 1.0, %v83
    %v85 = vmul.f32 %v82, %v84
    %v86 = vadd.f32 %v82, %v85
    %vm87 = vweird.f32 %v78
    %vm88 = vweird.f32 %v82
    %vm89 = vmor %vm87, %vm88
    %v90 = vsel %vm89, %v82, %v86
    %v91 = vand.u32 2147483647, %v78
    %vm92 = vcmp.eq.f32.partialorder %v91, 8.507059e+37
    %v93 = vand.u32 %v78, 2147483648
    %v94 = vor.u32 1.1754944e-38, %v93
    %v95 = vsel %vm92, %v94, %v90
    %v96 = vmul.f32 %v81, %v95
    %97 = vst [vmem:[%s70] sm:$0xff] %v96
    %v98 = vlaneseq
    %v99 = vand.u32 %v98, 127
    %v100 = vlaneseq
    %v101 = vshrl.u32 %v100, 7
    %vm103 = vcmp.eq.s32.totalorder %v99, %v101
    %v104 = vlaneseq
    %v105 = vand.u32 %v104, 127
    %vm106 = vcmp.eq.s32.totalorder %v105, 0
    %v107 = vsel %vm106, 1.0, -1.0
    %v108 = vsel %vm103, %v107, 0.0
    %v109 = vlaneseq
    %v110 = vand.u32 %v109, 127
    %v111 = vlaneseq
    %v112 = vshrl.u32 %v111, 7
    %v113 = vadd.s32 %v112, 8
    %vm114 = vcmp.eq.s32.totalorder %v110, %v113
    %v115 = vsel %vm114, -1.0, 0.0
    %s116 = scalar_lea.vmem [#allocation2], 1
    %v117 = vld [vmem:[%s116] ss:$0 sm:$0xff]
    %v118 = vxor.u32 %v117, 2147483648
    %v119 = vlaneseq
    %v120 = vand.u32 %v119, 127
    %vm121 = vcmp.eq.s32.totalorder %v120, 1
    %v122 = vmul.f32 %v118, %v108
    %123 = vadd.xlane.f32.xlu0 %v122
    %v124 = vpop.xlane.xlu0 %123
    %v125 = vsel %vm121, %v124, %v108
    %s126 = scalar_lea.vmem [#allocation2], 2
    %v127 = vld [vmem:[%s126] ss:$0 sm:$0xff]
    %v128 = vxor.u32 %v127, 2147483648
    %v129 = vlaneseq
    %v130 = vand.u32 %v129, 127
    %vm131 = vcmp.eq.s32.totalorder %v130, 2
    %v132 = vmul.f32 %v128, %v125
    %133 = vadd.xlane.f32.xlu0 %v132
    %v134 = vpop.xlane.xlu0 %133
    %v135 = vsel %vm131, %v134, %v125
    %s136 = scalar_lea.vmem [#allocation2], 3
    %v137 = vld [vmem:[%s136] ss:$0 sm:$0xff]
    %v138 = vxor.u32 %v137, 2147483648
    %v139 = vlaneseq
    %v140 = vand.u32 %v139, 127
    %vm141 = vcmp.eq.s32.totalorder %v140, 3
    %v142 = vmul.f32 %v138, %v135
    %143 = vadd.xlane.f32.xlu0 %v142
    %v144 = vpop.xlane.xlu0 %143
    %v145 = vsel %vm141, %v144, %v135
    %s146 = scalar_lea.vmem [#allocation2], 4
    %v147 = vld [vmem:[%s146] ss:$0 sm:$0xff]
    %v148 = vxor.u32 %v147, 2147483648
    %v149 = vlaneseq
    %v150 = vand.u32 %v149, 127
    %vm151 = vcmp.eq.s32.totalorder %v150, 4
    %v152 = vmul.f32 %v148, %v145
    %153 = vadd.xlane.f32.xlu0 %v152
    %v154 = vpop.xlane.xlu0 %153
    %v155 = vsel %vm151, %v154, %v145
    %s156 = scalar_lea.vmem [#allocation2], 5
    %v157 = vld [vmem:[%s156] ss:$0 sm:$0xff]
    %v158 = vxor.u32 %v157, 2147483648
    %v159 = vlaneseq
    %v160 = vand.u32 %v159, 127
    %vm161 = vcmp.eq.s32.totalorder %v160, 5
    %v162 = vmul.f32 %v158, %v155
    %163 = vadd.xlane.f32.xlu0 %v162
    %v164 = vpop.xlane.xlu0 %163
    %v165 = vsel %vm161, %v164, %v155
    %s166 = scalar_lea.vmem [#allocation2], 6
    %v167 = vld [vmem:[%s166] ss:$0 sm:$0xff]
    %v168 = vxor.u32 %v167, 2147483648
    %v169 = vlaneseq
    %v170 = vand.u32 %v169, 127
    %vm171 = vcmp.eq.s32.totalorder %v170, 6
    %v172 = vmul.f32 %v168, %v165
    %173 = vadd.xlane.f32.xlu0 %v172
    %v174 = vpop.xlane.xlu0 %173
    %v175 = vsel %vm171, %v174, %v165
    %s176 = scalar_lea.vmem [#allocation2], 7
    %v177 = vld [vmem:[%s176] ss:$0 sm:$0xff]
    %v178 = vxor.u32 %v177, 2147483648
    %v179 = vlaneseq
    %v180 = vand.u32 %v179, 127
    %vm181 = vcmp.eq.s32.totalorder %v180, 7
    %v182 = vmul.f32 %v178, %v175
    %183 = vadd.xlane.f32.xlu0 %v182
    %v184 = vpop.xlane.xlu0 %183
    %v185 = vsel %vm181, %v184, %v175
    %s186 = scalar_lea.vmem [#allocation2], 8
    %v187 = vld [vmem:[%s186] ss:$0 sm:$0xff]
    %v188 = vxor.u32 %v187, 2147483648
    %v189 = vlaneseq
    %v190 = vand.u32 %v189, 127
    %vm191 = vcmp.eq.s32.totalorder %v190, 8
    %v192 = vmul.f32 %v188, %v185
    %193 = vadd.xlane.f32.xlu0 %v192
    %v194 = vpop.xlane.xlu0 %193
    %v195 = vsel %vm191, %v194, %v185
    %v196 = vmul.f32 %v188, %v115
    %197 = vadd.xlane.f32.xlu0 %v196
    %v198 = vpop.xlane.xlu0 %197
    %v199 = vsel %vm191, %v198, %v115
    %s200 = scalar_lea.vmem [#allocation2], 9
    %v201 = vld [vmem:[%s200] ss:$0 sm:$0xff]
    %v202 = vxor.u32 %v201, 2147483648
    %v203 = vlaneseq
    %v204 = vand.u32 %v203, 127
    %vm205 = vcmp.eq.s32.totalorder %v204, 9
    %v206 = vmul.f32 %v202, %v195
    %207 = vadd.xlane.f32.xlu0 %v206
    %v208 = vpop.xlane.xlu0 %207
    %v209 = vsel %vm205, %v208, %v195
    %v210 = vmul.f32 %v202, %v199
    %211 = vadd.xlane.f32.xlu0 %v210
    %v212 = vpop.xlane.xlu0 %211
    %v213 = vsel %vm205, %v212, %v199
    %s214 = scalar_lea.vmem [#allocation2], 10
    %v215 = vld [vmem:[%s214] ss:$0 sm:$0xff]
    %v216 = vxor.u32 %v215, 2147483648
    %v217 = vlaneseq
    %v218 = vand.u32 %v217, 127
    %vm219 = vcmp.eq.s32.totalorder %v218, 10
    %v220 = vmul.f32 %v216, %v209
    %221 = vadd.xlane.f32.xlu0 %v220
    %v222 = vpop.xlane.xlu0 %221
    %v223 = vsel %vm219, %v222, %v209
    %v224 = vmul.f32 %v216, %v213
    %225 = vadd.xlane.f32.xlu0 %v224
    %v226 = vpop.xlane.xlu0 %225
    %v227 = vsel %vm219, %v226, %v213
    %s228 = scalar_lea.vmem [#allocation2], 11
    %v229 = vld [vmem:[%s228] ss:$0 sm:$0xff]
    %v230 = vxor.u32 %v229, 2147483648
    %v231 = vlaneseq
    %v232 = vand.u32 %v231, 127
    %vm233 = vcmp.eq.s32.totalorder %v232, 11
    %v234 = vmul.f32 %v230, %v223
    %235 = vadd.xlane.f32.xlu0 %v234
    %v236 = vpop.xlane.xlu0 %235
    %v237 = vsel %vm233, %v236, %v223
    %v238 = vmul.f32 %v230, %v227
    %239 = vadd.xlane.f32.xlu0 %v238
    %v240 = vpop.xlane.xlu0 %239
    %v241 = vsel %vm233, %v240, %v227
    %s242 = scalar_lea.vmem [#allocation2], 12
    %v243 = vld [vmem:[%s242] ss:$0 sm:$0xff]
    %v244 = vxor.u32 %v243, 2147483648
    %v245 = vlaneseq
    %v246 = vand.u32 %v245, 127
    %vm247 = vcmp.eq.s32.totalorder %v246, 12
    %v248 = vmul.f32 %v244, %v237
    %249 = vadd.xlane.f32.xlu0 %v248
    %v250 = vpop.xlane.xlu0 %249
    %v251 = vsel %vm247, %v250, %v237
    %v252 = vmul.f32 %v244, %v241
    %253 = vadd.xlane.f32.xlu0 %v252
    %v254 = vpop.xlane.xlu0 %253
    %v255 = vsel %vm247, %v254, %v241
    %s256 = scalar_lea.vmem [#allocation2], 13
    %v257 = vld [vmem:[%s256] ss:$0 sm:$0xff]
    %v258 = vxor.u32 %v257, 2147483648
    %v259 = vlaneseq
    %v260 = vand.u32 %v259, 127
    %vm261 = vcmp.eq.s32.totalorder %v260, 13
    %v262 = vmul.f32 %v258, %v251
    %263 = vadd.xlane.f32.xlu0 %v262
    %v264 = vpop.xlane.xlu0 %263
    %v265 = vsel %vm261, %v264, %v251
    %v266 = vmul.f32 %v258, %v255
    %267 = vadd.xlane.f32.xlu0 %v266
    %v268 = vpop.xlane.xlu0 %267
    %v269 = vsel %vm261, %v268, %v255
    %s270 = scalar_lea.vmem [#allocation2], 14
    %v271 = vld [vmem:[%s270] ss:$0 sm:$0xff]
    %v272 = vxor.u32 %v271, 2147483648
    %v273 = vlaneseq
    %v274 = vand.u32 %v273, 127
    %vm275 = vcmp.eq.s32.totalorder %v274, 14
    %v276 = vmul.f32 %v272, %v265
    %277 = vadd.xlane.f32.xlu0 %v276
    %v278 = vpop.xlane.xlu0 %277
    %v279 = vsel %vm275, %v278, %v265
    %v280 = vmul.f32 %v272, %v269
    %281 = vadd.xlane.f32.xlu0 %v280
    %v282 = vpop.xlane.xlu0 %281
    %v283 = vsel %vm275, %v282, %v269
    %s284 = scalar_lea.vmem [#allocation2], 15
    %v285 = vld [vmem:[%s284] ss:$0 sm:$0xff]
    %v286 = vxor.u32 %v285, 2147483648
    %v287 = vlaneseq
    %v288 = vand.u32 %v287, 127
    %vm289 = vcmp.eq.s32.totalorder %v288, 15
    %v290 = vmul.f32 %v286, %v279
    %291 = vadd.xlane.f32.xlu0 %v290
    %v292 = vpop.xlane.xlu0 %291
    %v293 = vsel %vm289, %v292, %v279
    %v294 = vmul.f32 %v286, %v283
    %295 = vadd.xlane.f32.xlu0 %v294
    %v296 = vpop.xlane.xlu0 %295
    %v297 = vsel %vm289, %v296, %v283
    %v298 = vrcp.pop %v49
    %v299 = vmul.f32 %v49, %v298
    %v300 = vsub.f32 1.0, %v299
    %v301 = vmul.f32 %v298, %v300
    %v302 = vadd.f32 %v298, %v301
    %vm303 = vweird.f32 %v49
    %vm304 = vweird.f32 %v298
    %vm305 = vmor %vm303, %vm304
    %v306 = vsel %vm305, %v298, %v302
    %v307 = vand.u32 2147483647, %v49
    %vm308 = vcmp.eq.f32.partialorder %v307, 8.507059e+37
    %v309 = vand.u32 %v49, 2147483648
    %v310 = vor.u32 1.1754944e-38, %v309
    %v311 = vsel %vm308, %v310, %v306
    %v312 = vmul.f32 %v293, %v311
    %vm313 = vweird.f32 %v49
    %v314 = vsel %vm313, %v293, %v312
    %315 = vst [vmem:[#allocation1] sm:$0xff] %v314
    %v316 = vrcp.pop %v78
    %v317 = vmul.f32 %v78, %v316
    %v318 = vsub.f32 1.0, %v317
    %v319 = vmul.f32 %v316, %v318
    %v320 = vadd.f32 %v316, %v319
    %vm321 = vweird.f32 %v78
    %vm322 = vweird.f32 %v316
    %vm323 = vmor %vm321, %vm322
    %v324 = vsel %vm323, %v316, %v320
    %v325 = vand.u32 2147483647, %v78
    %vm326 = vcmp.eq.f32.partialorder %v325, 8.507059e+37
    %v327 = vand.u32 %v78, 2147483648
    %v328 = vor.u32 1.1754944e-38, %v327
    %v329 = vsel %vm326, %v328, %v324
    %v330 = vmul.f32 %v297, %v329
    %vm331 = vweird.f32 %v78
    %v332 = vsel %vm331, %v297, %v330
    %s333 = scalar_lea.vmem [#allocation1], 8
    %334 = vst [vmem:[%s333] sm:$0xff] %v332
    // Predicated region
    $region36: #{custom-call.15} parent=1 // pred_check
      _
    $region37: #{custom-call.15} parent=1 // pred_check_branch
      %336 = sbr.rel (0) target = $region39
    $region38: #{custom-call.15} parent=1 // pred_region
      // Predicated region
      $region40: #{custom-call.15} parent=38 // pred_check
        _
      $region41: #{custom-call.15} parent=38 // pred_check_branch
        %338 = sbr.rel (0) target = $region43
      $region42: #{custom-call.15} parent=38 // pred_region
        // Predicated region
        $region55: #{custom-call.15} parent=42 // pred_check
          _
        $region56: #{custom-call.15} parent=42 // pred_check_branch
          %356 = sbr.rel (0) target = $region58
        $region57: #{custom-call.15} parent=42 // pred_region
          loop: start=0, step=1, limit=1
          $region59: #{custom-call.15} parent=57 // loop_pre_header
            _
          $region60: #{custom-call.15} parent=57 // loop_header
            %s358 = sphi 0, %s362
            %p359 = scmp.ge.s32.totalorder %s358, 1
            %s363 = sphi [#allocation1], [#allocation1]
            %s364 = sphi %s1, %s1
          $region61: #{custom-call.15} parent=57 // loop_header_branch
            %361 = sbr.rel (%p359) target = $region65
          $region62: #{custom-call.15} parent=57 // loop_body
            %v365 = vld [vmem:[%s363] sm:$0xff]
            %366 = vst [vmem:[%s364] sm:$0xff] %v365
            %v367 = vld [vmem:[%s363 + $0x8] sm:$0xff]
            %368 = vst [vmem:[%s364 + $0x8] sm:$0xff] %v367
          $region63: #{custom-call.15} parent=57 // loop_footer
            %s362 = sadd.s32 1, %s358
          $region64: #{custom-call.15} parent=57 // loop_footer_branch
            %357 = sbr.rel target = $region60
          $region65: #{custom-call.15} parent=57 // loop_exit
            _
        $region58: #{custom-call.15} parent=42 // pred_fallthru
          _
        // Predicated region
        $region66: #{custom-call.15} parent=42 // pred_check
          _
        $region67: #{custom-call.15} parent=42 // pred_check_branch
          %370 = sbr.rel target = $region69
        $region68: #{custom-call.15} parent=42 // pred_region
          _
        $region69: #{custom-call.15} parent=42 // pred_fallthru
          _
      $region43: #{custom-call.15} parent=38 // pred_fallthru
        _
      // Predicated region
      $region44: #{custom-call.15} parent=38 // pred_check
        _
      $region45: #{custom-call.15} parent=38 // pred_check_branch
        %340 = sbr.rel target = $region47
      $region46: #{custom-call.15} parent=38 // pred_region
        %s342 = ssub.s32 256, 1
        loop: start=0, step=1, limit=1
        $region48: #{custom-call.15} parent=46 // loop_pre_header
          _
        $region49: #{custom-call.15} parent=46 // loop_header
          %s344 = sphi 0, %s348
          %p345 = scmp.ge.s32.totalorder %s344, 1
          %s349 = sphi [#allocation1], [#allocation1]
          %s350 = sphi %s1, %s1
        $region50: #{custom-call.15} parent=46 // loop_header_branch
          %347 = sbr.rel (%p345) target = $region54
        $region51: #{custom-call.15} parent=46 // loop_body
          %v351 = vld [vmem:[%s349] sm:%s342]
          %352 = vst [vmem:[%s350] sm:%s342] %v351
          %v353 = vld [vmem:[%s349 + $0x8] sm:%s342]
          %354 = vst [vmem:[%s350 + $0x8] sm:%s342] %v353
        $region52: #{custom-call.15} parent=46 // loop_footer
          %s348 = sadd.s32 1, %s344
        $region53: #{custom-call.15} parent=46 // loop_footer_branch
          %343 = sbr.rel target = $region49
        $region54: #{custom-call.15} parent=46 // loop_exit
          _
      $region47: #{custom-call.15} parent=38 // pred_fallthru
        _
    $region39: #{custom-call.15} parent=1 // pred_fallthru
      _
    %371 = vnop

// kernel: custom-call.14
$region0: #{custom-call.14}
  %s0 = inlined_call_operand.vmem [shape: f32[1,16,16], index: 0, kind: input, shape index: {}]
  %s1 = inlined_call_operand.vmem [shape: f32[1,16,16], index: 1, kind: output, shape index: {}]
  $region1: #{custom-call.14} parent=0
    #allocation0 [shape = 'u8[8192]{0}', space=vmem, size = 0x2000, scoped, tag = 'operand span for operand 0']
    #allocation1 [shape = 'u8[8192]{0}', space=vmem, size = 0x2000, scoped, tag = 'operand span for operand 1']
    #allocation2 [shape = 'f32[16,16]{1,0}', space=vmem, size = 0x2000, scoped, tag = 'rescaled input a']
    // Predicated region
    $region2: #{custom-call.14} parent=1 // pred_check
      _
    $region3: #{custom-call.14} parent=1 // pred_check_branch
      %3 = sbr.rel (0) target = $region5
    $region4: #{custom-call.14} parent=1 // pred_region
      // Predicated region
      $region6: #{custom-call.14} parent=4 // pred_check
        _
      $region7: #{custom-call.14} parent=4 // pred_check_branch
        %5 = sbr.rel (0) target = $region9
      $region8: #{custom-call.14} parent=4 // pred_region
        // Predicated region
        $region21: #{custom-call.14} parent=8 // pred_check
          _
        $region22: #{custom-call.14} parent=8 // pred_check_branch
          %23 = sbr.rel (0) target = $region24
        $region23: #{custom-call.14} parent=8 // pred_region
          loop: start=0, step=1, limit=1
          $region25: #{custom-call.14} parent=23 // loop_pre_header
            _
          $region26: #{custom-call.14} parent=23 // loop_header
            %s25 = sphi 0, %s29
            %p26 = scmp.ge.s32.totalorder %s25, 1
            %s30 = sphi %s0, %s0
            %s31 = sphi [#allocation0], [#allocation0]
          $region27: #{custom-call.14} parent=23 // loop_header_branch
            %28 = sbr.rel (%p26) target = $region31
          $region28: #{custom-call.14} parent=23 // loop_body
            %v32 = vld [vmem:[%s30] sm:$0xff]
            %33 = vst [vmem:[%s31] sm:$0xff] %v32
            %v34 = vld [vmem:[%s30 + $0x8] sm:$0xff]
            %35 = vst [vmem:[%s31 + $0x8] sm:$0xff] %v34
          $region29: #{custom-call.14} parent=23 // loop_footer
            %s29 = sadd.s32 1, %s25
          $region30: #{custom-call.14} parent=23 // loop_footer_branch
            %24 = sbr.rel target = $region26
          $region31: #{custom-call.14} parent=23 // loop_exit
            _
        $region24: #{custom-call.14} parent=8 // pred_fallthru
          _
        // Predicated region
        $region32: #{custom-call.14} parent=8 // pred_check
          _
        $region33: #{custom-call.14} parent=8 // pred_check_branch
          %37 = sbr.rel target = $region35
        $region34: #{custom-call.14} parent=8 // pred_region
          _
        $region35: #{custom-call.14} parent=8 // pred_fallthru
          _
      $region9: #{custom-call.14} parent=4 // pred_fallthru
        _
      // Predicated region
      $region10: #{custom-call.14} parent=4 // pred_check
        _
      $region11: #{custom-call.14} parent=4 // pred_check_branch
        %7 = sbr.rel target = $region13
      $region12: #{custom-call.14} parent=4 // pred_region
        %s9 = ssub.s32 256, 1
        loop: start=0, step=1, limit=1
        $region14: #{custom-call.14} parent=12 // loop_pre_header
          _
        $region15: #{custom-call.14} parent=12 // loop_header
          %s11 = sphi 0, %s15
          %p12 = scmp.ge.s32.totalorder %s11, 1
          %s16 = sphi %s0, %s0
          %s17 = sphi [#allocation0], [#allocation0]
        $region16: #{custom-call.14} parent=12 // loop_header_branch
          %14 = sbr.rel (%p12) target = $region20
        $region17: #{custom-call.14} parent=12 // loop_body
          %v18 = vld [vmem:[%s16] sm:%s9]
          %19 = vst [vmem:[%s17] sm:%s9] %v18
          %v20 = vld [vmem:[%s16 + $0x8] sm:%s9]
          %21 = vst [vmem:[%s17 + $0x8] sm:%s9] %v20
        $region18: #{custom-call.14} parent=12 // loop_footer
          %s15 = sadd.s32 1, %s11
        $region19: #{custom-call.14} parent=12 // loop_footer_branch
          %10 = sbr.rel target = $region15
        $region20: #{custom-call.14} parent=12 // loop_exit
          _
      $region13: #{custom-call.14} parent=4 // pred_fallthru
        _
    $region5: #{custom-call.14} parent=1 // pred_fallthru
      _
    %38 = vnop
    %v39 = vlaneseq
    %v40 = vand.u32 %v39, 127
    %vm41 = vcmp.lt.s32.totalorder %v40, 16
    %v42 = vlaneseq
    %v43 = vshrl.u32 %v42, 7
    %vm45 = vcmp.eq.s32.totalorder %v43, %v40
    %v46 = vld [vmem:[#allocation0] sm:$0xff]
    %v47 = vsel %vm45, %v46, 0.0
    %48 = vadd.xlane.f32.xlu0 %v47
    %v49 = vpop.xlane.xlu0 %48
    %vm50 = vcmp.le.s32.totalorder %v43, %v40
    %vm51 = vmand %vm50, %vm41
    %v52 = vsel %vm51, %v46, 0.0
    %v53 = vrcp.pop %v49
    %v54 = vmul.f32 %v49, %v53
    %v55 = vsub.f32 1.0, %v54
    %v56 = vmul.f32 %v53, %v55
    %v57 = vadd.f32 %v53, %v56
    %vm58 = vweird.f32 %v49
    %vm59 = vweird.f32 %v53
    %vm60 = vmor %vm58, %vm59
    %v61 = vsel %vm60, %v53, %v57
    %v62 = vand.u32 2147483647, %v49
    %vm63 = vcmp.eq.f32.partialorder %v62, 8.507059e+37
    %v64 = vand.u32 %v49, 2147483648
    %v65 = vor.u32 1.1754944e-38, %v64
    %v66 = vsel %vm63, %v65, %v61
    %v67 = vmul.f32 %v52, %v66
    %68 = vst [vmem:[#allocation2] sm:$0xff] %v67
    %s69 = scalar_lea.vmem [#allocation0], 8
    %s70 = scalar_lea.vmem [#allocation2], 8
    %v71 = vlaneseq
    %v72 = vshrl.u32 %v71, 7
    %v73 = vadd.s32 %v72, 8
    %vm74 = vcmp.eq.s32.totalorder %v73, %v40
    %v75 = vld [vmem:[%s69] sm:$0xff]
    %v76 = vsel %vm74, %v75, 0.0
    %77 = vadd.xlane.f32.xlu0 %v76
    %v78 = vpop.xlane.xlu0 %77
    %vm79 = vcmp.le.s32.totalorder %v73, %v40
    %vm80 = vmand %vm79, %vm41
    %v81 = vsel %vm80, %v75, 0.0
    %v82 = vrcp.pop %v78
    %v83 = vmul.f32 %v78, %v82
    %v84 = vsub.f32 1.0, %v83
    %v85 = vmul.f32 %v82, %v84
    %v86 = vadd.f32 %v82, %v85
    %vm87 = vweird.f32 %v78
    %vm88 = vweird.f32 %v82
    %vm89 = vmor %vm87, %vm88
    %v90 = vsel %vm89, %v82, %v86
    %v91 = vand.u32 2147483647, %v78
    %vm92 = vcmp.eq.f32.partialorder %v91, 8.507059e+37
    %v93 = vand.u32 %v78, 2147483648
    %v94 = vor.u32 1.1754944e-38, %v93
    %v95 = vsel %vm92, %v94, %v90
    %v96 = vmul.f32 %v81, %v95
    %97 = vst [vmem:[%s70] sm:$0xff] %v96
    %v98 = vlaneseq
    %v99 = vand.u32 %v98, 127
    %v100 = vlaneseq
    %v101 = vshrl.u32 %v100, 7
    %vm103 = vcmp.eq.s32.totalorder %v99, %v101
    %v104 = vsel %vm103, -1.0, 0.0
    %v105 = vlaneseq
    %v106 = vand.u32 %v105, 127
    %v107 = vlaneseq
    %v108 = vshrl.u32 %v107, 7
    %v109 = vadd.s32 %v108, 8
    %vm110 = vcmp.eq.s32.totalorder %v106, %v109
    %v111 = vlaneseq
    %v112 = vand.u32 %v111, 127
    %vm113 = vcmp.eq.s32.totalorder %v112, 15
    %v114 = vsel %vm113, 1.0, -1.0
    %v115 = vsel %vm110, %v114, 0.0
    %s116 = scalar_lea.vmem [#allocation2], 14
    %v117 = vld [vmem:[%s116] ss:$0 sm:$0xff]
    %v118 = vxor.u32 %v117, 2147483648
    %v119 = vlaneseq
    %v120 = vand.u32 %v119, 127
    %vm121 = vcmp.eq.s32.totalorder %v120, 14
    %v122 = vmul.f32 %v118, %v115
    %123 = vadd.xlane.f32.xlu0 %v122
    %v124 = vpop.xlane.xlu0 %123
    %v125 = vsel %vm121, %v124, %v115
    %s126 = scalar_lea.vmem [#allocation2], 13
    %v127 = vld [vmem:[%s126] ss:$0 sm:$0xff]
    %v128 = vxor.u32 %v127, 2147483648
    %v129 = vlaneseq
    %v130 = vand.u32 %v129, 127
    %vm131 = vcmp.eq.s32.totalorder %v130, 13
    %v132 = vmul.f32 %v128, %v125
    %133 = vadd.xlane.f32.xlu0 %v132
    %v134 = vpop.xlane.xlu0 %133
    %v135 = vsel %vm131, %v134, %v125
    %s136 = scalar_lea.vmem [#allocation2], 12
    %v137 = vld [vmem:[%s136] ss:$0 sm:$0xff]
    %v138 = vxor.u32 %v137, 2147483648
    %v139 = vlaneseq
    %v140 = vand.u32 %v139, 127
    %vm141 = vcmp.eq.s32.totalorder %v140, 12
    %v142 = vmul.f32 %v138, %v135
    %143 = vadd.xlane.f32.xlu0 %v142
    %v144 = vpop.xlane.xlu0 %143
    %v145 = vsel %vm141, %v144, %v135
    %s146 = scalar_lea.vmem [#allocation2], 11
    %v147 = vld [vmem:[%s146] ss:$0 sm:$0xff]
    %v148 = vxor.u32 %v147, 2147483648
    %v149 = vlaneseq
    %v150 = vand.u32 %v149, 127
    %vm151 = vcmp.eq.s32.totalorder %v150, 11
    %v152 = vmul.f32 %v148, %v145
    %153 = vadd.xlane.f32.xlu0 %v152
    %v154 = vpop.xlane.xlu0 %153
    %v155 = vsel %vm151, %v154, %v145
    %s156 = scalar_lea.vmem [#allocation2], 10
    %v157 = vld [vmem:[%s156] ss:$0 sm:$0xff]
    %v158 = vxor.u32 %v157, 2147483648
    %v159 = vlaneseq
    %v160 = vand.u32 %v159, 127
    %vm161 = vcmp.eq.s32.totalorder %v160, 10
    %v162 = vmul.f32 %v158, %v155
    %163 = vadd.xlane.f32.xlu0 %v162
    %v164 = vpop.xlane.xlu0 %163
    %v165 = vsel %vm161, %v164, %v155
    %s166 = scalar_lea.vmem [#allocation2], 9
    %v167 = vld [vmem:[%s166] ss:$0 sm:$0xff]
    %v168 = vxor.u32 %v167, 2147483648
    %v169 = vlaneseq
    %v170 = vand.u32 %v169, 127
    %vm171 = vcmp.eq.s32.totalorder %v170, 9
    %v172 = vmul.f32 %v168, %v165
    %173 = vadd.xlane.f32.xlu0 %v172
    %v174 = vpop.xlane.xlu0 %173
    %v175 = vsel %vm171, %v174, %v165
    %s176 = scalar_lea.vmem [#allocation2], 8
    %v177 = vld [vmem:[%s176] ss:$0 sm:$0xff]
    %v178 = vxor.u32 %v177, 2147483648
    %v179 = vlaneseq
    %v180 = vand.u32 %v179, 127
    %vm181 = vcmp.eq.s32.totalorder %v180, 8
    %v182 = vmul.f32 %v178, %v175
    %183 = vadd.xlane.f32.xlu0 %v182
    %v184 = vpop.xlane.xlu0 %183
    %v185 = vsel %vm181, %v184, %v175
    %s186 = scalar_lea.vmem [#allocation2], 7
    %v187 = vld [vmem:[%s186] ss:$0 sm:$0xff]
    %v188 = vxor.u32 %v187, 2147483648
    %v189 = vlaneseq
    %v190 = vand.u32 %v189, 127
    %vm191 = vcmp.eq.s32.totalorder %v190, 7
    %v192 = vmul.f32 %v188, %v104
    %193 = vadd.xlane.f32.xlu0 %v192
    %v194 = vpop.xlane.xlu0 %193
    %v195 = vsel %vm191, %v194, %v104
    %v196 = vmul.f32 %v188, %v185
    %197 = vadd.xlane.f32.xlu0 %v196
    %v198 = vpop.xlane.xlu0 %197
    %v199 = vsel %vm191, %v198, %v185
    %s200 = scalar_lea.vmem [#allocation2], 6
    %v201 = vld [vmem:[%s200] ss:$0 sm:$0xff]
    %v202 = vxor.u32 %v201, 2147483648
    %v203 = vlaneseq
    %v204 = vand.u32 %v203, 127
    %vm205 = vcmp.eq.s32.totalorder %v204, 6
    %v206 = vmul.f32 %v202, %v195
    %207 = vadd.xlane.f32.xlu0 %v206
    %v208 = vpop.xlane.xlu0 %207
    %v209 = vsel %vm205, %v208, %v195
    %v210 = vmul.f32 %v202, %v199
    %211 = vadd.xlane.f32.xlu0 %v210
    %v212 = vpop.xlane.xlu0 %211
    %v213 = vsel %vm205, %v212, %v199
    %s214 = scalar_lea.vmem [#allocation2], 5
    %v215 = vld [vmem:[%s214] ss:$0 sm:$0xff]
    %v216 = vxor.u32 %v215, 2147483648
    %v217 = vlaneseq
    %v218 = vand.u32 %v217, 127
    %vm219 = vcmp.eq.s32.totalorder %v218, 5
    %v220 = vmul.f32 %v216, %v209
    %221 = vadd.xlane.f32.xlu0 %v220
    %v222 = vpop.xlane.xlu0 %221
    %v223 = vsel %vm219, %v222, %v209
    %v224 = vmul.f32 %v216, %v213
    %225 = vadd.xlane.f32.xlu0 %v224
    %v226 = vpop.xlane.xlu0 %225
    %v227 = vsel %vm219, %v226, %v213
    %s228 = scalar_lea.vmem [#allocation2], 4
    %v229 = vld [vmem:[%s228] ss:$0 sm:$0xff]
    %v230 = vxor.u32 %v229, 2147483648
    %v231 = vlaneseq
    %v232 = vand.u32 %v231, 127
    %vm233 = vcmp.eq.s32.totalorder %v232, 4
    %v234 = vmul.f32 %v230, %v223
    %235 = vadd.xlane.f32.xlu0 %v234
    %v236 = vpop.xlane.xlu0 %235
    %v237 = vsel %vm233, %v236, %v223
    %v238 = vmul.f32 %v230, %v227
    %239 = vadd.xlane.f32.xlu0 %v238
    %v240 = vpop.xlane.xlu0 %239
    %v241 = vsel %vm233, %v240, %v227
    %s242 = scalar_lea.vmem [#allocation2], 3
    %v243 = vld [vmem:[%s242] ss:$0 sm:$0xff]
    %v244 = vxor.u32 %v243, 2147483648
    %v245 = vlaneseq
    %v246 = vand.u32 %v245, 127
    %vm247 = vcmp.eq.s32.totalorder %v246, 3
    %v248 = vmul.f32 %v244, %v237
    %249 = vadd.xlane.f32.xlu0 %v248
    %v250 = vpop.xlane.xlu0 %249
    %v251 = vsel %vm247, %v250, %v237
    %v252 = vmul.f32 %v244, %v241
    %253 = vadd.xlane.f32.xlu0 %v252
    %v254 = vpop.xlane.xlu0 %253
    %v255 = vsel %vm247, %v254, %v241
    %s256 = scalar_lea.vmem [#allocation2], 2
    %v257 = vld [vmem:[%s256] ss:$0 sm:$0xff]
    %v258 = vxor.u32 %v257, 2147483648
    %v259 = vlaneseq
    %v260 = vand.u32 %v259, 127
    %vm261 = vcmp.eq.s32.totalorder %v260, 2
    %v262 = vmul.f32 %v258, %v251
    %263 = vadd.xlane.f32.xlu0 %v262
    %v264 = vpop.xlane.xlu0 %263
    %v265 = vsel %vm261, %v264, %v251
    %v266 = vmul.f32 %v258, %v255
    %267 = vadd.xlane.f32.xlu0 %v266
    %v268 = vpop.xlane.xlu0 %267
    %v269 = vsel %vm261, %v268, %v255
    %s270 = scalar_lea.vmem [#allocation2], 1
    %v271 = vld [vmem:[%s270] ss:$0 sm:$0xff]
    %v272 = vxor.u32 %v271, 2147483648
    %v273 = vlaneseq
    %v274 = vand.u32 %v273, 127
    %vm275 = vcmp.eq.s32.totalorder %v274, 1
    %v276 = vmul.f32 %v272, %v265
    %277 = vadd.xlane.f32.xlu0 %v276
    %v278 = vpop.xlane.xlu0 %277
    %v279 = vsel %vm275, %v278, %v265
    %v280 = vmul.f32 %v272, %v269
    %281 = vadd.xlane.f32.xlu0 %v280
    %v282 = vpop.xlane.xlu0 %281
    %v283 = vsel %vm275, %v282, %v269
    %v284 = vld [vmem:[#allocation2] ss:$0 sm:$0xff]
    %v285 = vxor.u32 %v284, 2147483648
    %v286 = vlaneseq
    %v287 = vand.u32 %v286, 127
    %vm288 = vcmp.eq.s32.totalorder %v287, 0
    %v289 = vmul.f32 %v285, %v279
    %290 = vadd.xlane.f32.xlu0 %v289
    %v291 = vpop.xlane.xlu0 %290
    %v292 = vsel %vm288, %v291, %v279
    %v293 = vmul.f32 %v285, %v283
    %294 = vadd.xlane.f32.xlu0 %v293
    %v295 = vpop.xlane.xlu0 %294
    %v296 = vsel %vm288, %v295, %v283
    %v297 = vrcp.pop %v49
    %v298 = vmul.f32 %v49, %v297
    %v299 = vsub.f32 1.0, %v298
    %v300 = vmul.f32 %v297, %v299
    %v301 = vadd.f32 %v297, %v300
    %vm302 = vweird.f32 %v49
    %vm303 = vweird.f32 %v297
    %vm304 = vmor %vm302, %vm303
    %v305 = vsel %vm304, %v297, %v301
    %v306 = vand.u32 2147483647, %v49
    %vm307 = vcmp.eq.f32.partialorder %v306, 8.507059e+37
    %v308 = vand.u32 %v49, 2147483648
    %v309 = vor.u32 1.1754944e-38, %v308
    %v310 = vsel %vm307, %v309, %v305
    %v311 = vmul.f32 %v292, %v310
    %vm312 = vweird.f32 %v49
    %v313 = vsel %vm312, %v292, %v311
    %314 = vst [vmem:[#allocation1] sm:$0xff] %v313
    %v315 = vrcp.pop %v78
    %v316 = vmul.f32 %v78, %v315
    %v317 = vsub.f32 1.0, %v316
    %v318 = vmul.f32 %v315, %v317
    %v319 = vadd.f32 %v315, %v318
    %vm320 = vweird.f32 %v78
    %vm321 = vweird.f32 %v315
    %vm322 = vmor %vm320, %vm321
    %v323 = vsel %vm322, %v315, %v319
    %v324 = vand.u32 2147483647, %v78
    %vm325 = vcmp.eq.f32.partialorder %v324, 8.507059e+37
    %v326 = vand.u32 %v78, 2147483648
    %v327 = vor.u32 1.1754944e-38, %v326
    %v328 = vsel %vm325, %v327, %v323
    %v329 = vmul.f32 %v296, %v328
    %vm330 = vweird.f32 %v78
    %v331 = vsel %vm330, %v296, %v329
    %s332 = scalar_lea.vmem [#allocation1], 8
    %333 = vst [vmem:[%s332] sm:$0xff] %v331
    // Predicated region
    $region36: #{custom-call.14} parent=1 // pred_check
      _
    $region37: #{custom-call.14} parent=1 // pred_check_branch
      %335 = sbr.rel (0) target = $region39
    $region38: #{custom-call.14} parent=1 // pred_region
      // Predicated region
      $region40: #{custom-call.14} parent=38 // pred_check
        _
      $region41: #{custom-call.14} parent=38 // pred_check_branch
        %337 = sbr.rel (0) target = $region43
      $region42: #{custom-call.14} parent=38 // pred_region
        // Predicated region
        $region55: #{custom-call.14} parent=42 // pred_check
          _
        $region56: #{custom-call.14} parent=42 // pred_check_branch
          %355 = sbr.rel (0) target = $region58
        $region57: #{custom-call.14} parent=42 // pred_region
          loop: start=0, step=1, limit=1
          $region59: #{custom-call.14} parent=57 // loop_pre_header
            _
          $region60: #{custom-call.14} parent=57 // loop_header
            %s357 = sphi 0, %s361
            %p358 = scmp.ge.s32.totalorder %s357, 1
            %s362 = sphi [#allocation1], [#allocation1]
            %s363 = sphi %s1, %s1
          $region61: #{custom-call.14} parent=57 // loop_header_branch
            %360 = sbr.rel (%p358) target = $region65
          $region62: #{custom-call.14} parent=57 // loop_body
            %v364 = vld [vmem:[%s362] sm:$0xff]
            %365 = vst [vmem:[%s363] sm:$0xff] %v364
            %v366 = vld [vmem:[%s362 + $0x8] sm:$0xff]
            %367 = vst [vmem:[%s363 + $0x8] sm:$0xff] %v366
          $region63: #{custom-call.14} parent=57 // loop_footer
            %s361 = sadd.s32 1, %s357
          $region64: #{custom-call.14} parent=57 // loop_footer_branch
            %356 = sbr.rel target = $region60
          $region65: #{custom-call.14} parent=57 // loop_exit
            _
        $region58: #{custom-call.14} parent=42 // pred_fallthru
          _
        // Predicated region
        $region66: #{custom-call.14} parent=42 // pred_check
          _
        $region67: #{custom-call.14} parent=42 // pred_check_branch
          %369 = sbr.rel target = $region69
        $region68: #{custom-call.14} parent=42 // pred_region
          _
        $region69: #{custom-call.14} parent=42 // pred_fallthru
          _
      $region43: #{custom-call.14} parent=38 // pred_fallthru
        _
      // Predicated region
      $region44: #{custom-call.14} parent=38 // pred_check
        _
      $region45: #{custom-call.14} parent=38 // pred_check_branch
        %339 = sbr.rel target = $region47
      $region46: #{custom-call.14} parent=38 // pred_region
        %s341 = ssub.s32 256, 1
        loop: start=0, step=1, limit=1
        $region48: #{custom-call.14} parent=46 // loop_pre_header
          _
        $region49: #{custom-call.14} parent=46 // loop_header
          %s343 = sphi 0, %s347
          %p344 = scmp.ge.s32.totalorder %s343, 1
          %s348 = sphi [#allocation1], [#allocation1]
          %s349 = sphi %s1, %s1
        $region50: #{custom-call.14} parent=46 // loop_header_branch
          %346 = sbr.rel (%p344) target = $region54
        $region51: #{custom-call.14} parent=46 // loop_body
          %v350 = vld [vmem:[%s348] sm:%s341]
          %351 = vst [vmem:[%s349] sm:%s341] %v350
          %v352 = vld [vmem:[%s348 + $0x8] sm:%s341]
          %353 = vst [vmem:[%s349 + $0x8] sm:%s341] %v352
        $region52: #{custom-call.14} parent=46 // loop_footer
          %s347 = sadd.s32 1, %s343
        $region53: #{custom-call.14} parent=46 // loop_footer_branch
          %342 = sbr.rel target = $region49
        $region54: #{custom-call.14} parent=46 // loop_exit
          _
      $region47: #{custom-call.14} parent=38 // pred_fallthru
        _
    $region39: #{custom-call.14} parent=1 // pred_fallthru
      _
    %370 = vnop

// kernel: iso_transform_forward.4
$region0: #{iso_transform_forward.4}
  #allocation0 [shape = 'u32[]', space=smem, size = 0x4, offset = 0x4, fixed_abs, tag = 'smem constant byte address 0x4 - core index']
  #allocation1 [shape = 'u32[72,128]{1,0:T(1,128)}', space=vmem, size = 0x9000, scoped, tag = 'internal scratch']
  %s0 = inlined_call_operand.hbm [shape: f32[16,32], index: 0, kind: input, shape index: {}]
  %s1 = inlined_call_operand.vmem [shape: f32[16,16], index: 1, kind: output, shape index: {}]
  %s2 = sld [smem:[#allocation0]]
  $region18: #{iso_transform_forward.4} parent=0
    _
  %s4 = ssub.s32 1, %s2
  %s5 = scalar_select 0, %s4, %s2
  $region1: #{iso_transform_forward.4} parent=0
    #allocation2 [shape = 'u8[8192]{0}', space=vmem, size = 0x2000, scoped, tag = 'input window, operand 0, single buffered']
    #allocation3 [shape = 's32[1]{0}', space=sflag, size = 0x4, scoped, tag = 'scoped memory for iso_transform_forward.4']
    %6 = vsyncpa [#allocation3], 0
    // Predicated region
    $region2: #{iso_transform_forward.4} parent=1 // pred_check
      _
    $region3: #{iso_transform_forward.4} parent=1 // pred_check_branch
      %8 = sbr.rel (0) target = $region5
    $region4: #{iso_transform_forward.4} parent=1 // pred_region
      %10 = vsyncadd [#allocation3], 0
      %s11 = sshll.u32 %s0, 4
      %s12 = int_to_ptr.hbm [resolvable:$true] %s11
      %s13 = sshll.u32 [#allocation2], 4
      %s14 = int_to_ptr.vmem [resolvable:$true] %s13
      %19 = dma.hbm_to_vmem [thread:$0]  %s12, 256, %s14, [#allocation3], 128, 128, 8
    $region5: #{iso_transform_forward.4} parent=1 // pred_fallthru
      _
    // Predicated region
    $region6: #{iso_transform_forward.4} parent=1 // pred_check
      _
    $region7: #{iso_transform_forward.4} parent=1 // pred_check_branch
      %21 = sbr.rel (0) target = $region9
    $region8: #{iso_transform_forward.4} parent=1 // pred_region
      %23 = dma.done [#allocation3], 256
    $region9: #{iso_transform_forward.4} parent=1 // pred_fallthru
      _
    %v24 = vld [vmem:[#allocation2] sm:$0xff]
    %v25 = vld [vmem:[#allocation2 + $0x8] sm:$0xff]
    %vm26 = vcmask 261120
    %v28 = vsel %vm26, %v24, 0
    %v31 = vsel %vm26, %v25, 0
    %33 = vmatpush.xpose.msra.mxu0 0.0
    %34 = vmatpush.xpose.msra.mxu0 0.0
    %35 = vmatpush.xpose.msra.mxu0 0.0
    %36 = vmatpush.xpose.msra.mxu0 0.0
    %37 = vmatpush.xpose.msra.mxu0 0.0
    %38 = vmatpush.xpose.msra.mxu0 0.0
    %39 = vmatpush.xpose.msra.mxu0 0.0
    %40 = vmatpush.xpose.msra.mxu0 0.0
    %41 = vmatpush.xpose.msra.mxu0 0.0
    %42 = vmatpush.xpose.msra.mxu0 0.0
    %43 = vmatpush.xpose.msra.mxu0 0.0
    %44 = vmatpush.xpose.msra.mxu0 0.0
    %45 = vmatpush.xpose.msra.mxu0 0.0
    %46 = vmatpush.xpose.msra.mxu0 0.0
    %47 = vmatpush.xpose.msra.mxu0 %v31
    %48 = vmatpush.xpose.msra.mxu0 %v28
    %49 = vmatmul.f32.gmra.mxu0 %v28
    %v50 = vpop.f32.mrf.mxu0
    %v51 = vadd.f32 0.0, %v50
    %52 = vmatmul.f32.gmra.mxu0 %v31
    %v53 = vpop.f32.mrf.mxu0
    %v54 = vadd.f32 0.0, %v53
    %55 = vdwg.mxu0
    %vm56 = vcmask 130048
    %57 = vst.msk [vmem:[%s1] sm:$0xff] %vm56, %v51
    %58 = vst.msk [vmem:[%s1 + $0x8] sm:$0xff] %vm56, %v54
    // Predicated region
    $region10: #{iso_transform_forward.4} parent=1 // pred_check
      _
    $region11: #{iso_transform_forward.4} parent=1 // pred_check_branch
      %60 = sbr.rel (0) target = $region13
    $region12: #{iso_transform_forward.4} parent=1 // pred_region
      _
    $region13: #{iso_transform_forward.4} parent=1 // pred_fallthru
      _
    // Predicated region
    $region14: #{iso_transform_forward.4} parent=1 // pred_check
      _
    $region15: #{iso_transform_forward.4} parent=1 // pred_check_branch
      %62 = sbr.rel (0) target = $region17
    $region16: #{iso_transform_forward.4} parent=1 // pred_region
      _
    $region17: #{iso_transform_forward.4} parent=1 // pred_fallthru
      _
    %63 = vsyncpa [#allocation3], 1

// kernel: custom-call.16
$region0: #{custom-call.16}
  %s0 = inlined_call_operand.vmem [shape: f32[8,8], index: 0, kind: input, shape index: {}]
  %s1 = inlined_call_operand.vmem [shape: f32[8,8], index: 1, kind: input, shape index: {}]
  %s2 = inlined_call_operand.vmem [shape: f32[8,8], index: 2, kind: input, shape index: {}]
  %s3 = inlined_call_operand.vmem [shape: f32[8,8], index: 3, kind: input, shape index: {}]
  %s4 = inlined_call_operand.vmem [shape: f32[8], index: 4, kind: output, shape index: {0}]
  %s5 = inlined_call_operand.vmem [shape: f32[8], index: 5, kind: output, shape index: {1}]
  %s6 = inlined_call_operand.vmem [shape: f32[8,8], index: 6, kind: output, shape index: {2}]
  %s7 = inlined_call_operand.vmem [shape: f32[8,8], index: 7, kind: output, shape index: {3}]
  %s8 = inlined_call_operand.vmem [shape: f32[8,8], index: 8, kind: output, shape index: {4}]
  %s9 = inlined_call_operand.vmem [shape: f32[8,8], index: 9, kind: output, shape index: {5}]
  %10 = xla_tuple %s4, %s5, %s6, %s7, %s8, %s9
  $region1: #{custom-call.16} parent=0
    #allocation0 [shape = 'u8[4096]{0}', space=vmem, size = 0x1000, scoped, tag = 'operand span for operand 0']
    #allocation1 [shape = 'u8[4096]{0}', space=vmem, size = 0x1000, scoped, tag = 'operand span for operand 1']
    #allocation2 [shape = 'u8[4096]{0}', space=vmem, size = 0x1000, scoped, tag = 'operand span for operand 2']
    #allocation3 [shape = 'u8[4096]{0}', space=vmem, size = 0x1000, scoped, tag = 'operand span for operand 3']
    #allocation4 [shape = 'u8[4096]{0}', space=vmem, size = 0x1000, scoped, tag = 'operand span for operand 4']
    #allocation5 [shape = 'u8[512]{0}', space=vmem, size = 0x400, scoped, tag = 'packed  for operand 4']
    #allocation6 [shape = 'u8[4096]{0}', space=vmem, size = 0x1000, scoped, tag = 'operand span for operand 5']
    #allocation7 [shape = 'u8[512]{0}', space=vmem, size = 0x400, scoped, tag = 'packed  for operand 5']
    #allocation8 [shape = 'u8[4096]{0}', space=vmem, size = 0x1000, scoped, tag = 'operand span for operand 6']
    #allocation9 [shape = 'u8[4096]{0}', space=vmem, size = 0x1000, scoped, tag = 'operand span for operand 7']
    #allocation10 [shape = 'u8[4096]{0}', space=vmem, size = 0x1000, scoped, tag = 'operand span for operand 8']
    #allocation11 [shape = 'u8[4096]{0}', space=vmem, size = 0x1000, scoped, tag = 'operand span for operand 9']
    #allocation12 [shape = 'f32[8,8]{1,0}', space=vmem, size = 0x1000, scoped, tag = 'a top-left matrix']
    #allocation13 [shape = 'f32[8,8]{1,0}', space=vmem, size = 0x1000, scoped, tag = 'a top-right matrix']
    #allocation14 [shape = 'f32[8,8]{1,0}', space=vmem, size = 0x1000, scoped, tag = 'a bottom-left matrix']
    #allocation15 [shape = 'f32[8,8]{1,0}', space=vmem, size = 0x1000, scoped, tag = 'a bottom-right matrix']
    // Predicated region
    $region2: #{custom-call.16} parent=1 // pred_check
      _
    $region3: #{custom-call.16} parent=1 // pred_check_branch
      %12 = sbr.rel (0) target = $region5
    $region4: #{custom-call.16} parent=1 // pred_region
      %p14 = scmp.gt.s32.totalorder 1, 0
      // Predicated region
      $region6: #{custom-call.16} parent=4 // pred_check
        %p15 = pneg %p14
      $region7: #{custom-call.16} parent=4 // pred_check_branch
        %17 = sbr.rel (%p15) target = $region9
      $region8: #{custom-call.16} parent=4 // pred_region
        %s18 = ssub.s32 1, 1
        %s19 = smul.u32 %s18, 8
        %s20 = scalar_lea.vmem %s0, %s19
        %v21 = vld [vmem:[%s0] sm:$0xff]
        // While loop
        $region10: #{custom-call.16} parent=8 // loop_pre_header
          _
        $region11: #{custom-call.16} parent=8 // loop_header
          %s22 = sphi %s0, %s44
          %s23 = sphi [#allocation0], %s45
          %v24 = vphi %v21, %v46
          %s25 = ssub.s32 %s20, 64
          %p26 = scmp.gt.s32.totalorder %s22, %s25
        $region12: #{custom-call.16} parent=8 // loop_header_branch
          %28 = sbr.rel (%p26) target = $region16
        $region13: #{custom-call.16} parent=8 // loop_body
          %29 = vst [vmem:[%s23] sm:$0xff] %v24
          %v30 = vld [vmem:[%s22 + $0x8] sm:$0xff]
          %31 = vst [vmem:[%s23 + $0x8] sm:$0xff] %v30
          %v32 = vld [vmem:[%s22 + $0x10] sm:$0xff]
          %33 = vst [vmem:[%s23 + $0x10] sm:$0xff] %v32
          %v34 = vld [vmem:[%s22 + $0x18] sm:$0xff]
          %35 = vst [vmem:[%s23 + $0x18] sm:$0xff] %v34
          %v36 = vld [vmem:[%s22 + $0x20] sm:$0xff]
          %37 = vst [vmem:[%s23 + $0x20] sm:$0xff] %v36
          %v38 = vld [vmem:[%s22 + $0x28] sm:$0xff]
          %39 = vst [vmem:[%s23 + $0x28] sm:$0xff] %v38
          %v40 = vld [vmem:[%s22 + $0x30] sm:$0xff]
          %41 = vst [vmem:[%s23 + $0x30] sm:$0xff] %v40
          %v42 = vld [vmem:[%s22 + $0x38] sm:$0xff]
          %43 = vst [vmem:[%s23 + $0x38] sm:$0xff] %v42
        $region14: #{custom-call.16} parent=8 // loop_footer
          %s44 = scalar_lea.vmem %s22, 64
          %s45 = scalar_lea.vmem %s23, 64
          %v46 = vld [vmem:[%s22 + $0x40] sm:$0xff]
        $region15: #{custom-call.16} parent=8 // loop_footer_branch
          %47 = sbr.rel target = $region11
        $region16: #{custom-call.16} parent=8 // loop_exit
          _
        // While loop
        $region17: #{custom-call.16} parent=8 // loop_pre_header
          _
        $region18: #{custom-call.16} parent=8 // loop_header
          %s48 = sphi %s22, %s56
          %s49 = sphi %s23, %s57
          %v50 = vphi %v24, %v50
          %p51 = scmp.gt.s32.totalorder %s48, %s20
        $region19: #{custom-call.16} parent=8 // loop_header_branch
          %53 = sbr.rel (%p51) target = $region23
        $region20: #{custom-call.16} parent=8 // loop_body
          %v54 = vld [vmem:[%s48] sm:$0xff]
          %55 = vst [vmem:[%s49] sm:$0xff] %v54
        $region21: #{custom-call.16} parent=8 // loop_footer
          %s56 = scalar_lea.vmem %s48, 8
          %s57 = scalar_lea.vmem %s49, 8
        $region22: #{custom-call.16} parent=8 // loop_footer_branch
          %58 = sbr.rel target = $region18
        $region23: #{custom-call.16} parent=8 // loop_exit
          _
      $region9: #{custom-call.16} parent=4 // pred_fallthru
        _
      %s60 = ssub.s32 1, 1
      %s61 = smul.u32 1, 8
      %s62 = scalar_lea.vmem [#allocation0], %s61
      %s63 = smul.u32 1, 8
      %s64 = scalar_lea.vmem %s0, %s63
      %v65 = vld [vmem:[%s64] sm:%s60]
      %66 = vst [vmem:[%s62] sm:%s60] %v65
    $region5: #{custom-call.16} parent=1 // pred_fallthru
      _
    // Predicated region
    $region24: #{custom-call.16} parent=1 // pred_check
      _
    $region25: #{custom-call.16} parent=1 // pred_check_branch
      %68 = sbr.rel (0) target = $region27
    $region26: #{custom-call.16} parent=1 // pred_region
      %p70 = scmp.gt.s32.totalorder 1, 0
      // Predicated region
      $region28: #{custom-call.16} parent=26 // pred_check
        %p71 = pneg %p70
      $region29: #{custom-call.16} parent=26 // pred_check_branch
        %73 = sbr.rel (%p71) target = $region31
      $region30: #{custom-call.16} parent=26 // pred_region
        %s74 = ssub.s32 1, 1
        %s75 = smul.u32 %s74, 8
        %s76 = scalar_lea.vmem %s1, %s75
        %v77 = vld [vmem:[%s1] sm:$0xff]
        // While loop
        $region32: #{custom-call.16} parent=30 // loop_pre_header
          _
        $region33: #{custom-call.16} parent=30 // loop_header
          %s78 = sphi %s1, %s100
          %s79 = sphi [#allocation1], %s101
          %v80 = vphi %v77, %v102
          %s81 = ssub.s32 %s76, 64
          %p82 = scmp.gt.s32.totalorder %s78, %s81
        $region34: #{custom-call.16} parent=30 // loop_header_branch
          %84 = sbr.rel (%p82) target = $region38
        $region35: #{custom-call.16} parent=30 // loop_body
          %85 = vst [vmem:[%s79] sm:$0xff] %v80
          %v86 = vld [vmem:[%s78 + $0x8] sm:$0xff]
          %87 = vst [vmem:[%s79 + $0x8] sm:$0xff] %v86
          %v88 = vld [vmem:[%s78 + $0x10] sm:$0xff]
          %89 = vst [vmem:[%s79 + $0x10] sm:$0xff] %v88
          %v90 = vld [vmem:[%s78 + $0x18] sm:$0xff]
          %91 = vst [vmem:[%s79 + $0x18] sm:$0xff] %v90
          %v92 = vld [vmem:[%s78 + $0x20] sm:$0xff]
          %93 = vst [vmem:[%s79 + $0x20] sm:$0xff] %v92
          %v94 = vld [vmem:[%s78 + $0x28] sm:$0xff]
          %95 = vst [vmem:[%s79 + $0x28] sm:$0xff] %v94
          %v96 = vld [vmem:[%s78 + $0x30] sm:$0xff]
          %97 = vst [vmem:[%s79 + $0x30] sm:$0xff] %v96
          %v98 = vld [vmem:[%s78 + $0x38] sm:$0xff]
          %99 = vst [vmem:[%s79 + $0x38] sm:$0xff] %v98
        $region36: #{custom-call.16} parent=30 // loop_footer
          %s100 = scalar_lea.vmem %s78, 64
          %s101 = scalar_lea.vmem %s79, 64
          %v102 = vld [vmem:[%s78 + $0x40] sm:$0xff]
        $region37: #{custom-call.16} parent=30 // loop_footer_branch
          %103 = sbr.rel target = $region33
        $region38: #{custom-call.16} parent=30 // loop_exit
          _
        // While loop
        $region39: #{custom-call.16} parent=30 // loop_pre_header
          _
        $region40: #{custom-call.16} parent=30 // loop_header
          %s104 = sphi %s78, %s112
          %s105 = sphi %s79, %s113
          %v106 = vphi %v80, %v106
          %p107 = scmp.gt.s32.totalorder %s104, %s76
        $region41: #{custom-call.16} parent=30 // loop_header_branch
          %109 = sbr.rel (%p107) target = $region45
        $region42: #{custom-call.16} parent=30 // loop_body
          %v110 = vld [vmem:[%s104] sm:$0xff]
          %111 = vst [vmem:[%s105] sm:$0xff] %v110
        $region43: #{custom-call.16} parent=30 // loop_footer
          %s112 = scalar_lea.vmem %s104, 8
          %s113 = scalar_lea.vmem %s105, 8
        $region44: #{custom-call.16} parent=30 // loop_footer_branch
          %114 = sbr.rel target = $region40
        $region45: #{custom-call.16} parent=30 // loop_exit
          _
      $region31: #{custom-call.16} parent=26 // pred_fallthru
        _
      %s116 = ssub.s32 1, 1
      %s117 = smul.u32 1, 8
      %s118 = scalar_lea.vmem [#allocation1], %s117
      %s119 = smul.u32 1, 8
      %s120 = scalar_lea.vmem %s1, %s119
      %v121 = vld [vmem:[%s120] sm:%s116]
      %122 = vst [vmem:[%s118] sm:%s116] %v121
    $region27: #{custom-call.16} parent=1 // pred_fallthru
      _
    // Predicated region
    $region46: #{custom-call.16} parent=1 // pred_check
      _
    $region47: #{custom-call.16} parent=1 // pred_check_branch
      %124 = sbr.rel (0) target = $region49
    $region48: #{custom-call.16} parent=1 // pred_region
      %p126 = scmp.gt.s32.totalorder 1, 0
      // Predicated region
      $region50: #{custom-call.16} parent=48 // pred_check
        %p127 = pneg %p126
      $region51: #{custom-call.16} parent=48 // pred_check_branch
        %129 = sbr.rel (%p127) target = $region53
      $region52: #{custom-call.16} parent=48 // pred_region
        %s130 = ssub.s32 1, 1
        %s131 = smul.u32 %s130, 8
        %s132 = scalar_lea.vmem %s2, %s131
        %v133 = vld [vmem:[%s2] sm:$0xff]
        // While loop
        $region54: #{custom-call.16} parent=52 // loop_pre_header
          _
        $region55: #{custom-call.16} parent=52 // loop_header
          %s134 = sphi %s2, %s156
          %s135 = sphi [#allocation2], %s157
          %v136 = vphi %v133, %v158
          %s137 = ssub.s32 %s132, 64
          %p138 = scmp.gt.s32.totalorder %s134, %s137
        $region56: #{custom-call.16} parent=52 // loop_header_branch
          %140 = sbr.rel (%p138) target = $region60
        $region57: #{custom-call.16} parent=52 // loop_body
          %141 = vst [vmem:[%s135] sm:$0xff] %v136
          %v142 = vld [vmem:[%s134 + $0x8] sm:$0xff]
          %143 = vst [vmem:[%s135 + $0x8] sm:$0xff] %v142
          %v144 = vld [vmem:[%s134 + $0x10] sm:$0xff]
          %145 = vst [vmem:[%s135 + $0x10] sm:$0xff] %v144
          %v146 = vld [vmem:[%s134 + $0x18] sm:$0xff]
          %147 = vst [vmem:[%s135 + $0x18] sm:$0xff] %v146
          %v148 = vld [vmem:[%s134 + $0x20] sm:$0xff]
          %149 = vst [vmem:[%s135 + $0x20] sm:$0xff] %v148
          %v150 = vld [vmem:[%s134 + $0x28] sm:$0xff]
          %151 = vst [vmem:[%s135 + $0x28] sm:$0xff] %v150
          %v152 = vld [vmem:[%s134 + $0x30] sm:$0xff]
          %153 = vst [vmem:[%s135 + $0x30] sm:$0xff] %v152
          %v154 = vld [vmem:[%s134 + $0x38] sm:$0xff]
          %155 = vst [vmem:[%s135 + $0x38] sm:$0xff] %v154
        $region58: #{custom-call.16} parent=52 // loop_footer
          %s156 = scalar_lea.vmem %s134, 64
          %s157 = scalar_lea.vmem %s135, 64
          %v158 = vld [vmem:[%s134 + $0x40] sm:$0xff]
        $region59: #{custom-call.16} parent=52 // loop_footer_branch
          %159 = sbr.rel target = $region55
        $region60: #{custom-call.16} parent=52 // loop_exit
          _
        // While loop
        $region61: #{custom-call.16} parent=52 // loop_pre_header
          _
        $region62: #{custom-call.16} parent=52 // loop_header
          %s160 = sphi %s134, %s168
          %s161 = sphi %s135, %s169
          %v162 = vphi %v136, %v162
          %p163 = scmp.gt.s32.totalorder %s160, %s132
        $region63: #{custom-call.16} parent=52 // loop_header_branch
          %165 = sbr.rel (%p163) target = $region67
        $region64: #{custom-call.16} parent=52 // loop_body
          %v166 = vld [vmem:[%s160] sm:$0xff]
          %167 = vst [vmem:[%s161] sm:$0xff] %v166
        $region65: #{custom-call.16} parent=52 // loop_footer
          %s168 = scalar_lea.vmem %s160, 8
          %s169 = scalar_lea.vmem %s161, 8
        $region66: #{custom-call.16} parent=52 // loop_footer_branch
          %170 = sbr.rel target = $region62
        $region67: #{custom-call.16} parent=52 // loop_exit
          _
      $region53: #{custom-call.16} parent=48 // pred_fallthru
        _
      %s172 = ssub.s32 1, 1
      %s173 = smul.u32 1, 8
      %s174 = scalar_lea.vmem [#allocation2], %s173
      %s175 = smul.u32 1, 8
      %s176 = scalar_lea.vmem %s2, %s175
      %v177 = vld [vmem:[%s176] sm:%s172]
      %178 = vst [vmem:[%s174] sm:%s172] %v177
    $region49: #{custom-call.16} parent=1 // pred_fallthru
      _
    // Predicated region
    $region68: #{custom-call.16} parent=1 // pred_check
      _
    $region69: #{custom-call.16} parent=1 // pred_check_branch
      %180 = sbr.rel (0) target = $region71
    $region70: #{custom-call.16} parent=1 // pred_region
      %p182 = scmp.gt.s32.totalorder 1, 0
      // Predicated region
      $region72: #{custom-call.16} parent=70 // pred_check
        %p183 = pneg %p182
      $region73: #{custom-call.16} parent=70 // pred_check_branch
        %185 = sbr.rel (%p183) target = $region75
      $region74: #{custom-call.16} parent=70 // pred_region
        %s186 = ssub.s32 1, 1
        %s187 = smul.u32 %s186, 8
        %s188 = scalar_lea.vmem %s3, %s187
        %v189 = vld [vmem:[%s3] sm:$0xff]
        // While loop
        $region76: #{custom-call.16} parent=74 // loop_pre_header
          _
        $region77: #{custom-call.16} parent=74 // loop_header
          %s190 = sphi %s3, %s212
          %s191 = sphi [#allocation3], %s213
          %v192 = vphi %v189, %v214
          %s193 = ssub.s32 %s188, 64
          %p194 = scmp.gt.s32.totalorder %s190, %s193
        $region78: #{custom-call.16} parent=74 // loop_header_branch
          %196 = sbr.rel (%p194) target = $region82
        $region79: #{custom-call.16} parent=74 // loop_body
          %197 = vst [vmem:[%s191] sm:$0xff] %v192
          %v198 = vld [vmem:[%s190 + $0x8] sm:$0xff]
          %199 = vst [vmem:[%s191 + $0x8] sm:$0xff] %v198
          %v200 = vld [vmem:[%s190 + $0x10] sm:$0xff]
          %201 = vst [vmem:[%s191 + $0x10] sm:$0xff] %v200
          %v202 = vld [vmem:[%s190 + $0x18] sm:$0xff]
          %203 = vst [vmem:[%s191 + $0x18] sm:$0xff] %v202
          %v204 = vld [vmem:[%s190 + $0x20] sm:$0xff]
          %205 = vst [vmem:[%s191 + $0x20] sm:$0xff] %v204
          %v206 = vld [vmem:[%s190 + $0x28] sm:$0xff]
          %207 = vst [vmem:[%s191 + $0x28] sm:$0xff] %v206
          %v208 = vld [vmem:[%s190 + $0x30] sm:$0xff]
          %209 = vst [vmem:[%s191 + $0x30] sm:$0xff] %v208
          %v210 = vld [vmem:[%s190 + $0x38] sm:$0xff]
          %211 = vst [vmem:[%s191 + $0x38] sm:$0xff] %v210
        $region80: #{custom-call.16} parent=74 // loop_footer
          %s212 = scalar_lea.vmem %s190, 64
          %s213 = scalar_lea.vmem %s191, 64
          %v214 = vld [vmem:[%s190 + $0x40] sm:$0xff]
        $region81: #{custom-call.16} parent=74 // loop_footer_branch
          %215 = sbr.rel target = $region77
        $region82: #{custom-call.16} parent=74 // loop_exit
          _
        // While loop
        $region83: #{custom-call.16} parent=74 // loop_pre_header
          _
        $region84: #{custom-call.16} parent=74 // loop_header
          %s216 = sphi %s190, %s224
          %s217 = sphi %s191, %s225
          %v218 = vphi %v192, %v218
          %p219 = scmp.gt.s32.totalorder %s216, %s188
        $region85: #{custom-call.16} parent=74 // loop_header_branch
          %221 = sbr.rel (%p219) target = $region89
        $region86: #{custom-call.16} parent=74 // loop_body
          %v222 = vld [vmem:[%s216] sm:$0xff]
          %223 = vst [vmem:[%s217] sm:$0xff] %v222
        $region87: #{custom-call.16} parent=74 // loop_footer
          %s224 = scalar_lea.vmem %s216, 8
          %s225 = scalar_lea.vmem %s217, 8
        $region88: #{custom-call.16} parent=74 // loop_footer_branch
          %226 = sbr.rel target = $region84
        $region89: #{custom-call.16} parent=74 // loop_exit
          _
      $region75: #{custom-call.16} parent=70 // pred_fallthru
        _
      %s228 = ssub.s32 1, 1
      %s229 = smul.u32 1, 8
      %s230 = scalar_lea.vmem [#allocation3], %s229
      %s231 = smul.u32 1, 8
      %s232 = scalar_lea.vmem %s3, %s231
      %v233 = vld [vmem:[%s232] sm:%s228]
      %234 = vst [vmem:[%s230] sm:%s228] %v233
    $region71: #{custom-call.16} parent=1 // pred_fallthru
      _
    %s235 = smov [#allocation12]
    %v236 = vld [vmem:[#allocation0] sm:$0xff]
    %237 = vst [vmem:[%s235] sm:$0xff] %v236
    %s238 = smov [#allocation13]
    %v239 = vld [vmem:[#allocation1] sm:$0xff]
    %240 = vst [vmem:[%s238] sm:$0xff] %v239
    %s241 = smov [#allocation14]
    %v242 = vld [vmem:[#allocation2] sm:$0xff]
    %243 = vst [vmem:[%s241] sm:$0xff] %v242
    %s244 = smov [#allocation15]
    %v245 = vld [vmem:[#allocation3] sm:$0xff]
    %246 = vst [vmem:[%s244] sm:$0xff] %v245
    %247 = vst [vmem:[#allocation8] sm:$0xff] 0.0
    %248 = vst [vmem:[#allocation9] sm:$0xff] 0.0
    %249 = vst [vmem:[#allocation10] sm:$0xff] 0.0
    %250 = vst [vmem:[#allocation11] sm:$0xff] 0.0
    %s251 = smov [#allocation8]
    %v252 = vlaneseq
    %v253 = vand.u32 %v252, 127
    %v254 = vmov %v253
    %v255 = vlaneseq
    %v256 = vshrl.u32 %v255, 7
    %v257 = vmov %v256
    %v258 = vld [vmem:[%s251] sm:$0xff]
    %vm261 = vcmp.eq.s32.totalorder %v257, %v254
    %v262 = vsel %vm261, 1.0, %v258
    %263 = vst [vmem:[%s251] sm:$0xff] %v262
    %s264 = smov [#allocation11]
    %v265 = vlaneseq
    %v266 = vand.u32 %v265, 127
    %v267 = vmov %v266
    %v268 = vlaneseq
    %v269 = vshrl.u32 %v268, 7
    %v270 = vmov %v269
    %v271 = vld [vmem:[%s264] sm:$0xff]
    %vm274 = vcmp.eq.s32.totalorder %v270, %v267
    %v275 = vsel %vm274, 1.0, %v271
    %276 = vst [vmem:[%s264] sm:$0xff] %v275
    // While loop
    $region90: #{custom-call.16} parent=1 // loop_pre_header
      _
    $region91: #{custom-call.16} parent=1 // loop_header
      %s278 = sphi 0, %s860
      %v279 = vlaneseq
      %v280 = vand.u32 %v279, 127
      %v281 = vmov %v280
      %v282 = vlaneseq
      %v283 = vshrl.u32 %v282, 7
      %v284 = vmov %v283
      %s285 = smov [#allocation12]
      %v286 = vlaneseq
      %v287 = vand.u32 %v286, 127
      %vm288 = vcmp.ge.s32.totalorder %v287, 0
      %vm289 = vcmp.lt.s32.totalorder %v287, 8
      %vm290 = vmand %vm288, %vm289
      %v291 = vld [vmem:[%s285] sm:$0xff]
      %v292 = vsel %vm290, %v291, 0.0
      %v293 = vmul.f32 %v292, %v292
      %vm296 = vcmp.eq.s32.totalorder %v284, %v281
      %v297 = vsel %vm296, 0.0, %v293
      %v298 = vlaneseq
      %v299 = vand.u32 %v298, 127
      %v300 = vmov %v299
      %v301 = vlaneseq
      %v302 = vshrl.u32 %v301, 7
      %v303 = vmov %v302
      %s304 = smov [#allocation13]
      %v305 = vlaneseq
      %v306 = vand.u32 %v305, 127
      %vm307 = vcmp.ge.s32.totalorder %v306, 0
      %vm308 = vcmp.lt.s32.totalorder %v306, 8
      %vm309 = vmand %vm307, %vm308
      %v310 = vld [vmem:[%s304] sm:$0xff]
      %v311 = vsel %vm309, %v310, 0.0
      %v312 = vmul.f32 %v311, %v311
      %v313 = vadd.f32 %v297, %v312
      %v314 = vadd.f32 %v293, %v312
      %v315 = vlaneseq
      %v316 = vand.u32 %v315, 127
      %v317 = vmov %v316
      %v318 = vlaneseq
      %v319 = vshrl.u32 %v318, 7
      %v320 = vmov %v319
      %s321 = smov [#allocation14]
      %v322 = vlaneseq
      %v323 = vand.u32 %v322, 127
      %vm324 = vcmp.ge.s32.totalorder %v323, 0
      %vm325 = vcmp.lt.s32.totalorder %v323, 8
      %vm326 = vmand %vm324, %vm325
      %v327 = vld [vmem:[%s321] sm:$0xff]
      %v328 = vsel %vm326, %v327, 0.0
      %v329 = vmul.f32 %v328, %v328
      %v330 = vadd.f32 %v313, %v329
      %v331 = vadd.f32 %v314, %v329
      %v332 = vlaneseq
      %v333 = vand.u32 %v332, 127
      %v334 = vmov %v333
      %v335 = vlaneseq
      %v336 = vshrl.u32 %v335, 7
      %v337 = vmov %v336
      %s338 = smov [#allocation15]
      %v339 = vlaneseq
      %v340 = vand.u32 %v339, 127
      %vm341 = vcmp.ge.s32.totalorder %v340, 0
      %vm342 = vcmp.lt.s32.totalorder %v340, 8
      %vm343 = vmand %vm341, %vm342
      %v344 = vld [vmem:[%s338] sm:$0xff]
      %v345 = vsel %vm343, %v344, 0.0
      %v346 = vmul.f32 %v345, %v345
      %vm349 = vcmp.eq.s32.totalorder %v337, %v334
      %v350 = vsel %vm349, 0.0, %v346
      %v351 = vadd.f32 %v330, %v350
      %v352 = vadd.f32 %v331, %v346
      %353 = vadd.xlane.f32.xlu0 %v352
      %v354 = vpop.xlane.xlu0 %353
      %v355 = vrot.slane %v354, 4
      %v356 = vadd.f32 %v354, %v355
      %v357 = vrot.slane %v356, 2
      %v358 = vadd.f32 %v356, %v357
      %v359 = vrot.slane %v358, 1
      %v360 = vadd.f32 %v358, %v359
      %361 = vadd.xlane.f32.xlu0 %v351
      %v362 = vpop.xlane.xlu0 %361
      %v363 = vrot.slane %v362, 4
      %v364 = vadd.f32 %v362, %v363
      %v365 = vrot.slane %v364, 2
      %v366 = vadd.f32 %v364, %v365
      %v367 = vrot.slane %v366, 1
      %v368 = vadd.f32 %v366, %v367
      %s369 = vtos %v368
      %s370 = vtos %v360
      %s371 = smul.f32 1e-10, %s370
      %p372 = scmp.le.f32.partialorder %s369, %s371
      %p373 = scmp.ge.s32.totalorder %s278, 15
      %p374 = por %p372, %p373
    $region92: #{custom-call.16} parent=1 // loop_header_branch
      %862 = sbr.rel (%p374) target = $region96
    $region93: #{custom-call.16} parent=1 // loop_body
      loop: start=0, step=1, limit=15
      $region97: #{custom-call.16} parent=93 // loop_pre_header
        _
      $region98: #{custom-call.16} parent=93 // loop_header
        %s376 = sphi 0, %s380
        %p377 = scmp.ge.s32.totalorder %s376, 15
      $region99: #{custom-call.16} parent=93 // loop_header_branch
        %379 = sbr.rel (%p377) target = $region103
      $region100: #{custom-call.16} parent=93 // loop_body
        #allocation16 [shape = 'f32[1024]{0}', space=vmem, size = 0x1000, scoped, tag = 'a_tl_diag vmem']
        #allocation17 [shape = 'f32[1024]{0}', space=vmem, size = 0x1000, scoped, tag = 'a_tr_diag vmem']
        #allocation18 [shape = 'f32[1024]{0}', space=vmem, size = 0x1000, scoped, tag = 'a_br_diag vmem']
        #allocation19 [shape = 'f32[1024]{0}', space=vmem, size = 0x1000, scoped, tag = 'rt1 vmem']
        #allocation20 [shape = 'f32[1024]{0}', space=vmem, size = 0x1000, scoped, tag = 'rt2 vmem']
        #allocation21 [shape = 'f32[1024]{0}', space=vmem, size = 0x1000, scoped, tag = 'c vmem']
        #allocation22 [shape = 'f32[1024]{0}', space=vmem, size = 0x1000, scoped, tag = 's vmem']
        #allocation23 [shape = 'f32[4096]{0}', space=vmem, size = 0x4000, scoped, tag = 'c broadcast']
        #allocation24 [shape = 'f32[4096]{0}', space=vmem, size = 0x4000, scoped, tag = 's broadcast']
        %s381 = smov [#allocation12]
        %s382 = smov [#allocation16]
        %v383 = vlaneseq
        %v384 = vand.u32 %v383, 127
        %v385 = vmov %v384
        %v386 = vlaneseq
        %v387 = vshrl.u32 %v386, 7
        %v388 = vmov %v387
        %v389 = vld [vmem:[%s381] sm:$0xff]
        %vm392 = vcmp.eq.s32.totalorder %v388, %v385
        %v393 = vsel %vm392, %v389, 0.0
        %v394 = vrot.slane %v393, 4
        %v395 = vadd.f32 %v393, %v394
        %v396 = vrot.slane %v395, 2
        %v397 = vadd.f32 %v395, %v396
        %v398 = vrot.slane %v397, 1
        %v399 = vadd.f32 %v397, %v398
        %400 = vst [vmem:[%s382] sm:$0x1] %v399
        %s401 = smov [#allocation13]
        %s402 = smov [#allocation17]
        %v403 = vlaneseq
        %v404 = vand.u32 %v403, 127
        %v405 = vmov %v404
        %v406 = vlaneseq
        %v407 = vshrl.u32 %v406, 7
        %v408 = vmov %v407
        %v409 = vld [vmem:[%s401] sm:$0xff]
        %vm412 = vcmp.eq.s32.totalorder %v408, %v405
        %v413 = vsel %vm412, %v409, 0.0
        %v414 = vrot.slane %v413, 4
        %v415 = vadd.f32 %v413, %v414
        %v416 = vrot.slane %v415, 2
        %v417 = vadd.f32 %v415, %v416
        %v418 = vrot.slane %v417, 1
        %v419 = vadd.f32 %v417, %v418
        %420 = vst [vmem:[%s402] sm:$0x1] %v419
        %s421 = smov [#allocation15]
        %s422 = smov [#allocation18]
        %v423 = vlaneseq
        %v424 = vand.u32 %v423, 127
        %v425 = vmov %v424
        %v426 = vlaneseq
        %v427 = vshrl.u32 %v426, 7
        %v428 = vmov %v427
        %v429 = vld [vmem:[%s421] sm:$0xff]
        %vm432 = vcmp.eq.s32.totalorder %v428, %v425
        %v433 = vsel %vm432, %v429, 0.0
        %v434 = vrot.slane %v433, 4
        %v435 = vadd.f32 %v433, %v434
        %v436 = vrot.slane %v435, 2
        %v437 = vadd.f32 %v435, %v436
        %v438 = vrot.slane %v437, 1
        %v439 = vadd.f32 %v437, %v438
        %440 = vst [vmem:[%s422] sm:$0x1] %v439
        %s441 = smov [#allocation21]
        %s442 = smov [#allocation22]
        %s443 = smov [#allocation16]
        %v444 = vld [vmem:[%s443] sm:$0xff]
        %s445 = smov [#allocation17]
        %v446 = vld [vmem:[%s445] sm:$0xff]
        %s447 = smov [#allocation18]
        %v448 = vld [vmem:[%s447] sm:$0xff]
        %v449 = vsub.f32 %v448, %v444
        %v450 = vmul.f32 2.0, %v446
        %v451 = vrcp.pop %v450
        %v452 = vmul.f32 %v450, %v451
        %v453 = vsub.f32 1.0, %v452
        %v454 = vmul.f32 %v451, %v453
        %v455 = vadd.f32 %v451, %v454
        %vm456 = vweird.f32 %v450
        %vm457 = vweird.f32 %v451
        %vm458 = vmor %vm456, %vm457
        %v459 = vsel %vm458, %v451, %v455
        %v460 = vand.u32 2147483647, %v450
        %vm461 = vcmp.eq.f32.partialorder %v460, 8.507059e+37
        %v462 = vand.u32 %v450, 2147483648
        %v463 = vor.u32 1.1754944e-38, %v462
        %v464 = vsel %vm461, %v463, %v459
        %v465 = vmul.f32 %v449, %v464
        %vm466 = vcmp.ge.f32.partialorder %v465, 0.0
        %v467 = vmul.f32 %v465, %v465
        %v468 = vadd.f32 1.0, %v467
        %v469 = vrsqrt.pop %v468
        %v470 = vmul.f32 %v469, %v468
        %v471 = vmul.f32 %v470, %v469
        %v472 = vmul.f32 0.5, %v471
        %v473 = vsub.f32 1.5, %v472
        %v474 = vmul.f32 %v469, %v473
        %v475 = vmul.f32 %v468, %v474
        %vm476 = vcmp.eq.f32.partialorder %v468, inf
        %v477 = vsel %vm476, %v468, %v475
        %vm478 = vcmp.eq.f32.partialorder %v468, 0.0
        %v479 = vand.u32 %v468, 2147483648
        %v480 = vsel %vm478, %v479, %v477
        %v481 = vxor.u32 %v480, 2147483648
        %v482 = vsel %vm466, %v480, %v481
        %v483 = vadd.f32 %v465, %v482
        %v484 = vrcp.pop %v483
        %v485 = vmul.f32 %v483, %v484
        %v486 = vsub.f32 1.0, %v485
        %v487 = vmul.f32 %v484, %v486
        %v488 = vadd.f32 %v484, %v487
        %vm489 = vweird.f32 %v483
        %vm490 = vweird.f32 %v484
        %vm491 = vmor %vm489, %vm490
        %v492 = vsel %vm491, %v484, %v488
        %v493 = vand.u32 2147483647, %v483
        %vm494 = vcmp.eq.f32.partialorder %v493, 8.507059e+37
        %v495 = vand.u32 %v483, 2147483648
        %v496 = vor.u32 1.1754944e-38, %v495
        %v497 = vsel %vm494, %v496, %v492
        %v498 = vand.u32 2147483647, %v444
        %v499 = vand.u32 2147483647, %v446
        %v500 = vand.u32 2147483647, %v448
        %v501 = vmin.f32 %v498, %v500
        %v502 = vmul.f32 1.1920929e-08, %v501
        %vm503 = vcmp.le.f32.partialorder %v499, %v502
        %v504 = vsel %vm503, 0.0, %v497
        %v505 = vmul.f32 %v504, %v504
        %v506 = vadd.f32 1.0, %v505
        %v507 = vrsqrt.pop %v506
        %v508 = vmul.f32 %v507, %v506
        %v509 = vmul.f32 %v508, %v507
        %v510 = vmul.f32 0.5, %v509
        %v511 = vsub.f32 1.5, %v510
        %v512 = vmul.f32 %v507, %v511
        %vm513 = vweird.f32 %v506
        %vm514 = vweird.f32 %v507
        %vm515 = vmor %vm513, %vm514
        %v516 = vsel %vm515, %v507, %v512
        %v517 = vmul.f32 %v504, %v516
        %v518 = vmul.f32 %v504, %v446
        %v519 = vsub.f32 %v444, %v518
        %v520 = vmul.f32 %v504, %v446
        %v521 = vadd.f32 %v448, %v520
        %s522 = smov [#allocation19]
        %523 = vst [vmem:[%s522] sm:$0xff] %v519
        %s524 = smov [#allocation20]
        %525 = vst [vmem:[%s524] sm:$0xff] %v521
        %s526 = smov %s441
        %527 = vst [vmem:[%s526] sm:$0xff] %v516
        %s528 = smov %s442
        %529 = vst [vmem:[%s528] sm:$0xff] %v517
        %s530 = smov [#allocation21]
        %v531 = vld [vmem:[%s530] ss:$0 sm:$0xff]
        %v532 = vlaneseq
        %v533 = vand.u32 %v532, 127
        %v534 = vmov %v533
        %v535 = vlaneseq
        %v536 = vshrl.u32 %v535, 7
        %v537 = vmov %v536
        %vm539 = vcmp.eq.s32.totalorder %v537, %v534
        %v540 = vsel %vm539, %v531, 0.0
        %541 = vadd.xlane.f32.xlu0 %v540
        %v542 = vpop.xlane.xlu0 %541
        %s543 = smov [#allocation23]
        %544 = vst [vmem:[%s543] sm:$0xff] %v542
        %s545 = smov [#allocation22]
        %v546 = vld [vmem:[%s545] ss:$0 sm:$0xff]
        %v547 = vlaneseq
        %v548 = vand.u32 %v547, 127
        %v549 = vmov %v548
        %v550 = vlaneseq
        %v551 = vshrl.u32 %v550, 7
        %v552 = vmov %v551
        %vm554 = vcmp.eq.s32.totalorder %v552, %v549
        %v555 = vsel %vm554, %v546, 0.0
        %556 = vadd.xlane.f32.xlu0 %v555
        %v557 = vpop.xlane.xlu0 %556
        %s558 = smov [#allocation24]
        %559 = vst [vmem:[%s558] sm:$0xff] %v557
        %s560 = smov [#allocation23]
        %v561 = vld [vmem:[%s560] sm:$0xff]
        %s562 = smov [#allocation24]
        %v563 = vld [vmem:[%s562] sm:$0xff]
        %s564 = smov [#allocation12]
        %s565 = smov [#allocation13]
        %s566 = smov [#allocation14]
        %s567 = smov [#allocation15]
        %v568 = vld [vmem:[%s564] sm:$0xff]
        %v569 = vld [vmem:[%s565] sm:$0xff]
        %v570 = vld [vmem:[%s566] sm:$0xff]
        %v571 = vld [vmem:[%s567] sm:$0xff]
        %v572 = vmul.f32 %v561, %v568
        %v573 = vmul.f32 %v563, %v570
        %v574 = vsub.f32 %v572, %v573
        %v575 = vmul.f32 %v561, %v569
        %v576 = vmul.f32 %v563, %v571
        %v577 = vsub.f32 %v575, %v576
        %v578 = vmul.f32 %v563, %v568
        %v579 = vmul.f32 %v561, %v570
        %v580 = vadd.f32 %v578, %v579
        %v581 = vmul.f32 %v563, %v569
        %v582 = vmul.f32 %v561, %v571
        %v583 = vadd.f32 %v581, %v582
        %584 = vst [vmem:[%s564] sm:$0xff] %v574
        %585 = vst [vmem:[%s565] sm:$0xff] %v577
        %586 = vst [vmem:[%s566] sm:$0xff] %v580
        %587 = vst [vmem:[%s567] sm:$0xff] %v583
        %s588 = smov [#allocation21]
        %v589 = vld [vmem:[%s588] ss:$0 sm:$0xff]
        %s590 = smov [#allocation22]
        %v591 = vld [vmem:[%s590] ss:$0 sm:$0xff]
        %s592 = smov [#allocation12]
        %s593 = smov [#allocation13]
        %s594 = smov [#allocation14]
        %s595 = smov [#allocation15]
        %v596 = vld [vmem:[%s592] sm:$0xff]
        %v597 = vld [vmem:[%s593] sm:$0xff]
        %v598 = vld [vmem:[%s594] sm:$0xff]
        %v599 = vld [vmem:[%s595] sm:$0xff]
        %v600 = vmul.f32 %v589, %v596
        %v601 = vmul.f32 %v591, %v597
        %v602 = vsub.f32 %v600, %v601
        %v603 = vmul.f32 %v591, %v596
        %v604 = vmul.f32 %v589, %v597
        %v605 = vadd.f32 %v603, %v604
        %v606 = vmul.f32 %v589, %v598
        %v607 = vmul.f32 %v591, %v599
        %v608 = vsub.f32 %v606, %v607
        %v609 = vmul.f32 %v591, %v598
        %v610 = vmul.f32 %v589, %v599
        %v611 = vadd.f32 %v609, %v610
        %612 = vst [vmem:[%s592] sm:$0xff] %v602
        %613 = vst [vmem:[%s593] sm:$0xff] %v605
        %614 = vst [vmem:[%s594] sm:$0xff] %v608
        %615 = vst [vmem:[%s595] sm:$0xff] %v611
        %s616 = smov [#allocation12]
        %s617 = smov [#allocation19]
        %v618 = vlaneseq
        %v619 = vand.u32 %v618, 127
        %v620 = vmov %v619
        %v621 = vlaneseq
        %v622 = vshrl.u32 %v621, 7
        %v623 = vmov %v622
        %v624 = vld [vmem:[%s617] ss:$0 sm:$0xff]
        %v625 = vld [vmem:[%s616] sm:$0xff]
        %vm628 = vcmp.eq.s32.totalorder %v623, %v620
        %v629 = vsel %vm628, %v624, %v625
        %630 = vst [vmem:[%s616] sm:$0xff] %v629
        %s631 = smov [#allocation13]
        %v632 = vlaneseq
        %v633 = vand.u32 %v632, 127
        %v634 = vmov %v633
        %v635 = vlaneseq
        %v636 = vshrl.u32 %v635, 7
        %v637 = vmov %v636
        %v638 = vld [vmem:[%s631] sm:$0xff]
        %vm641 = vcmp.eq.s32.totalorder %v637, %v634
        %v642 = vsel %vm641, 0.0, %v638
        %643 = vst [vmem:[%s631] sm:$0xff] %v642
        %s644 = smov [#allocation14]
        %v645 = vlaneseq
        %v646 = vand.u32 %v645, 127
        %v647 = vmov %v646
        %v648 = vlaneseq
        %v649 = vshrl.u32 %v648, 7
        %v650 = vmov %v649
        %v651 = vld [vmem:[%s644] sm:$0xff]
        %vm654 = vcmp.eq.s32.totalorder %v650, %v647
        %v655 = vsel %vm654, 0.0, %v651
        %656 = vst [vmem:[%s644] sm:$0xff] %v655
        %s657 = smov [#allocation15]
        %s658 = smov [#allocation20]
        %v659 = vlaneseq
        %v660 = vand.u32 %v659, 127
        %v661 = vmov %v660
        %v662 = vlaneseq
        %v663 = vshrl.u32 %v662, 7
        %v664 = vmov %v663
        %v665 = vld [vmem:[%s658] ss:$0 sm:$0xff]
        %v666 = vld [vmem:[%s657] sm:$0xff]
        %vm669 = vcmp.eq.s32.totalorder %v664, %v661
        %v670 = vsel %vm669, %v665, %v666
        %671 = vst [vmem:[%s657] sm:$0xff] %v670
        %s672 = smov [#allocation12]
        %s673 = smov [#allocation13]
        %v674 = vld [vmem:[%s673] sm:$0xff]
        %675 = vrot.lane.b32.xlu0 %v674, 1
        %v676 = vpop.permute.xlu0 %675
        %v677 = vld [vmem:[%s672] sm:$0xff]
        %v678 = vld [vmem:[%s672] sm:$0xff]
        %679 = vrot.lane.b32.xlu0 %v678, 1
        %v680 = vpop.permute.xlu0 %679
        %v681 = vlaneseq
        %v682 = vand.u32 %v681, 127
        %vm683 = vcmp.eq.s32.totalorder %v682, 0
        %v684 = vsel %vm683, %v678, %v680
        %v685 = vlaneseq
        %v686 = vand.u32 %v685, 127
        %vm687 = vcmp.eq.s32.totalorder %v686, 1
        %v688 = vsel %vm687, %v676, %v684
        %v689 = vlaneseq
        %v690 = vand.u32 %v689, 127
        %vm691 = vcmp.ge.s32.totalorder %v690, 0
        %vm692 = vcmp.lt.s32.totalorder %v690, 8
        %vm693 = vmand %vm691, %vm692
        %v694 = vsel %vm693, %v688, 0.0
        %v695 = vld [vmem:[%s673] sm:$0xff]
        %696 = vrot.lane.b32.xlu0 %v695, 127
        %v697 = vpop.permute.xlu0 %696
        %v698 = vlaneseq
        %v699 = vand.u32 %v698, 127
        %vm700 = vcmp.eq.s32.totalorder %v699, 7
        %v701 = vsel %vm700, %v677, %v697
        %702 = vst [vmem:[%s672] sm:$0xff] %v694
        %703 = vst [vmem:[%s673] sm:$0xff] %v701
        %s704 = smov [#allocation14]
        %s705 = smov [#allocation15]
        %v706 = vld [vmem:[%s705] sm:$0xff]
        %707 = vrot.lane.b32.xlu0 %v706, 1
        %v708 = vpop.permute.xlu0 %707
        %v709 = vld [vmem:[%s704] sm:$0xff]
        %v710 = vld [vmem:[%s704] sm:$0xff]
        %711 = vrot.lane.b32.xlu0 %v710, 1
        %v712 = vpop.permute.xlu0 %711
        %v713 = vlaneseq
        %v714 = vand.u32 %v713, 127
        %vm715 = vcmp.eq.s32.totalorder %v714, 0
        %v716 = vsel %vm715, %v710, %v712
        %v717 = vlaneseq
        %v718 = vand.u32 %v717, 127
        %vm719 = vcmp.eq.s32.totalorder %v718, 1
        %v720 = vsel %vm719, %v708, %v716
        %v721 = vlaneseq
        %v722 = vand.u32 %v721, 127
        %vm723 = vcmp.ge.s32.totalorder %v722, 0
        %vm724 = vcmp.lt.s32.totalorder %v722, 8
        %vm725 = vmand %vm723, %vm724
        %v726 = vsel %vm725, %v720, 0.0
        %v727 = vld [vmem:[%s705] sm:$0xff]
        %728 = vrot.lane.b32.xlu0 %v727, 127
        %v729 = vpop.permute.xlu0 %728
        %v730 = vlaneseq
        %v731 = vand.u32 %v730, 127
        %vm732 = vcmp.eq.s32.totalorder %v731, 7
        %v733 = vsel %vm732, %v709, %v729
        %734 = vst [vmem:[%s704] sm:$0xff] %v726
        %735 = vst [vmem:[%s705] sm:$0xff] %v733
        %s736 = smov [#allocation12]
        %s737 = smov [#allocation14]
        %v738 = vld [vmem:[%s736] ss:$0 sm:$0xff]
        %s740 = scalar_lea.vmem %s736, 4294967295
        %v741 = vld [vmem:[%s740] sm:$0xfe]
        %v742 = vlaneseq
        %v743 = vshrl.u32 %v742, 7
        %vm744 = vcmp.eq.s32.totalorder %v743, 0
        %v745 = vsel %vm744, %v738, %v741
        %s746 = scalar_lea.vmem %s736, 7
        %v747 = vld [vmem:[%s746] ss:$0 sm:$0xff]
        %748 = vst [vmem:[%s736] sm:$0xff] %v745
        %v749 = vld [vmem:[%s737] ss:$0 sm:$0xff]
        %s750 = scalar_lea.vmem %s736, 1
        %751 = vst [vmem:[%s750] sm:$0x1] %v749
        %s752 = scalar_lea.vmem %s737, 1
        %v753 = vld [vmem:[%s752] sm:$0x7f]
        %v754 = vlaneseq
        %v755 = vshrl.u32 %v754, 7
        %vm756 = vcmp.eq.s32.totalorder %v755, 7
        %v757 = vsel %vm756, %v747, %v753
        %v758 = vld [vmem:[%s737] ss:$0 sm:$0xff]
        %759 = vst [vmem:[%s737] sm:$0xff] %v757
        %s760 = smov [#allocation13]
        %s761 = smov [#allocation15]
        %v762 = vld [vmem:[%s760] ss:$0 sm:$0xff]
        %s764 = scalar_lea.vmem %s760, 4294967295
        %v765 = vld [vmem:[%s764] sm:$0xfe]
        %v766 = vlaneseq
        %v767 = vshrl.u32 %v766, 7
        %vm768 = vcmp.eq.s32.totalorder %v767, 0
        %v769 = vsel %vm768, %v762, %v765
        %s770 = scalar_lea.vmem %s760, 7
        %v771 = vld [vmem:[%s770] ss:$0 sm:$0xff]
        %772 = vst [vmem:[%s760] sm:$0xff] %v769
        %v773 = vld [vmem:[%s761] ss:$0 sm:$0xff]
        %s774 = scalar_lea.vmem %s760, 1
        %775 = vst [vmem:[%s774] sm:$0x1] %v773
        %s776 = scalar_lea.vmem %s761, 1
        %v777 = vld [vmem:[%s776] sm:$0x7f]
        %v778 = vlaneseq
        %v779 = vshrl.u32 %v778, 7
        %vm780 = vcmp.eq.s32.totalorder %v779, 7
        %v781 = vsel %vm780, %v771, %v777
        %v782 = vld [vmem:[%s761] ss:$0 sm:$0xff]
        %783 = vst [vmem:[%s761] sm:$0xff] %v781
        %s784 = smov [#allocation23]
        %v785 = vld [vmem:[%s784] sm:$0xff]
        %s786 = smov [#allocation24]
        %v787 = vld [vmem:[%s786] sm:$0xff]
        %s788 = smov [#allocation8]
        %s789 = smov [#allocation9]
        %s790 = smov [#allocation10]
        %s791 = smov [#allocation11]
        %v792 = vld [vmem:[%s788] sm:$0xff]
        %v793 = vld [vmem:[%s789] sm:$0xff]
        %v794 = vld [vmem:[%s790] sm:$0xff]
        %v795 = vld [vmem:[%s791] sm:$0xff]
        %v796 = vmul.f32 %v785, %v792
        %v797 = vmul.f32 %v787, %v794
        %v798 = vsub.f32 %v796, %v797
        %v799 = vmul.f32 %v785, %v793
        %v800 = vmul.f32 %v787, %v795
        %v801 = vsub.f32 %v799, %v800
        %v802 = vmul.f32 %v787, %v792
        %v803 = vmul.f32 %v785, %v794
        %v804 = vadd.f32 %v802, %v803
        %v805 = vmul.f32 %v787, %v793
        %v806 = vmul.f32 %v785, %v795
        %v807 = vadd.f32 %v805, %v806
        %808 = vst [vmem:[%s788] sm:$0xff] %v798
        %809 = vst [vmem:[%s789] sm:$0xff] %v801
        %810 = vst [vmem:[%s790] sm:$0xff] %v804
        %811 = vst [vmem:[%s791] sm:$0xff] %v807
        %s812 = smov [#allocation8]
        %s813 = smov [#allocation10]
        %v814 = vld [vmem:[%s812] ss:$0 sm:$0xff]
        %s816 = scalar_lea.vmem %s812, 4294967295
        %v817 = vld [vmem:[%s816] sm:$0xfe]
        %v818 = vlaneseq
        %v819 = vshrl.u32 %v818, 7
        %vm820 = vcmp.eq.s32.totalorder %v819, 0
        %v821 = vsel %vm820, %v814, %v817
        %s822 = scalar_lea.vmem %s812, 7
        %v823 = vld [vmem:[%s822] ss:$0 sm:$0xff]
        %824 = vst [vmem:[%s812] sm:$0xff] %v821
        %v825 = vld [vmem:[%s813] ss:$0 sm:$0xff]
        %s826 = scalar_lea.vmem %s812, 1
        %827 = vst [vmem:[%s826] sm:$0x1] %v825
        %s828 = scalar_lea.vmem %s813, 1
        %v829 = vld [vmem:[%s828] sm:$0x7f]
        %v830 = vlaneseq
        %v831 = vshrl.u32 %v830, 7
        %vm832 = vcmp.eq.s32.totalorder %v831, 7
        %v833 = vsel %vm832, %v823, %v829
        %v834 = vld [vmem:[%s813] ss:$0 sm:$0xff]
        %835 = vst [vmem:[%s813] sm:$0xff] %v833
        %s836 = smov [#allocation9]
        %s837 = smov [#allocation11]
        %v838 = vld [vmem:[%s836] ss:$0 sm:$0xff]
        %s840 = scalar_lea.vmem %s836, 4294967295
        %v841 = vld [vmem:[%s840] sm:$0xfe]
        %v842 = vlaneseq
        %v843 = vshrl.u32 %v842, 7
        %vm844 = vcmp.eq.s32.totalorder %v843, 0
        %v845 = vsel %vm844, %v838, %v841
        %s846 = scalar_lea.vmem %s836, 7
        %v847 = vld [vmem:[%s846] ss:$0 sm:$0xff]
        %848 = vst [vmem:[%s836] sm:$0xff] %v845
        %v849 = vld [vmem:[%s837] ss:$0 sm:$0xff]
        %s850 = scalar_lea.vmem %s836, 1
        %851 = vst [vmem:[%s850] sm:$0x1] %v849
        %s852 = scalar_lea.vmem %s837, 1
        %v853 = vld [vmem:[%s852] sm:$0x7f]
        %v854 = vlaneseq
        %v855 = vshrl.u32 %v854, 7
        %vm856 = vcmp.eq.s32.totalorder %v855, 7
        %v857 = vsel %vm856, %v847, %v853
        %v858 = vld [vmem:[%s837] ss:$0 sm:$0xff]
        %859 = vst [vmem:[%s837] sm:$0xff] %v857
      $region101: #{custom-call.16} parent=93 // loop_footer
        %s380 = sadd.s32 1, %s376
      $region102: #{custom-call.16} parent=93 // loop_footer_branch
        %375 = sbr.rel target = $region98
      $region103: #{custom-call.16} parent=93 // loop_exit
        _
      %s860 = sadd.s32 %s278, 1
    $region94: #{custom-call.16} parent=1 // loop_footer
      _
    $region95: #{custom-call.16} parent=1 // loop_footer_branch
      %277 = sbr.rel target = $region91
    $region96: #{custom-call.16} parent=1 // loop_exit
      _
    %s863 = smov [#allocation12]
    %s864 = smov [#allocation4]
    %v865 = vlaneseq
    %v866 = vand.u32 %v865, 127
    %v867 = vmov %v866
    %v868 = vlaneseq
    %v869 = vshrl.u32 %v868, 7
    %v870 = vmov %v869
    %v871 = vld [vmem:[%s863] sm:$0xff]
    %vm874 = vcmp.eq.s32.totalorder %v870, %v867
    %v875 = vsel %vm874, %v871, 0.0
    %v876 = vrot.slane %v875, 4
    %v877 = vadd.f32 %v875, %v876
    %v878 = vrot.slane %v877, 2
    %v879 = vadd.f32 %v877, %v878
    %v880 = vrot.slane %v879, 1
    %v881 = vadd.f32 %v879, %v880
    %882 = vst [vmem:[%s864] sm:$0x1] %v881
    %s883 = smov [#allocation15]
    %s884 = smov [#allocation6]
    %v885 = vlaneseq
    %v886 = vand.u32 %v885, 127
    %v887 = vmov %v886
    %v888 = vlaneseq
    %v889 = vshrl.u32 %v888, 7
    %v890 = vmov %v889
    %v891 = vld [vmem:[%s883] sm:$0xff]
    %vm894 = vcmp.eq.s32.totalorder %v890, %v887
    %v895 = vsel %vm894, %v891, 0.0
    %v896 = vrot.slane %v895, 4
    %v897 = vadd.f32 %v895, %v896
    %v898 = vrot.slane %v897, 2
    %v899 = vadd.f32 %v897, %v898
    %v900 = vrot.slane %v899, 1
    %v901 = vadd.f32 %v899, %v900
    %902 = vst [vmem:[%s884] sm:$0x1] %v901
    %s904 = ssub.s32 2, 1
    %v905 = vld [vmem:[#allocation4] sm:%s904]
    %s907 = ssub.s32 2, 1
    %908 = vst [vmem:[#allocation5] sm:%s907] %v905
    %s910 = ssub.s32 2, 1
    %v911 = vld [vmem:[#allocation6] sm:%s910]
    %s913 = ssub.s32 2, 1
    %914 = vst [vmem:[#allocation7] sm:%s913] %v911
    // Predicated region
    $region104: #{custom-call.16} parent=1 // pred_check
      _
    $region105: #{custom-call.16} parent=1 // pred_check_branch
      %916 = sbr.rel (0) target = $region107
    $region106: #{custom-call.16} parent=1 // pred_region
      // Predicated region
      $region108: #{custom-call.16} parent=106 // pred_check
        _
      $region109: #{custom-call.16} parent=106 // pred_check_branch
        %918 = sbr.rel (0) target = $region111
      $region110: #{custom-call.16} parent=106 // pred_region
        %p920 = scmp.gt.s32.totalorder 0, 0
        // Predicated region
        $region112: #{custom-call.16} parent=110 // pred_check
          %p921 = pneg %p920
        $region113: #{custom-call.16} parent=110 // pred_check_branch
          %923 = sbr.rel (%p921) target = $region115
        $region114: #{custom-call.16} parent=110 // pred_region
          %s924 = ssub.s32 0, 1
          %s925 = smul.u32 %s924, 8
          %s926 = scalar_lea.vmem [#allocation5], %s925
          %v927 = vld [vmem:[#allocation5] sm:$0xff]
          // While loop
          $region116: #{custom-call.16} parent=114 // loop_pre_header
            _
          $region117: #{custom-call.16} parent=114 // loop_header
            %s928 = sphi [#allocation5], %s950
            %s929 = sphi %s4, %s951
            %v930 = vphi %v927, %v952
            %s931 = ssub.s32 %s926, 64
            %p932 = scmp.gt.s32.totalorder %s928, %s931
          $region118: #{custom-call.16} parent=114 // loop_header_branch
            %934 = sbr.rel (%p932) target = $region122
          $region119: #{custom-call.16} parent=114 // loop_body
            %935 = vst [vmem:[%s929] sm:$0xff] %v930
            %v936 = vld [vmem:[%s928 + $0x8] sm:$0xff]
            %937 = vst [vmem:[%s929 + $0x8] sm:$0xff] %v936
            %v938 = vld [vmem:[%s928 + $0x10] sm:$0xff]
            %939 = vst [vmem:[%s929 + $0x10] sm:$0xff] %v938
            %v940 = vld [vmem:[%s928 + $0x18] sm:$0xff]
            %941 = vst [vmem:[%s929 + $0x18] sm:$0xff] %v940
            %v942 = vld [vmem:[%s928 + $0x20] sm:$0xff]
            %943 = vst [vmem:[%s929 + $0x20] sm:$0xff] %v942
            %v944 = vld [vmem:[%s928 + $0x28] sm:$0xff]
            %945 = vst [vmem:[%s929 + $0x28] sm:$0xff] %v944
            %v946 = vld [vmem:[%s928 + $0x30] sm:$0xff]
            %947 = vst [vmem:[%s929 + $0x30] sm:$0xff] %v946
            %v948 = vld [vmem:[%s928 + $0x38] sm:$0xff]
            %949 = vst [vmem:[%s929 + $0x38] sm:$0xff] %v948
          $region120: #{custom-call.16} parent=114 // loop_footer
            %s950 = scalar_lea.vmem %s928, 64
            %s951 = scalar_lea.vmem %s929, 64
            %v952 = vld [vmem:[%s928 + $0x40] sm:$0xff]
          $region121: #{custom-call.16} parent=114 // loop_footer_branch
            %953 = sbr.rel target = $region117
          $region122: #{custom-call.16} parent=114 // loop_exit
            _
          // While loop
          $region123: #{custom-call.16} parent=114 // loop_pre_header
            _
          $region124: #{custom-call.16} parent=114 // loop_header
            %s954 = sphi %s928, %s962
            %s955 = sphi %s929, %s963
            %v956 = vphi %v930, %v956
            %p957 = scmp.gt.s32.totalorder %s954, %s926
          $region125: #{custom-call.16} parent=114 // loop_header_branch
            %959 = sbr.rel (%p957) target = $region129
          $region126: #{custom-call.16} parent=114 // loop_body
            %v960 = vld [vmem:[%s954] sm:$0xff]
            %961 = vst [vmem:[%s955] sm:$0xff] %v960
          $region127: #{custom-call.16} parent=114 // loop_footer
            %s962 = scalar_lea.vmem %s954, 8
            %s963 = scalar_lea.vmem %s955, 8
          $region128: #{custom-call.16} parent=114 // loop_footer_branch
            %964 = sbr.rel target = $region124
          $region129: #{custom-call.16} parent=114 // loop_exit
            _
        $region115: #{custom-call.16} parent=110 // pred_fallthru
          _
        %s966 = ssub.s32 2, 1
        %s967 = smul.u32 0, 8
        %s968 = scalar_lea.vmem %s4, %s967
        %s969 = smul.u32 0, 8
        %s970 = scalar_lea.vmem [#allocation5], %s969
        %v971 = vld [vmem:[%s970] sm:%s966]
        %972 = vst [vmem:[%s968] sm:%s966] %v971
      $region111: #{custom-call.16} parent=106 // pred_fallthru
        _
    $region107: #{custom-call.16} parent=1 // pred_fallthru
      _
    // Predicated region
    $region130: #{custom-call.16} parent=1 // pred_check
      _
    $region131: #{custom-call.16} parent=1 // pred_check_branch
      %974 = sbr.rel (0) target = $region133
    $region132: #{custom-call.16} parent=1 // pred_region
      // Predicated region
      $region134: #{custom-call.16} parent=132 // pred_check
        _
      $region135: #{custom-call.16} parent=132 // pred_check_branch
        %976 = sbr.rel (0) target = $region137
      $region136: #{custom-call.16} parent=132 // pred_region
        %p978 = scmp.gt.s32.totalorder 0, 0
        // Predicated region
        $region138: #{custom-call.16} parent=136 // pred_check
          %p979 = pneg %p978
        $region139: #{custom-call.16} parent=136 // pred_check_branch
          %981 = sbr.rel (%p979) target = $region141
        $region140: #{custom-call.16} parent=136 // pred_region
          %s982 = ssub.s32 0, 1
          %s983 = smul.u32 %s982, 8
          %s984 = scalar_lea.vmem [#allocation7], %s983
          %v985 = vld [vmem:[#allocation7] sm:$0xff]
          // While loop
          $region142: #{custom-call.16} parent=140 // loop_pre_header
            _
          $region143: #{custom-call.16} parent=140 // loop_header
            %s986 = sphi [#allocation7], %s1008
            %s987 = sphi %s5, %s1009
            %v988 = vphi %v985, %v1010
            %s989 = ssub.s32 %s984, 64
            %p990 = scmp.gt.s32.totalorder %s986, %s989
          $region144: #{custom-call.16} parent=140 // loop_header_branch
            %992 = sbr.rel (%p990) target = $region148
          $region145: #{custom-call.16} parent=140 // loop_body
            %993 = vst [vmem:[%s987] sm:$0xff] %v988
            %v994 = vld [vmem:[%s986 + $0x8] sm:$0xff]
            %995 = vst [vmem:[%s987 + $0x8] sm:$0xff] %v994
            %v996 = vld [vmem:[%s986 + $0x10] sm:$0xff]
            %997 = vst [vmem:[%s987 + $0x10] sm:$0xff] %v996
            %v998 = vld [vmem:[%s986 + $0x18] sm:$0xff]
            %999 = vst [vmem:[%s987 + $0x18] sm:$0xff] %v998
            %v1000 = vld [vmem:[%s986 + $0x20] sm:$0xff]
            %1001 = vst [vmem:[%s987 + $0x20] sm:$0xff] %v1000
            %v1002 = vld [vmem:[%s986 + $0x28] sm:$0xff]
            %1003 = vst [vmem:[%s987 + $0x28] sm:$0xff] %v1002
            %v1004 = vld [vmem:[%s986 + $0x30] sm:$0xff]
            %1005 = vst [vmem:[%s987 + $0x30] sm:$0xff] %v1004
            %v1006 = vld [vmem:[%s986 + $0x38] sm:$0xff]
            %1007 = vst [vmem:[%s987 + $0x38] sm:$0xff] %v1006
          $region146: #{custom-call.16} parent=140 // loop_footer
            %s1008 = scalar_lea.vmem %s986, 64
            %s1009 = scalar_lea.vmem %s987, 64
            %v1010 = vld [vmem:[%s986 + $0x40] sm:$0xff]
          $region147: #{custom-call.16} parent=140 // loop_footer_branch
            %1011 = sbr.rel target = $region143
          $region148: #{custom-call.16} parent=140 // loop_exit
            _
          // While loop
          $region149: #{custom-call.16} parent=140 // loop_pre_header
            _
          $region150: #{custom-call.16} parent=140 // loop_header
            %s1012 = sphi %s986, %s1020
            %s1013 = sphi %s987, %s1021
            %v1014 = vphi %v988, %v1014
            %p1015 = scmp.gt.s32.totalorder %s1012, %s984
          $region151: #{custom-call.16} parent=140 // loop_header_branch
            %1017 = sbr.rel (%p1015) target = $region155
          $region152: #{custom-call.16} parent=140 // loop_body
            %v1018 = vld [vmem:[%s1012] sm:$0xff]
            %1019 = vst [vmem:[%s1013] sm:$0xff] %v1018
          $region153: #{custom-call.16} parent=140 // loop_footer
            %s1020 = scalar_lea.vmem %s1012, 8
            %s1021 = scalar_lea.vmem %s1013, 8
          $region154: #{custom-call.16} parent=140 // loop_footer_branch
            %1022 = sbr.rel target = $region150
          $region155: #{custom-call.16} parent=140 // loop_exit
            _
        $region141: #{custom-call.16} parent=136 // pred_fallthru
          _
        %s1024 = ssub.s32 2, 1
        %s1025 = smul.u32 0, 8
        %s1026 = scalar_lea.vmem %s5, %s1025
        %s1027 = smul.u32 0, 8
        %s1028 = scalar_lea.vmem [#allocation7], %s1027
        %v1029 = vld [vmem:[%s1028] sm:%s1024]
        %1030 = vst [vmem:[%s1026] sm:%s1024] %v1029
      $region137: #{custom-call.16} parent=132 // pred_fallthru
        _
    $region133: #{custom-call.16} parent=1 // pred_fallthru
      _
    // Predicated region
    $region156: #{custom-call.16} parent=1 // pred_check
      _
    $region157: #{custom-call.16} parent=1 // pred_check_branch
      %1032 = sbr.rel (0) target = $region159
    $region158: #{custom-call.16} parent=1 // pred_region
      %p1034 = scmp.gt.s32.totalorder 1, 0
      // Predicated region
      $region160: #{custom-call.16} parent=158 // pred_check
        %p1035 = pneg %p1034
      $region161: #{custom-call.16} parent=158 // pred_check_branch
        %1037 = sbr.rel (%p1035) target = $region163
      $region162: #{custom-call.16} parent=158 // pred_region
        %s1038 = ssub.s32 1, 1
        %s1039 = smul.u32 %s1038, 8
        %s1040 = scalar_lea.vmem [#allocation8], %s1039
        %v1041 = vld [vmem:[#allocation8] sm:$0xff]
        // While loop
        $region164: #{custom-call.16} parent=162 // loop_pre_header
          _
        $region165: #{custom-call.16} parent=162 // loop_header
          %s1042 = sphi [#allocation8], %s1064
          %s1043 = sphi %s6, %s1065
          %v1044 = vphi %v1041, %v1066
          %s1045 = ssub.s32 %s1040, 64
          %p1046 = scmp.gt.s32.totalorder %s1042, %s1045
        $region166: #{custom-call.16} parent=162 // loop_header_branch
          %1048 = sbr.rel (%p1046) target = $region170
        $region167: #{custom-call.16} parent=162 // loop_body
          %1049 = vst [vmem:[%s1043] sm:$0xff] %v1044
          %v1050 = vld [vmem:[%s1042 + $0x8] sm:$0xff]
          %1051 = vst [vmem:[%s1043 + $0x8] sm:$0xff] %v1050
          %v1052 = vld [vmem:[%s1042 + $0x10] sm:$0xff]
          %1053 = vst [vmem:[%s1043 + $0x10] sm:$0xff] %v1052
          %v1054 = vld [vmem:[%s1042 + $0x18] sm:$0xff]
          %1055 = vst [vmem:[%s1043 + $0x18] sm:$0xff] %v1054
          %v1056 = vld [vmem:[%s1042 + $0x20] sm:$0xff]
          %1057 = vst [vmem:[%s1043 + $0x20] sm:$0xff] %v1056
          %v1058 = vld [vmem:[%s1042 + $0x28] sm:$0xff]
          %1059 = vst [vmem:[%s1043 + $0x28] sm:$0xff] %v1058
          %v1060 = vld [vmem:[%s1042 + $0x30] sm:$0xff]
          %1061 = vst [vmem:[%s1043 + $0x30] sm:$0xff] %v1060
          %v1062 = vld [vmem:[%s1042 + $0x38] sm:$0xff]
          %1063 = vst [vmem:[%s1043 + $0x38] sm:$0xff] %v1062
        $region168: #{custom-call.16} parent=162 // loop_footer
          %s1064 = scalar_lea.vmem %s1042, 64
          %s1065 = scalar_lea.vmem %s1043, 64
          %v1066 = vld [vmem:[%s1042 + $0x40] sm:$0xff]
        $region169: #{custom-call.16} parent=162 // loop_footer_branch
          %1067 = sbr.rel target = $region165
        $region170: #{custom-call.16} parent=162 // loop_exit
          _
        // While loop
        $region171: #{custom-call.16} parent=162 // loop_pre_header
          _
        $region172: #{custom-call.16} parent=162 // loop_header
          %s1068 = sphi %s1042, %s1076
          %s1069 = sphi %s1043, %s1077
          %v1070 = vphi %v1044, %v1070
          %p1071 = scmp.gt.s32.totalorder %s1068, %s1040
        $region173: #{custom-call.16} parent=162 // loop_header_branch
          %1073 = sbr.rel (%p1071) target = $region177
        $region174: #{custom-call.16} parent=162 // loop_body
          %v1074 = vld [vmem:[%s1068] sm:$0xff]
          %1075 = vst [vmem:[%s1069] sm:$0xff] %v1074
        $region175: #{custom-call.16} parent=162 // loop_footer
          %s1076 = scalar_lea.vmem %s1068, 8
          %s1077 = scalar_lea.vmem %s1069, 8
        $region176: #{custom-call.16} parent=162 // loop_footer_branch
          %1078 = sbr.rel target = $region172
        $region177: #{custom-call.16} parent=162 // loop_exit
          _
      $region163: #{custom-call.16} parent=158 // pred_fallthru
        _
      %s1080 = ssub.s32 1, 1
      %s1081 = smul.u32 1, 8
      %s1082 = scalar_lea.vmem %s6, %s1081
      %s1083 = smul.u32 1, 8
      %s1084 = scalar_lea.vmem [#allocation8], %s1083
      %v1085 = vld [vmem:[%s1084] sm:%s1080]
      %1086 = vst [vmem:[%s1082] sm:%s1080] %v1085
    $region159: #{custom-call.16} parent=1 // pred_fallthru
      _
    // Predicated region
    $region178: #{custom-call.16} parent=1 // pred_check
      _
    $region179: #{custom-call.16} parent=1 // pred_check_branch
      %1088 = sbr.rel (0) target = $region181
    $region180: #{custom-call.16} parent=1 // pred_region
      %p1090 = scmp.gt.s32.totalorder 1, 0
      // Predicated region
      $region182: #{custom-call.16} parent=180 // pred_check
        %p1091 = pneg %p1090
      $region183: #{custom-call.16} parent=180 // pred_check_branch
        %1093 = sbr.rel (%p1091) target = $region185
      $region184: #{custom-call.16} parent=180 // pred_region
        %s1094 = ssub.s32 1, 1
        %s1095 = smul.u32 %s1094, 8
        %s1096 = scalar_lea.vmem [#allocation9], %s1095
        %v1097 = vld [vmem:[#allocation9] sm:$0xff]
        // While loop
        $region186: #{custom-call.16} parent=184 // loop_pre_header
          _
        $region187: #{custom-call.16} parent=184 // loop_header
          %s1098 = sphi [#allocation9], %s1120
          %s1099 = sphi %s7, %s1121
          %v1100 = vphi %v1097, %v1122
          %s1101 = ssub.s32 %s1096, 64
          %p1102 = scmp.gt.s32.totalorder %s1098, %s1101
        $region188: #{custom-call.16} parent=184 // loop_header_branch
          %1104 = sbr.rel (%p1102) target = $region192
        $region189: #{custom-call.16} parent=184 // loop_body
          %1105 = vst [vmem:[%s1099] sm:$0xff] %v1100
          %v1106 = vld [vmem:[%s1098 + $0x8] sm:$0xff]
          %1107 = vst [vmem:[%s1099 + $0x8] sm:$0xff] %v1106
          %v1108 = vld [vmem:[%s1098 + $0x10] sm:$0xff]
          %1109 = vst [vmem:[%s1099 + $0x10] sm:$0xff] %v1108
          %v1110 = vld [vmem:[%s1098 + $0x18] sm:$0xff]
          %1111 = vst [vmem:[%s1099 + $0x18] sm:$0xff] %v1110
          %v1112 = vld [vmem:[%s1098 + $0x20] sm:$0xff]
          %1113 = vst [vmem:[%s1099 + $0x20] sm:$0xff] %v1112
          %v1114 = vld [vmem:[%s1098 + $0x28] sm:$0xff]
          %1115 = vst [vmem:[%s1099 + $0x28] sm:$0xff] %v1114
          %v1116 = vld [vmem:[%s1098 + $0x30] sm:$0xff]
          %1117 = vst [vmem:[%s1099 + $0x30] sm:$0xff] %v1116
          %v1118 = vld [vmem:[%s1098 + $0x38] sm:$0xff]
          %1119 = vst [vmem:[%s1099 + $0x38] sm:$0xff] %v1118
        $region190: #{custom-call.16} parent=184 // loop_footer
          %s1120 = scalar_lea.vmem %s1098, 64
          %s1121 = scalar_lea.vmem %s1099, 64
          %v1122 = vld [vmem:[%s1098 + $0x40] sm:$0xff]
        $region191: #{custom-call.16} parent=184 // loop_footer_branch
          %1123 = sbr.rel target = $region187
        $region192: #{custom-call.16} parent=184 // loop_exit
          _
        // While loop
        $region193: #{custom-call.16} parent=184 // loop_pre_header
          _
        $region194: #{custom-call.16} parent=184 // loop_header
          %s1124 = sphi %s1098, %s1132
          %s1125 = sphi %s1099, %s1133
          %v1126 = vphi %v1100, %v1126
          %p1127 = scmp.gt.s32.totalorder %s1124, %s1096
        $region195: #{custom-call.16} parent=184 // loop_header_branch
          %1129 = sbr.rel (%p1127) target = $region199
        $region196: #{custom-call.16} parent=184 // loop_body
          %v1130 = vld [vmem:[%s1124] sm:$0xff]
          %1131 = vst [vmem:[%s1125] sm:$0xff] %v1130
        $region197: #{custom-call.16} parent=184 // loop_footer
          %s1132 = scalar_lea.vmem %s1124, 8
          %s1133 = scalar_lea.vmem %s1125, 8
        $region198: #{custom-call.16} parent=184 // loop_footer_branch
          %1134 = sbr.rel target = $region194
        $region199: #{custom-call.16} parent=184 // loop_exit
          _
      $region185: #{custom-call.16} parent=180 // pred_fallthru
        _
      %s1136 = ssub.s32 1, 1
      %s1137 = smul.u32 1, 8
      %s1138 = scalar_lea.vmem %s7, %s1137
      %s1139 = smul.u32 1, 8
      %s1140 = scalar_lea.vmem [#allocation9], %s1139
      %v1141 = vld [vmem:[%s1140] sm:%s1136]
      %1142 = vst [vmem:[%s1138] sm:%s1136] %v1141
    $region181: #{custom-call.16} parent=1 // pred_fallthru
      _
    // Predicated region
    $region200: #{custom-call.16} parent=1 // pred_check
      _
    $region201: #{custom-call.16} parent=1 // pred_check_branch
      %1144 = sbr.rel (0) target = $region203
    $region202: #{custom-call.16} parent=1 // pred_region
      %p1146 = scmp.gt.s32.totalorder 1, 0
      // Predicated region
      $region204: #{custom-call.16} parent=202 // pred_check
        %p1147 = pneg %p1146
      $region205: #{custom-call.16} parent=202 // pred_check_branch
        %1149 = sbr.rel (%p1147) target = $region207
      $region206: #{custom-call.16} parent=202 // pred_region
        %s1150 = ssub.s32 1, 1
        %s1151 = smul.u32 %s1150, 8
        %s1152 = scalar_lea.vmem [#allocation10], %s1151
        %v1153 = vld [vmem:[#allocation10] sm:$0xff]
        // While loop
        $region208: #{custom-call.16} parent=206 // loop_pre_header
          _
        $region209: #{custom-call.16} parent=206 // loop_header
          %s1154 = sphi [#allocation10], %s1176
          %s1155 = sphi %s8, %s1177
          %v1156 = vphi %v1153, %v1178
          %s1157 = ssub.s32 %s1152, 64
          %p1158 = scmp.gt.s32.totalorder %s1154, %s1157
        $region210: #{custom-call.16} parent=206 // loop_header_branch
          %1160 = sbr.rel (%p1158) target = $region214
        $region211: #{custom-call.16} parent=206 // loop_body
          %1161 = vst [vmem:[%s1155] sm:$0xff] %v1156
          %v1162 = vld [vmem:[%s1154 + $0x8] sm:$0xff]
          %1163 = vst [vmem:[%s1155 + $0x8] sm:$0xff] %v1162
          %v1164 = vld [vmem:[%s1154 + $0x10] sm:$0xff]
          %1165 = vst [vmem:[%s1155 + $0x10] sm:$0xff] %v1164
          %v1166 = vld [vmem:[%s1154 + $0x18] sm:$0xff]
          %1167 = vst [vmem:[%s1155 + $0x18] sm:$0xff] %v1166
          %v1168 = vld [vmem:[%s1154 + $0x20] sm:$0xff]
          %1169 = vst [vmem:[%s1155 + $0x20] sm:$0xff] %v1168
          %v1170 = vld [vmem:[%s1154 + $0x28] sm:$0xff]
          %1171 = vst [vmem:[%s1155 + $0x28] sm:$0xff] %v1170
          %v1172 = vld [vmem:[%s1154 + $0x30] sm:$0xff]
          %1173 = vst [vmem:[%s1155 + $0x30] sm:$0xff] %v1172
          %v1174 = vld [vmem:[%s1154 + $0x38] sm:$0xff]
          %1175 = vst [vmem:[%s1155 + $0x38] sm:$0xff] %v1174
        $region212: #{custom-call.16} parent=206 // loop_footer
          %s1176 = scalar_lea.vmem %s1154, 64
          %s1177 = scalar_lea.vmem %s1155, 64
          %v1178 = vld [vmem:[%s1154 + $0x40] sm:$0xff]
        $region213: #{custom-call.16} parent=206 // loop_footer_branch
          %1179 = sbr.rel target = $region209
        $region214: #{custom-call.16} parent=206 // loop_exit
          _
        // While loop
        $region215: #{custom-call.16} parent=206 // loop_pre_header
          _
        $region216: #{custom-call.16} parent=206 // loop_header
          %s1180 = sphi %s1154, %s1188
          %s1181 = sphi %s1155, %s1189
          %v1182 = vphi %v1156, %v1182
          %p1183 = scmp.gt.s32.totalorder %s1180, %s1152
        $region217: #{custom-call.16} parent=206 // loop_header_branch
          %1185 = sbr.rel (%p1183) target = $region221
        $region218: #{custom-call.16} parent=206 // loop_body
          %v1186 = vld [vmem:[%s1180] sm:$0xff]
          %1187 = vst [vmem:[%s1181] sm:$0xff] %v1186
        $region219: #{custom-call.16} parent=206 // loop_footer
          %s1188 = scalar_lea.vmem %s1180, 8
          %s1189 = scalar_lea.vmem %s1181, 8
        $region220: #{custom-call.16} parent=206 // loop_footer_branch
          %1190 = sbr.rel target = $region216
        $region221: #{custom-call.16} parent=206 // loop_exit
          _
      $region207: #{custom-call.16} parent=202 // pred_fallthru
        _
      %s1192 = ssub.s32 1, 1
      %s1193 = smul.u32 1, 8
      %s1194 = scalar_lea.vmem %s8, %s1193
      %s1195 = smul.u32 1, 8
      %s1196 = scalar_lea.vmem [#allocation10], %s1195
      %v1197 = vld [vmem:[%s1196] sm:%s1192]
      %1198 = vst [vmem:[%s1194] sm:%s1192] %v1197
    $region203: #{custom-call.16} parent=1 // pred_fallthru
      _
    // Predicated region
    $region222: #{custom-call.16} parent=1 // pred_check
      _
    $region223: #{custom-call.16} parent=1 // pred_check_branch
      %1200 = sbr.rel (0) target = $region225
    $region224: #{custom-call.16} parent=1 // pred_region
      %p1202 = scmp.gt.s32.totalorder 1, 0
      // Predicated region
      $region226: #{custom-call.16} parent=224 // pred_check
        %p1203 = pneg %p1202
      $region227: #{custom-call.16} parent=224 // pred_check_branch
        %1205 = sbr.rel (%p1203) target = $region229
      $region228: #{custom-call.16} parent=224 // pred_region
        %s1206 = ssub.s32 1, 1
        %s1207 = smul.u32 %s1206, 8
        %s1208 = scalar_lea.vmem [#allocation11], %s1207
        %v1209 = vld [vmem:[#allocation11] sm:$0xff]
        // While loop
        $region230: #{custom-call.16} parent=228 // loop_pre_header
          _
        $region231: #{custom-call.16} parent=228 // loop_header
          %s1210 = sphi [#allocation11], %s1232
          %s1211 = sphi %s9, %s1233
          %v1212 = vphi %v1209, %v1234
          %s1213 = ssub.s32 %s1208, 64
          %p1214 = scmp.gt.s32.totalorder %s1210, %s1213
        $region232: #{custom-call.16} parent=228 // loop_header_branch
          %1216 = sbr.rel (%p1214) target = $region236
        $region233: #{custom-call.16} parent=228 // loop_body
          %1217 = vst [vmem:[%s1211] sm:$0xff] %v1212
          %v1218 = vld [vmem:[%s1210 + $0x8] sm:$0xff]
          %1219 = vst [vmem:[%s1211 + $0x8] sm:$0xff] %v1218
          %v1220 = vld [vmem:[%s1210 + $0x10] sm:$0xff]
          %1221 = vst [vmem:[%s1211 + $0x10] sm:$0xff] %v1220
          %v1222 = vld [vmem:[%s1210 + $0x18] sm:$0xff]
          %1223 = vst [vmem:[%s1211 + $0x18] sm:$0xff] %v1222
          %v1224 = vld [vmem:[%s1210 + $0x20] sm:$0xff]
          %1225 = vst [vmem:[%s1211 + $0x20] sm:$0xff] %v1224
          %v1226 = vld [vmem:[%s1210 + $0x28] sm:$0xff]
          %1227 = vst [vmem:[%s1211 + $0x28] sm:$0xff] %v1226
          %v1228 = vld [vmem:[%s1210 + $0x30] sm:$0xff]
          %1229 = vst [vmem:[%s1211 + $0x30] sm:$0xff] %v1228
          %v1230 = vld [vmem:[%s1210 + $0x38] sm:$0xff]
          %1231 = vst [vmem:[%s1211 + $0x38] sm:$0xff] %v1230
        $region234: #{custom-call.16} parent=228 // loop_footer
          %s1232 = scalar_lea.vmem %s1210, 64
          %s1233 = scalar_lea.vmem %s1211, 64
          %v1234 = vld [vmem:[%s1210 + $0x40] sm:$0xff]
        $region235: #{custom-call.16} parent=228 // loop_footer_branch
          %1235 = sbr.rel target = $region231
        $region236: #{custom-call.16} parent=228 // loop_exit
          _
        // While loop
        $region237: #{custom-call.16} parent=228 // loop_pre_header
          _
        $region238: #{custom-call.16} parent=228 // loop_header
          %s1236 = sphi %s1210, %s1244
          %s1237 = sphi %s1211, %s1245
          %v1238 = vphi %v1212, %v1238
          %p1239 = scmp.gt.s32.totalorder %s1236, %s1208
        $region239: #{custom-call.16} parent=228 // loop_header_branch
          %1241 = sbr.rel (%p1239) target = $region243
        $region240: #{custom-call.16} parent=228 // loop_body
          %v1242 = vld [vmem:[%s1236] sm:$0xff]
          %1243 = vst [vmem:[%s1237] sm:$0xff] %v1242
        $region241: #{custom-call.16} parent=228 // loop_footer
          %s1244 = scalar_lea.vmem %s1236, 8
          %s1245 = scalar_lea.vmem %s1237, 8
        $region242: #{custom-call.16} parent=228 // loop_footer_branch
          %1246 = sbr.rel target = $region238
        $region243: #{custom-call.16} parent=228 // loop_exit
          _
      $region229: #{custom-call.16} parent=224 // pred_fallthru
        _
      %s1248 = ssub.s32 1, 1
      %s1249 = smul.u32 1, 8
      %s1250 = scalar_lea.vmem %s9, %s1249
      %s1251 = smul.u32 1, 8
      %s1252 = scalar_lea.vmem [#allocation11], %s1251
      %v1253 = vld [vmem:[%s1252] sm:%s1248]
      %1254 = vst [vmem:[%s1250] sm:%s1248] %v1253
    $region225: #{custom-call.16} parent=1 // pred_fallthru
      _
    // Predicated region
    $region244: #{custom-call.16} parent=1 // pred_check
      _
    $region245: #{custom-call.16} parent=1 // pred_check_branch
      %1256 = sbr.rel (0) target = $region247
    $region246: #{custom-call.16} parent=1 // pred_region
      _
    $region247: #{custom-call.16} parent=1 // pred_fallthru
      _
    // Predicated region
    $region248: #{custom-call.16} parent=1 // pred_check
      _
    $region249: #{custom-call.16} parent=1 // pred_check_branch
      %1258 = sbr.rel (0) target = $region251
    $region250: #{custom-call.16} parent=1 // pred_region
      _
    $region251: #{custom-call.16} parent=1 // pred_fallthru
      _

// kernel: iso_transform_forward.5
$region0: #{iso_transform_forward.5}
  #allocation0 [shape = 'u32[]', space=smem, size = 0x4, offset = 0x4, fixed_abs, tag = 'smem constant byte address 0x4 - core index']
  #allocation1 [shape = 'u32[72,128]{1,0:T(1,128)}', space=vmem, size = 0x9000, scoped, tag = 'internal scratch']
  %s0 = inlined_call_operand.vmem [shape: f32[16,16], index: 0, kind: input, shape index: {}]
  %s1 = inlined_call_operand.vmem [shape: f32[16,1], index: 1, kind: input, shape index: {}]
  %s2 = inlined_call_operand.vmem [shape: f32[16,16], index: 2, kind: input, shape index: {}]
  %s3 = inlined_call_operand.vmem [shape: f32[16,32], index: 3, kind: input, shape index: {}, may-alias: {3,4}]
  %s4 = inlined_call_operand.vmem [shape: f32[16,32], index: 4, kind: input, shape index: {}, may-alias: {3,4}]
  %s5 = inlined_call_operand.vmem [shape: f32[16,16], index: 5, kind: input, shape index: {}]
  %s6 = inlined_call_operand.vmem [shape: f32[16,16], index: 6, kind: output, shape index: {}]
  %s7 = sld [smem:[#allocation0]]
  $region34: #{iso_transform_forward.5} parent=0
    _
  %s9 = ssub.s32 1, %s7
  %s10 = scalar_select 0, %s9, %s7
  // Predicated region
  $region2: #{iso_transform_forward.5} parent=0 // pred_check
    _
  $region3: #{iso_transform_forward.5} parent=0 // pred_check_branch
    %12 = sbr.rel (0) target = $region5
  $region4: #{iso_transform_forward.5} parent=0 // pred_region
    _
  $region5: #{iso_transform_forward.5} parent=0 // pred_fallthru
    _
  // Predicated region
  $region6: #{iso_transform_forward.5} parent=0 // pred_check
    _
  $region7: #{iso_transform_forward.5} parent=0 // pred_check_branch
    %14 = sbr.rel (0) target = $region9
  $region8: #{iso_transform_forward.5} parent=0 // pred_region
    _
  $region9: #{iso_transform_forward.5} parent=0 // pred_fallthru
    _
  // Predicated region
  $region10: #{iso_transform_forward.5} parent=0 // pred_check
    _
  $region11: #{iso_transform_forward.5} parent=0 // pred_check_branch
    %16 = sbr.rel (0) target = $region13
  $region12: #{iso_transform_forward.5} parent=0 // pred_region
    _
  $region13: #{iso_transform_forward.5} parent=0 // pred_fallthru
    _
  // Predicated region
  $region14: #{iso_transform_forward.5} parent=0 // pred_check
    _
  $region15: #{iso_transform_forward.5} parent=0 // pred_check_branch
    %18 = sbr.rel (0) target = $region17
  $region16: #{iso_transform_forward.5} parent=0 // pred_region
    _
  $region17: #{iso_transform_forward.5} parent=0 // pred_fallthru
    _
  // Predicated region
  $region18: #{iso_transform_forward.5} parent=0 // pred_check
    _
  $region19: #{iso_transform_forward.5} parent=0 // pred_check_branch
    %20 = sbr.rel (0) target = $region21
  $region20: #{iso_transform_forward.5} parent=0 // pred_region
    _
  $region21: #{iso_transform_forward.5} parent=0 // pred_fallthru
    _
  // Predicated region
  $region22: #{iso_transform_forward.5} parent=0 // pred_check
    _
  $region23: #{iso_transform_forward.5} parent=0 // pred_check_branch
    %22 = sbr.rel (0) target = $region25
  $region24: #{iso_transform_forward.5} parent=0 // pred_region
    _
  $region25: #{iso_transform_forward.5} parent=0 // pred_fallthru
    _
  %v23 = vld [vmem:[%s0] sm:$0xff]
  %v24 = vld [vmem:[%s0 + $0x8] sm:$0xff]
  %v25 = vld [vmem:[%s1] sm:$0xff]
  %v26 = vld [vmem:[%s1 + $0x8] sm:$0xff]
  %28 = vset.pattern.permute.xlu0 0
  %29 = vperm.xlu0 %28, %v25
  %v30 = vpop.permute.xlu0 %29
  %33 = vset.pattern.permute.xlu0 0
  %34 = vperm.xlu0 %33, %v26
  %v35 = vpop.permute.xlu0 %34
  %vm37 = vcmp.ge.f32.partialorder %v23, %v30
  %vm38 = vcmp.ge.f32.partialorder %v24, %v35
  %v39 = vsel %vm37, %v23, 0.0
  %v40 = vsel %vm38, %v24, 0.0
  %vm41 = vcmask 130048
  %v42 = vsel %vm41, %v39, 0.0
  %43 = vadd.xlane.f32.xlu0 %v42
  %v44 = vpop.xlane.xlu0 %43
  %v45 = vsel %vm41, %v40, 0.0
  %46 = vadd.xlane.f32.xlu0 %v45
  %v47 = vpop.xlane.xlu0 %46
  %vm48 = vcmp.gt.f32.partialorder %v44, 0.0
  %vm49 = vcmp.gt.f32.partialorder %v47, 0.0
  %v50 = vmax.f32 %v44, 1e-12
  %v51 = vmax.f32 %v47, 1e-12
  %v52 = vrsqrt.pop %v50
  %v53 = vmul.f32 %v52, %v50
  %v54 = vmul.f32 %v53, %v52
  %v55 = vmul.f32 0.5, %v54
  %v56 = vsub.f32 1.5, %v55
  %v57 = vmul.f32 %v52, %v56
  %vm58 = vweird.f32 %v50
  %vm59 = vweird.f32 %v52
  %vm60 = vmor %vm58, %vm59
  %v61 = vsel %vm60, %v52, %v57
  %v62 = vrsqrt.pop %v51
  %v63 = vmul.f32 %v62, %v51
  %v64 = vmul.f32 %v63, %v62
  %v65 = vmul.f32 0.5, %v64
  %v66 = vsub.f32 1.5, %v65
  %v67 = vmul.f32 %v62, %v66
  %vm68 = vweird.f32 %v51
  %vm69 = vweird.f32 %v62
  %vm70 = vmor %vm68, %vm69
  %v71 = vsel %vm70, %v62, %v67
  %v72 = vsel %vm48, %v61, 0.0
  %v73 = vsel %vm49, %v71, 0.0
  %v74 = vmul.f32 %v72, %v39
  %v75 = vmul.f32 %v73, %v40
  %76 = vxpose.xlu0.b32.start [1/16] %v74, 128
  %77 = vxpose.xlu0.b32.cont [2/16] %v75, 128
  %78 = vxpose.xlu0.b32.cont [3/16] 0.0, 128
  %79 = vxpose.xlu0.b32.cont [4/16] 0.0, 128
  %80 = vxpose.xlu0.b32.cont [5/16] 0.0, 128
  %81 = vxpose.xlu0.b32.cont [6/16] 0.0, 128
  %82 = vxpose.xlu0.b32.cont [7/16] 0.0, 128
  %83 = vxpose.xlu0.b32.cont [8/16] 0.0, 128
  %84 = vxpose.xlu0.b32.cont [9/16] 0.0, 128
  %85 = vxpose.xlu0.b32.cont [10/16] 0.0, 128
  %86 = vxpose.xlu0.b32.cont [11/16] 0.0, 128
  %87 = vxpose.xlu0.b32.cont [12/16] 0.0, 128
  %88 = vxpose.xlu0.b32.cont [13/16] 0.0, 128
  %89 = vxpose.xlu0.b32.cont [14/16] 0.0, 128
  %90 = vxpose.xlu0.b32.cont [15/16] 0.0, 128
  %91 = vxpose.xlu0.b32.end [16/16] 0.0, 128
  %v92 = vpop.trf.xlu0
  %v93 = vpop.trf.xlu0
  %v94 = vpop.trf.xlu0
  %v95 = vpop.trf.xlu0
  %v96 = vpop.trf.xlu0
  %v97 = vpop.trf.xlu0
  %v98 = vpop.trf.xlu0
  %v99 = vpop.trf.xlu0
  %v100 = vpop.trf.xlu0
  %v101 = vpop.trf.xlu0
  %v102 = vpop.trf.xlu0
  %v103 = vpop.trf.xlu0
  %v104 = vpop.trf.xlu0
  %v105 = vpop.trf.xlu0
  %v106 = vpop.trf.xlu0
  %v107 = vpop.trf.xlu0
  %v108 = vmul.f32 %v72, %v92
  %v109 = vmul.f32 %v73, %v93
  %110 = vxpose.xlu0.b32.start [1/16] %v108, 128
  %111 = vxpose.xlu0.b32.cont [2/16] %v109, 128
  %112 = vxpose.xlu0.b32.cont [3/16] 0.0, 128
  %113 = vxpose.xlu0.b32.cont [4/16] 0.0, 128
  %114 = vxpose.xlu0.b32.cont [5/16] 0.0, 128
  %115 = vxpose.xlu0.b32.cont [6/16] 0.0, 128
  %116 = vxpose.xlu0.b32.cont [7/16] 0.0, 128
  %117 = vxpose.xlu0.b32.cont [8/16] 0.0, 128
  %118 = vxpose.xlu0.b32.cont [9/16] 0.0, 128
  %119 = vxpose.xlu0.b32.cont [10/16] 0.0, 128
  %120 = vxpose.xlu0.b32.cont [11/16] 0.0, 128
  %121 = vxpose.xlu0.b32.cont [12/16] 0.0, 128
  %122 = vxpose.xlu0.b32.cont [13/16] 0.0, 128
  %123 = vxpose.xlu0.b32.cont [14/16] 0.0, 128
  %124 = vxpose.xlu0.b32.cont [15/16] 0.0, 128
  %125 = vxpose.xlu0.b32.end [16/16] 0.0, 128
  %v126 = vpop.trf.xlu0
  %v127 = vpop.trf.xlu0
  %v128 = vpop.trf.xlu0
  %v129 = vpop.trf.xlu0
  %v130 = vpop.trf.xlu0
  %v131 = vpop.trf.xlu0
  %v132 = vpop.trf.xlu0
  %v133 = vpop.trf.xlu0
  %v134 = vpop.trf.xlu0
  %v135 = vpop.trf.xlu0
  %v136 = vpop.trf.xlu0
  %v137 = vpop.trf.xlu0
  %v138 = vpop.trf.xlu0
  %v139 = vpop.trf.xlu0
  %v140 = vpop.trf.xlu0
  %v141 = vpop.trf.xlu0
  %v142 = vld [vmem:[%s2] sm:$0xff]
  %v143 = vld [vmem:[%s2 + $0x8] sm:$0xff]
  %v145 = vsel %vm41, %v126, 0
  %v148 = vsel %vm41, %v127, 0
  %150 = vmatpush.msra.mxu0 0.0
  %151 = vmatpush.msra.mxu0 0.0
  %152 = vmatpush.msra.mxu0 0.0
  %153 = vmatpush.msra.mxu0 0.0
  %154 = vmatpush.msra.mxu0 0.0
  %155 = vmatpush.msra.mxu0 0.0
  %156 = vmatpush.msra.mxu0 0.0
  %157 = vmatpush.msra.mxu0 0.0
  %158 = vmatpush.msra.mxu0 0.0
  %159 = vmatpush.msra.mxu0 0.0
  %160 = vmatpush.msra.mxu0 0.0
  %161 = vmatpush.msra.mxu0 0.0
  %162 = vmatpush.msra.mxu0 0.0
  %163 = vmatpush.msra.mxu0 0.0
  %164 = vmatpush.msra.mxu0 %v127
  %165 = vmatpush.msra.mxu0 %v126
  %166 = vmatmul.f32.gmra.mxu0 %v145
  %v167 = vpop.f32.mrf.mxu0
  %v168 = vadd.f32 0.0, %v167
  %169 = vmatmul.f32.gmra.mxu0 %v148
  %v170 = vpop.f32.mrf.mxu0
  %v171 = vadd.f32 0.0, %v170
  %172 = vdwg.mxu0
  %v174 = vsel %vm41, %v142, 0
  %v177 = vsel %vm41, %v143, 0
  %179 = vmatpush.msra.mxu0 0.0
  %180 = vmatpush.msra.mxu0 0.0
  %181 = vmatpush.msra.mxu0 0.0
  %182 = vmatpush.msra.mxu0 0.0
  %183 = vmatpush.msra.mxu0 0.0
  %184 = vmatpush.msra.mxu0 0.0
  %185 = vmatpush.msra.mxu0 0.0
  %186 = vmatpush.msra.mxu0 0.0
  %187 = vmatpush.msra.mxu0 0.0
  %188 = vmatpush.msra.mxu0 0.0
  %189 = vmatpush.msra.mxu0 0.0
  %190 = vmatpush.msra.mxu0 0.0
  %191 = vmatpush.msra.mxu0 0.0
  %192 = vmatpush.msra.mxu0 0.0
  %193 = vmatpush.msra.mxu0 %v143
  %194 = vmatpush.msra.mxu0 %v142
  %195 = vmatmul.f32.gmra.mxu0 %v174
  %v196 = vpop.f32.mrf.mxu0
  %v197 = vadd.f32 %v168, %v196
  %198 = vmatmul.f32.gmra.mxu0 %v177
  %v199 = vpop.f32.mrf.mxu0
  %v200 = vadd.f32 %v171, %v199
  %201 = vdwg.mxu0
  %v202 = vld [vmem:[%s4] sm:$0xff]
  %v203 = vld [vmem:[%s4 + $0x8] sm:$0xff]
  %v205 = vsel %vm41, %v197, 0
  %v208 = vsel %vm41, %v200, 0
  %210 = vmatpush.msra.mxu0 0.0
  %211 = vmatpush.msra.mxu0 0.0
  %212 = vmatpush.msra.mxu0 0.0
  %213 = vmatpush.msra.mxu0 0.0
  %214 = vmatpush.msra.mxu0 0.0
  %215 = vmatpush.msra.mxu0 0.0
  %216 = vmatpush.msra.mxu0 0.0
  %217 = vmatpush.msra.mxu0 0.0
  %218 = vmatpush.msra.mxu0 0.0
  %219 = vmatpush.msra.mxu0 0.0
  %220 = vmatpush.msra.mxu0 0.0
  %221 = vmatpush.msra.mxu0 0.0
  %222 = vmatpush.msra.mxu0 0.0
  %223 = vmatpush.msra.mxu0 0.0
  %224 = vmatpush.msra.mxu0 %v203
  %225 = vmatpush.msra.mxu0 %v202
  %226 = vmatmul.f32.gmra.mxu0 %v205
  %v227 = vpop.f32.mrf.mxu0
  %v228 = vadd.f32 0.0, %v227
  %229 = vmatmul.f32.gmra.mxu0 %v208
  %v230 = vpop.f32.mrf.mxu0
  %v231 = vadd.f32 0.0, %v230
  %232 = vdwg.mxu0
  %v233 = vld [vmem:[%s3] sm:$0xff]
  %v234 = vld [vmem:[%s3 + $0x8] sm:$0xff]
  %vm235 = vcmask 261120
  %v237 = vsel %vm235, %v233, 0
  %v240 = vsel %vm235, %v234, 0
  %v243 = vsel %vm235, %v228, 0
  %v246 = vsel %vm235, %v231, 0
  %248 = vmatpush.xpose.msra.mxu0 0.0
  %249 = vmatpush.xpose.msra.mxu0 0.0
  %250 = vmatpush.xpose.msra.mxu0 0.0
  %251 = vmatpush.xpose.msra.mxu0 0.0
  %252 = vmatpush.xpose.msra.mxu0 0.0
  %253 = vmatpush.xpose.msra.mxu0 0.0
  %254 = vmatpush.xpose.msra.mxu0 0.0
  %255 = vmatpush.xpose.msra.mxu0 0.0
  %256 = vmatpush.xpose.msra.mxu0 0.0
  %257 = vmatpush.xpose.msra.mxu0 0.0
  %258 = vmatpush.xpose.msra.mxu0 0.0
  %259 = vmatpush.xpose.msra.mxu0 0.0
  %260 = vmatpush.xpose.msra.mxu0 0.0
  %261 = vmatpush.xpose.msra.mxu0 0.0
  %262 = vmatpush.xpose.msra.mxu0 %v246
  %263 = vmatpush.xpose.msra.mxu0 %v243
  %264 = vmatmul.f32.gmra.mxu0 %v237
  %v265 = vpop.f32.mrf.mxu0
  %v266 = vadd.f32 0.0, %v265
  %267 = vmatmul.f32.gmra.mxu0 %v240
  %v268 = vpop.f32.mrf.mxu0
  %v269 = vadd.f32 0.0, %v268
  %270 = vdwg.mxu0
  %271 = vxpose.xlu0.b32.start [1/16] %v266, 128
  %272 = vxpose.xlu0.b32.cont [2/16] %v269, 128
  %273 = vxpose.xlu0.b32.cont [3/16] 0.0, 128
  %274 = vxpose.xlu0.b32.cont [4/16] 0.0, 128
  %275 = vxpose.xlu0.b32.cont [5/16] 0.0, 128
  %276 = vxpose.xlu0.b32.cont [6/16] 0.0, 128
  %277 = vxpose.xlu0.b32.cont [7/16] 0.0, 128
  %278 = vxpose.xlu0.b32.cont [8/16] 0.0, 128
  %279 = vxpose.xlu0.b32.cont [9/16] 0.0, 128
  %280 = vxpose.xlu0.b32.cont [10/16] 0.0, 128
  %281 = vxpose.xlu0.b32.cont [11/16] 0.0, 128
  %282 = vxpose.xlu0.b32.cont [12/16] 0.0, 128
  %283 = vxpose.xlu0.b32.cont [13/16] 0.0, 128
  %284 = vxpose.xlu0.b32.cont [14/16] 0.0, 128
  %285 = vxpose.xlu0.b32.cont [15/16] 0.0, 128
  %286 = vxpose.xlu0.b32.end [16/16] 0.0, 128
  %v287 = vpop.trf.xlu0
  %v288 = vpop.trf.xlu0
  %v289 = vpop.trf.xlu0
  %v290 = vpop.trf.xlu0
  %v291 = vpop.trf.xlu0
  %v292 = vpop.trf.xlu0
  %v293 = vpop.trf.xlu0
  %v294 = vpop.trf.xlu0
  %v295 = vpop.trf.xlu0
  %v296 = vpop.trf.xlu0
  %v297 = vpop.trf.xlu0
  %v298 = vpop.trf.xlu0
  %v299 = vpop.trf.xlu0
  %v300 = vpop.trf.xlu0
  %v301 = vpop.trf.xlu0
  %v302 = vpop.trf.xlu0
  %v303 = vadd.f32 %v266, %v287
  %v304 = vadd.f32 %v269, %v288
  %v305 = vld [vmem:[%s5] sm:$0xff]
  %v306 = vld [vmem:[%s5 + $0x8] sm:$0xff]
  %v308 = vsel %vm41, %v305, 0
  %v311 = vsel %vm41, %v306, 0
  %313 = vmatpush.msra.mxu0 0.0
  %314 = vmatpush.msra.mxu0 0.0
  %315 = vmatpush.msra.mxu0 0.0
  %316 = vmatpush.msra.mxu0 0.0
  %317 = vmatpush.msra.mxu0 0.0
  %318 = vmatpush.msra.mxu0 0.0
  %319 = vmatpush.msra.mxu0 0.0
  %320 = vmatpush.msra.mxu0 0.0
  %321 = vmatpush.msra.mxu0 0.0
  %322 = vmatpush.msra.mxu0 0.0
  %323 = vmatpush.msra.mxu0 0.0
  %324 = vmatpush.msra.mxu0 0.0
  %325 = vmatpush.msra.mxu0 0.0
  %326 = vmatpush.msra.mxu0 0.0
  %327 = vmatpush.msra.mxu0 %v304
  %328 = vmatpush.msra.mxu0 %v303
  %329 = vmatmul.f32.gmra.mxu0 %v308
  %v330 = vpop.f32.mrf.mxu0
  %v331 = vadd.f32 0.0, %v330
  %332 = vmatmul.f32.gmra.mxu0 %v311
  %v333 = vpop.f32.mrf.mxu0
  %v334 = vadd.f32 0.0, %v333
  %335 = vdwg.mxu0
  %336 = vxpose.xlu0.b32.start [1/16] %v331, 128
  %337 = vxpose.xlu0.b32.cont [2/16] %v334, 128
  %338 = vxpose.xlu0.b32.cont [3/16] 0.0, 128
  %339 = vxpose.xlu0.b32.cont [4/16] 0.0, 128
  %340 = vxpose.xlu0.b32.cont [5/16] 0.0, 128
  %341 = vxpose.xlu0.b32.cont [6/16] 0.0, 128
  %342 = vxpose.xlu0.b32.cont [7/16] 0.0, 128
  %343 = vxpose.xlu0.b32.cont [8/16] 0.0, 128
  %344 = vxpose.xlu0.b32.cont [9/16] 0.0, 128
  %345 = vxpose.xlu0.b32.cont [10/16] 0.0, 128
  %346 = vxpose.xlu0.b32.cont [11/16] 0.0, 128
  %347 = vxpose.xlu0.b32.cont [12/16] 0.0, 128
  %348 = vxpose.xlu0.b32.cont [13/16] 0.0, 128
  %349 = vxpose.xlu0.b32.cont [14/16] 0.0, 128
  %350 = vxpose.xlu0.b32.cont [15/16] 0.0, 128
  %351 = vxpose.xlu0.b32.end [16/16] 0.0, 128
  %v352 = vpop.trf.xlu0
  %v353 = vpop.trf.xlu0
  %v354 = vpop.trf.xlu0
  %v355 = vpop.trf.xlu0
  %v356 = vpop.trf.xlu0
  %v357 = vpop.trf.xlu0
  %v358 = vpop.trf.xlu0
  %v359 = vpop.trf.xlu0
  %v360 = vpop.trf.xlu0
  %v361 = vpop.trf.xlu0
  %v362 = vpop.trf.xlu0
  %v363 = vpop.trf.xlu0
  %v364 = vpop.trf.xlu0
  %v365 = vpop.trf.xlu0
  %v366 = vpop.trf.xlu0
  %v367 = vpop.trf.xlu0
  %v368 = vadd.f32 %v331, %v352
  %v369 = vadd.f32 %v334, %v353
  %v370 = vmul.f32 %v368, 0.5
  %v371 = vmul.f32 %v369, 0.5
  %372 = vst.msk [vmem:[%s6] sm:$0xff] %vm41, %v370
  %373 = vst.msk [vmem:[%s6 + $0x8] sm:$0xff] %vm41, %v371
  // Predicated region
  $region26: #{iso_transform_forward.5} parent=0 // pred_check
    _
  $region27: #{iso_transform_forward.5} parent=0 // pred_check_branch
    %375 = sbr.rel (0) target = $region29
  $region28: #{iso_transform_forward.5} parent=0 // pred_region
    _
  $region29: #{iso_transform_forward.5} parent=0 // pred_fallthru
    _
  // Predicated region
  $region30: #{iso_transform_forward.5} parent=0 // pred_check
    _
  $region31: #{iso_transform_forward.5} parent=0 // pred_check_branch
    %377 = sbr.rel (0) target = $region33
  $region32: #{iso_transform_forward.5} parent=0 // pred_region
    _
  $region33: #{iso_transform_forward.5} parent=0 // pred_fallthru
    _

// kernel: iso_transform_forward.6
$region0: #{iso_transform_forward.6}
  #allocation0 [shape = 'u32[]', space=smem, size = 0x4, offset = 0x4, fixed_abs, tag = 'smem constant byte address 0x4 - core index']
  #allocation1 [shape = 'u32[72,128]{1,0:T(1,128)}', space=vmem, size = 0x9000, scoped, tag = 'internal scratch']
  %s0 = inlined_call_operand.vmem [shape: f32[16,16], index: 0, kind: input, shape index: {}]
  %s1 = inlined_call_operand.vmem [shape: f32[1,16], index: 1, kind: input, shape index: {}]
  %s2 = inlined_call_operand.vmem [shape: f32[16,16], index: 2, kind: output, shape index: {}]
  %s3 = sld [smem:[#allocation0]]
  $region18: #{iso_transform_forward.6} parent=0
    _
  %s5 = ssub.s32 1, %s3
  %s6 = scalar_select 0, %s5, %s3
  // Predicated region
  $region2: #{iso_transform_forward.6} parent=0 // pred_check
    _
  $region3: #{iso_transform_forward.6} parent=0 // pred_check_branch
    %8 = sbr.rel (0) target = $region5
  $region4: #{iso_transform_forward.6} parent=0 // pred_region
    _
  $region5: #{iso_transform_forward.6} parent=0 // pred_fallthru
    _
  // Predicated region
  $region6: #{iso_transform_forward.6} parent=0 // pred_check
    _
  $region7: #{iso_transform_forward.6} parent=0 // pred_check_branch
    %10 = sbr.rel (0) target = $region9
  $region8: #{iso_transform_forward.6} parent=0 // pred_region
    _
  $region9: #{iso_transform_forward.6} parent=0 // pred_fallthru
    _
  %v11 = vld [vmem:[%s0] sm:$0xff]
  %v12 = vld [vmem:[%s0 + $0x8] sm:$0xff]
  %v13 = vld [vmem:[%s1] sm:$0x1]
  %v15 = vperm.slane %v13, 0
  %v17 = vmul.f32 %v11, %v15
  %v18 = vmul.f32 %v12, %v15
  %vm19 = vcmask 130048
  %v21 = vsel %vm19, %v17, 0
  %v24 = vsel %vm19, %v18, 0
  %v27 = vsel %vm19, %v11, 0
  %v30 = vsel %vm19, %v12, 0
  %32 = vmatpush.xpose.msra.mxu0 0.0
  %33 = vmatpush.xpose.msra.mxu0 0.0
  %34 = vmatpush.xpose.msra.mxu0 0.0
  %35 = vmatpush.xpose.msra.mxu0 0.0
  %36 = vmatpush.xpose.msra.mxu0 0.0
  %37 = vmatpush.xpose.msra.mxu0 0.0
  %38 = vmatpush.xpose.msra.mxu0 0.0
  %39 = vmatpush.xpose.msra.mxu0 0.0
  %40 = vmatpush.xpose.msra.mxu0 0.0
  %41 = vmatpush.xpose.msra.mxu0 0.0
  %42 = vmatpush.xpose.msra.mxu0 0.0
  %43 = vmatpush.xpose.msra.mxu0 0.0
  %44 = vmatpush.xpose.msra.mxu0 0.0
  %45 = vmatpush.xpose.msra.mxu0 0.0
  %46 = vmatpush.xpose.msra.mxu0 %v30
  %47 = vmatpush.xpose.msra.mxu0 %v27
  %48 = vmatmul.f32.gmra.mxu0 %v21
  %v49 = vpop.f32.mrf.mxu0
  %v50 = vadd.f32 0.0, %v49
  %51 = vmatmul.f32.gmra.mxu0 %v24
  %v52 = vpop.f32.mrf.mxu0
  %v53 = vadd.f32 0.0, %v52
  %54 = vdwg.mxu0
  %v55 = vlaneseq
  %v56 = vshrl.u32 %v55, 7
  %v57 = vadd.s32 %v56, 8
  %v58 = vlaneseq
  %v59 = vand.u32 %v58, 127
  %vm60 = vcmp.eq.s32.totalorder %v56, %v59
  %vm61 = vcmp.eq.s32.totalorder %v57, %v59
  %v62 = vsel %vm60, 0.0, %v50
  %v63 = vsel %vm61, 0.0, %v53
  %v64 = vmax.f32 %v62, 0.0
  %v65 = vmax.f32 %v63, 0.0
  %66 = vst.msk [vmem:[%s2] sm:$0xff] %vm19, %v64
  %67 = vst.msk [vmem:[%s2 + $0x8] sm:$0xff] %vm19, %v65
  // Predicated region
  $region10: #{iso_transform_forward.6} parent=0 // pred_check
    _
  $region11: #{iso_transform_forward.6} parent=0 // pred_check_branch
    %69 = sbr.rel (0) target = $region13
  $region12: #{iso_transform_forward.6} parent=0 // pred_region
    _
  $region13: #{iso_transform_forward.6} parent=0 // pred_fallthru
    _
  // Predicated region
  $region14: #{iso_transform_forward.6} parent=0 // pred_check
    _
  $region15: #{iso_transform_forward.6} parent=0 // pred_check_branch
    %71 = sbr.rel (0) target = $region17
  $region16: #{iso_transform_forward.6} parent=0 // pred_region
    _
  $region17: #{iso_transform_forward.6} parent=0 // pred_fallthru
    _

// kernel: iso_transform_forward.7
$region0: #{iso_transform_forward.7}
  #allocation0 [shape = 'u32[]', space=smem, size = 0x4, offset = 0x4, fixed_abs, tag = 'smem constant byte address 0x4 - core index']
  #allocation1 [shape = 'u32[72,128]{1,0:T(1,128)}', space=vmem, size = 0x9000, scoped, tag = 'internal scratch']
  %s0 = inlined_call_operand.vmem [shape: f32[16,16], index: 0, kind: input, shape index: {}]
  %s1 = inlined_call_operand.vmem [shape: f32[16,1], index: 1, kind: input, shape index: {}]
  %s2 = inlined_call_operand.vmem [shape: f32[16,16], index: 2, kind: input, shape index: {}]
  %s3 = inlined_call_operand.hbm [shape: f32[16,16], index: 3, kind: output, shape index: {}]
  %s4 = sld [smem:[#allocation0]]
  $region22: #{iso_transform_forward.7} parent=0
    _
  %s6 = ssub.s32 1, %s4
  %s7 = scalar_select 0, %s6, %s4
  $region1: #{iso_transform_forward.7} parent=0
    #allocation2 [shape = 'u8[8192]{0}', space=vmem, size = 0x2000, scoped, tag = 'output window, operand 0, single buffered']
    #allocation3 [shape = 's32[1]{0}', space=sflag, size = 0x4, scoped, tag = 'scoped memory for iso_transform_forward.7']
    %8 = vsyncpa [#allocation3], 0
    // Predicated region
    $region2: #{iso_transform_forward.7} parent=1 // pred_check
      _
    $region3: #{iso_transform_forward.7} parent=1 // pred_check_branch
      %10 = sbr.rel (0) target = $region5
    $region4: #{iso_transform_forward.7} parent=1 // pred_region
      _
    $region5: #{iso_transform_forward.7} parent=1 // pred_fallthru
      _
    // Predicated region
    $region6: #{iso_transform_forward.7} parent=1 // pred_check
      _
    $region7: #{iso_transform_forward.7} parent=1 // pred_check_branch
      %12 = sbr.rel (0) target = $region9
    $region8: #{iso_transform_forward.7} parent=1 // pred_region
      _
    $region9: #{iso_transform_forward.7} parent=1 // pred_fallthru
      _
    // Predicated region
    $region10: #{iso_transform_forward.7} parent=1 // pred_check
      _
    $region11: #{iso_transform_forward.7} parent=1 // pred_check_branch
      %14 = sbr.rel (0) target = $region13
    $region12: #{iso_transform_forward.7} parent=1 // pred_region
      _
    $region13: #{iso_transform_forward.7} parent=1 // pred_fallthru
      _
    %v15 = vld [vmem:[%s0] sm:$0xff]
    %v16 = vld [vmem:[%s0 + $0x8] sm:$0xff]
    %v17 = vld [vmem:[%s1] sm:$0xff]
    %v18 = vld [vmem:[%s1 + $0x8] sm:$0xff]
    %20 = vset.pattern.permute.xlu0 0
    %21 = vperm.xlu0 %20, %v17
    %v22 = vpop.permute.xlu0 %21
    %25 = vset.pattern.permute.xlu0 0
    %26 = vperm.xlu0 %25, %v18
    %v27 = vpop.permute.xlu0 %26
    %vm29 = vcmp.ge.f32.partialorder %v15, %v22
    %vm30 = vcmp.ge.f32.partialorder %v16, %v27
    %v31 = vsel %vm29, %v15, 0.0
    %v32 = vsel %vm30, %v16, 0.0
    %vm33 = vcmask 130048
    %v34 = vsel %vm33, %v31, 0.0
    %35 = vadd.xlane.f32.xlu0 %v34
    %v36 = vpop.xlane.xlu0 %35
    %v37 = vsel %vm33, %v32, 0.0
    %38 = vadd.xlane.f32.xlu0 %v37
    %v39 = vpop.xlane.xlu0 %38
    %vm40 = vcmp.gt.f32.partialorder %v36, 0.0
    %vm41 = vcmp.gt.f32.partialorder %v39, 0.0
    %v42 = vmax.f32 %v36, 1e-12
    %v43 = vmax.f32 %v39, 1e-12
    %v44 = vrsqrt.pop %v42
    %v45 = vmul.f32 %v44, %v42
    %v46 = vmul.f32 %v45, %v44
    %v47 = vmul.f32 0.5, %v46
    %v48 = vsub.f32 1.5, %v47
    %v49 = vmul.f32 %v44, %v48
    %vm50 = vweird.f32 %v42
    %vm51 = vweird.f32 %v44
    %vm52 = vmor %vm50, %vm51
    %v53 = vsel %vm52, %v44, %v49
    %v54 = vrsqrt.pop %v43
    %v55 = vmul.f32 %v54, %v43
    %v56 = vmul.f32 %v55, %v54
    %v57 = vmul.f32 0.5, %v56
    %v58 = vsub.f32 1.5, %v57
    %v59 = vmul.f32 %v54, %v58
    %vm60 = vweird.f32 %v43
    %vm61 = vweird.f32 %v54
    %vm62 = vmor %vm60, %vm61
    %v63 = vsel %vm62, %v54, %v59
    %v64 = vsel %vm40, %v53, 0.0
    %v65 = vsel %vm41, %v63, 0.0
    %v66 = vmul.f32 %v64, %v31
    %v67 = vmul.f32 %v65, %v32
    %68 = vxpose.xlu0.b32.start [1/16] %v66, 128
    %69 = vxpose.xlu0.b32.cont [2/16] %v67, 128
    %70 = vxpose.xlu0.b32.cont [3/16] 0.0, 128
    %71 = vxpose.xlu0.b32.cont [4/16] 0.0, 128
    %72 = vxpose.xlu0.b32.cont [5/16] 0.0, 128
    %73 = vxpose.xlu0.b32.cont [6/16] 0.0, 128
    %74 = vxpose.xlu0.b32.cont [7/16] 0.0, 128
    %75 = vxpose.xlu0.b32.cont [8/16] 0.0, 128
    %76 = vxpose.xlu0.b32.cont [9/16] 0.0, 128
    %77 = vxpose.xlu0.b32.cont [10/16] 0.0, 128
    %78 = vxpose.xlu0.b32.cont [11/16] 0.0, 128
    %79 = vxpose.xlu0.b32.cont [12/16] 0.0, 128
    %80 = vxpose.xlu0.b32.cont [13/16] 0.0, 128
    %81 = vxpose.xlu0.b32.cont [14/16] 0.0, 128
    %82 = vxpose.xlu0.b32.cont [15/16] 0.0, 128
    %83 = vxpose.xlu0.b32.end [16/16] 0.0, 128
    %v84 = vpop.trf.xlu0
    %v85 = vpop.trf.xlu0
    %v86 = vpop.trf.xlu0
    %v87 = vpop.trf.xlu0
    %v88 = vpop.trf.xlu0
    %v89 = vpop.trf.xlu0
    %v90 = vpop.trf.xlu0
    %v91 = vpop.trf.xlu0
    %v92 = vpop.trf.xlu0
    %v93 = vpop.trf.xlu0
    %v94 = vpop.trf.xlu0
    %v95 = vpop.trf.xlu0
    %v96 = vpop.trf.xlu0
    %v97 = vpop.trf.xlu0
    %v98 = vpop.trf.xlu0
    %v99 = vpop.trf.xlu0
    %v100 = vmul.f32 %v64, %v84
    %v101 = vmul.f32 %v65, %v85
    %102 = vxpose.xlu0.b32.start [1/16] %v100, 128
    %103 = vxpose.xlu0.b32.cont [2/16] %v101, 128
    %104 = vxpose.xlu0.b32.cont [3/16] 0.0, 128
    %105 = vxpose.xlu0.b32.cont [4/16] 0.0, 128
    %106 = vxpose.xlu0.b32.cont [5/16] 0.0, 128
    %107 = vxpose.xlu0.b32.cont [6/16] 0.0, 128
    %108 = vxpose.xlu0.b32.cont [7/16] 0.0, 128
    %109 = vxpose.xlu0.b32.cont [8/16] 0.0, 128
    %110 = vxpose.xlu0.b32.cont [9/16] 0.0, 128
    %111 = vxpose.xlu0.b32.cont [10/16] 0.0, 128
    %112 = vxpose.xlu0.b32.cont [11/16] 0.0, 128
    %113 = vxpose.xlu0.b32.cont [12/16] 0.0, 128
    %114 = vxpose.xlu0.b32.cont [13/16] 0.0, 128
    %115 = vxpose.xlu0.b32.cont [14/16] 0.0, 128
    %116 = vxpose.xlu0.b32.cont [15/16] 0.0, 128
    %117 = vxpose.xlu0.b32.end [16/16] 0.0, 128
    %v118 = vpop.trf.xlu0
    %v119 = vpop.trf.xlu0
    %v120 = vpop.trf.xlu0
    %v121 = vpop.trf.xlu0
    %v122 = vpop.trf.xlu0
    %v123 = vpop.trf.xlu0
    %v124 = vpop.trf.xlu0
    %v125 = vpop.trf.xlu0
    %v126 = vpop.trf.xlu0
    %v127 = vpop.trf.xlu0
    %v128 = vpop.trf.xlu0
    %v129 = vpop.trf.xlu0
    %v130 = vpop.trf.xlu0
    %v131 = vpop.trf.xlu0
    %v132 = vpop.trf.xlu0
    %v133 = vpop.trf.xlu0
    %v134 = vmul.f32 %v118, 0.1
    %v135 = vmul.f32 %v119, 0.1
    %v136 = vld [vmem:[%s2] sm:$0xff]
    %v137 = vld [vmem:[%s2 + $0x8] sm:$0xff]
    %v138 = vmul.f32 %v136, 0.9
    %v139 = vmul.f32 %v137, 0.9
    %v140 = vadd.f32 %v134, %v138
    %v141 = vadd.f32 %v135, %v139
    %142 = vst.msk [vmem:[#allocation2] sm:$0xff] %vm33, %v140
    %143 = vst.msk [vmem:[#allocation2 + $0x8] sm:$0xff] %vm33, %v141
    // Predicated region
    $region14: #{iso_transform_forward.7} parent=1 // pred_check
      _
    $region15: #{iso_transform_forward.7} parent=1 // pred_check_branch
      %145 = sbr.rel (0) target = $region17
    $region16: #{iso_transform_forward.7} parent=1 // pred_region
      %147 = vsyncadd [#allocation3], 0
      %s148 = sshll.u32 [#allocation2], 4
      %s149 = int_to_ptr.vmem [resolvable:$true] %s148
      %s150 = sshll.u32 %s3, 4
      %s151 = int_to_ptr.hbm [resolvable:$true] %s150
      %156 = dma.vmem_to_hbm [thread:$0]  %s149, 256, %s151, [#allocation3], 128, 128, 8
    $region17: #{iso_transform_forward.7} parent=1 // pred_fallthru
      _
    // Predicated region
    $region18: #{iso_transform_forward.7} parent=1 // pred_check
      _
    $region19: #{iso_transform_forward.7} parent=1 // pred_check_branch
      %158 = sbr.rel (0) target = $region21
    $region20: #{iso_transform_forward.7} parent=1 // pred_region
      %160 = dma.done [#allocation3], 256
    $region21: #{iso_transform_forward.7} parent=1 // pred_fallthru
      _
    %161 = vsyncpa [#allocation3], 1

</llo_original>
